<compile_context>
chip_gen: v6e
topology: v6e:2x2x1
jax: 0.10.0
libtpu: 0.0.40
codegen_flags: <defaults>
</compile_context>

<pallas_src>
import math
from functools import partial

import jax
import jax.numpy as jnp
from jax import lax
from jax.experimental import pallas as pl
from jax.experimental.pallas import tpu as pltpu

LN_EPS = 1e-5                       # layer_norm_eps default of the module
MXU_DTYPE = jnp.bfloat16            # matmul-operand dtype (f32 accumulation)
TM_ROWS = 256                       # row tile; sized for v7x 64 MiB VMEM (512 ok on v5e/v6e)
VMEM_LIMIT = 48 * 1024 * 1024       # scoped-VMEM limit with headroom


# ---------------------------------------------------------------------------
# small math helpers (run inside kernels, f32)
# ---------------------------------------------------------------------------
def _erf(x):
    # Abramowitz & Stegun 7.1.26 polynomial, |err| < 1.5e-7 (~ f32 resolution)
    a1, a2, a3, a4, a5 = 0.254829592, -0.284496736, 1.421413741, -1.453152027, 1.061405429
    p = 0.3275911
    xa = jnp.abs(x)
    t = 1.0 / (1.0 + p * xa)
    y = 1.0 - ((((a5 * t + a4) * t + a3) * t + a2) * t + a1) * t * jnp.exp(-xa * xa)
    return jnp.where(x >= 0, y, -y)


def _gelu_exact(x):
    # F.gelu default ("exact" erf form)
    return 0.5 * x * (1.0 + _erf(x * (1.0 / math.sqrt(2.0))))


def _layernorm(z, g, b):
    mu = jnp.mean(z, axis=-1, keepdims=True)
    zc = z - mu
    var = jnp.mean(zc * zc, axis=-1, keepdims=True)   # biased var (torch LayerNorm)
    return zc * lax.rsqrt(var + LN_EPS) * g + b


# ---------------------------------------------------------------------------
# Pallas kernels
# ---------------------------------------------------------------------------
def qkv_proj_kernel(x_ref, w_ref, b_ref, o_ref):
    # (tm, D) @ (D, 3D) + (1, 3D) -> (tm, 3D); bf16 MXU operands, f32 accumulate
    o_ref[...] = (
        jnp.dot(x_ref[...].astype(w_ref.dtype), w_ref[...],
                preferred_element_type=jnp.float32)
        + b_ref[...]
    )


def qer_kernel(q_ref, er_ref, o_ref, *, nhead, head_dim):
    # QEr[b, h] = q_h (S, hd) @ Er_h^T (hd, 2S-1)   (MXU, per head)
    for h in range(nhead):
        lo = h * head_dim
        q_h = q_ref[0, :, lo:lo + head_dim].astype(MXU_DTYPE)     # (S, hd)
        er_h = er_ref[h].astype(MXU_DTYPE)                        # (2S-1, hd)
        o_ref[0, h] = lax.dot_general(
            q_h, er_h, (((1,), (1,)), ((), ())),
            preferred_element_type=jnp.float32)                   # (S, 2S-1)


def attention_kernel(q_ref, k_ref, v_ref, srel_ref, o_ref,
                     m_sc, l_sc, acc_sc, *, nhead, head_dim, scale):
    # grid = (B, n_kv); kv axis is "arbitrary" (online softmax accumulation).
    # q_ref : (1, S,  D)   k_ref/v_ref : (1, tkv, D)   srel_ref : (1, H, S, tkv)
    # o_ref : (1, S,  D)  lane-dense, written once at the last kv step.
    kv = pl.program_id(1)

    @pl.when(kv == 0)
    def _():
        m_sc[...] = jnp.full(m_sc.shape, -jnp.inf, m_sc.dtype)
        l_sc[...] = jnp.zeros(l_sc.shape, l_sc.dtype)
        acc_sc[...] = jnp.zeros(acc_sc.shape, acc_sc.dtype)

    for h in range(nhead):                                   # static unroll over heads
        lo = h * head_dim
        q_h = q_ref[0, :, lo:lo + head_dim].astype(MXU_DTYPE)    # (S, hd)
        k_h = k_ref[0, :, lo:lo + head_dim].astype(MXU_DTYPE)    # (tkv, hd)
        v_h = v_ref[0, :, lo:lo + head_dim].astype(MXU_DTYPE)    # (tkv, hd)

        s = lax.dot_general(q_h, k_h, (((1,), (1,)), ((), ())),
                            preferred_element_type=jnp.float32)  # (S, tkv)
        s = (s + srel_ref[0, h]) * scale                         # (content + Srel)/sqrt(hd)

        m_prev = m_sc[h]                                         # (S, 1)
        m_new = jnp.maximum(m_prev, jnp.max(s, axis=-1, keepdims=True))
        alpha = jnp.exp(m_prev - m_new)
        p = jnp.exp(s - m_new)
        l_sc[h] = alpha * l_sc[h] + jnp.sum(p, axis=-1, keepdims=True)
        pv = jnp.dot(p.astype(MXU_DTYPE), v_h,
                     preferred_element_type=jnp.float32)         # (S, hd)
        acc_sc[:, lo:lo + head_dim] = alpha * acc_sc[:, lo:lo + head_dim] + pv
        m_sc[h] = m_new

    @pl.when(kv == pl.num_programs(1) - 1)
    def _():
        for h in range(nhead):
            lo = h * head_dim
            inv_l = pl.reciprocal(l_sc[h], approx=True)          # (S, 1)
            o_ref[0, :, lo:lo + head_dim] = (
                acc_sc[:, lo:lo + head_dim] * inv_l).astype(o_ref.dtype)


def tail_kernel(x_ref, sa_ref, g1_ref, bn1_ref, w1_ref, b1_ref,
                w2_ref, b2_ref, g2_ref, bn2_ref, o_ref):
    # Fused: add + LN1 + linear1 + GELU + linear2 + add + LN2   (row tile resident)
    h1 = _layernorm(x_ref[...] + sa_ref[...], g1_ref[...], bn1_ref[...])
    t = (jnp.dot(h1.astype(w1_ref.dtype), w1_ref[...],
                 preferred_element_type=jnp.float32) + b1_ref[...])
    t = _gelu_exact(t)
    ff = (jnp.dot(t.astype(w2_ref.dtype), w2_ref[...],
                  preferred_element_type=jnp.float32) + b2_ref[...])
    o_ref[...] = _layernorm(h1 + ff, g2_ref[...], bn2_ref[...])


# ---------------------------------------------------------------------------
# pallas_call wrappers
# ---------------------------------------------------------------------------
def _compiler_params(sem):
    return pltpu.CompilerParams(dimension_semantics=sem, vmem_limit_bytes=VMEM_LIMIT)


def pallas_qkv_proj(x2d, w, b, *, tm=TM_ROWS):
    M, D = x2d.shape
    N = w.shape[1]
    tm = M if M <= tm else tm
    return pl.pallas_call(
        qkv_proj_kernel,
        out_shape=jax.ShapeDtypeStruct((M, N), jnp.float32),
        grid=(pl.cdiv(M, tm),),
        in_specs=[pl.BlockSpec((tm, D), lambda i: (i, 0)),
                  pl.BlockSpec((D, N), lambda i: (0, 0)),
                  pl.BlockSpec((1, N), lambda i: (0, 0))],
        out_specs=pl.BlockSpec((tm, N), lambda i: (i, 0)),
        compiler_params=_compiler_params(("parallel",)),
    )(x2d, w, b.reshape(1, N))


def pallas_qer(q3, er_t, *, nhead):
    B, S, D = q3.shape
    hd = D // nhead
    L = er_t.shape[1]
    kernel = partial(qer_kernel, nhead=nhead, head_dim=hd)
    return pl.pallas_call(
        kernel,
        out_shape=jax.ShapeDtypeStruct((B, nhead, S, L), jnp.float32),
        grid=(B,),
        in_specs=[pl.BlockSpec((1, S, D), lambda b: (b, 0, 0)),
                  pl.BlockSpec((nhead, L, hd), lambda b: (0, 0, 0))],
        out_specs=pl.BlockSpec((1, nhead, S, L), lambda b: (b, 0, 0, 0)),
        compiler_params=_compiler_params(("parallel",)),
    )(q3, er_t)


def _pick_kv_tile(S):
    # KV tile must divide S exactly and be lane/sublane friendly.
    for t in (512, 256, 128):
        if S % t == 0:
            return t
    return S


def pallas_attention(q3, k3, v3, srel, *, nhead):
    B, S, D = q3.shape
    hd = D // nhead
    tkv = _pick_kv_tile(S)
    nkv = S // tkv
    kernel = partial(attention_kernel, nhead=nhead, head_dim=hd,
                     scale=1.0 / math.sqrt(hd))
    return pl.pallas_call(
        kernel,
        out_shape=jax.ShapeDtypeStruct((B, S, D), jnp.float32),
        grid=(B, nkv),
        in_specs=[pl.BlockSpec((1, S, D), lambda b, kv: (b, 0, 0)),
                  pl.BlockSpec((1, tkv, D), lambda b, kv: (b, kv, 0)),
                  pl.BlockSpec((1, tkv, D), lambda b, kv: (b, kv, 0)),
                  pl.BlockSpec((1, nhead, S, tkv), lambda b, kv: (b, 0, 0, kv))],
        out_specs=pl.BlockSpec((1, S, D), lambda b, kv: (b, 0, 0)),
        scratch_shapes=[pltpu.VMEM((nhead, S, 1), jnp.float32),   # running max
                        pltpu.VMEM((nhead, S, 1), jnp.float32),   # running sum
                        pltpu.VMEM((S, D), jnp.float32)],         # running acc (lane-dense)
        compiler_params=_compiler_params(("parallel", "arbitrary")),
    )(q3, k3, v3, srel)


def pallas_tail(x2d, sa2d, p, *, tm=TM_ROWS):
    M, D = x2d.shape
    F = p["w1"].shape[1]
    tm = M if M <= tm else tm
    row = lambda i: (i, 0)
    cst = lambda i: (0, 0)
    return pl.pallas_call(
        tail_kernel,
        out_shape=jax.ShapeDtypeStruct((M, D), jnp.float32),
        grid=(pl.cdiv(M, tm),),
        in_specs=[pl.BlockSpec((tm, D), row), pl.BlockSpec((tm, D), row),
                  pl.BlockSpec((1, D), cst), pl.BlockSpec((1, D), cst),
                  pl.BlockSpec((D, F), cst), pl.BlockSpec((1, F), cst),
                  pl.BlockSpec((F, D), cst), pl.BlockSpec((1, D), cst),
                  pl.BlockSpec((1, D), cst), pl.BlockSpec((1, D), cst)],
        out_specs=pl.BlockSpec((tm, D), row),
        compiler_params=_compiler_params(("parallel",)),
    )(x2d, sa2d,
      p["ln1_g"].reshape(1, D), p["ln1_b"].reshape(1, D),
      p["w1"], p["b1"].reshape(1, F),
      p["w2"], p["b2"].reshape(1, D),
      p["ln2_g"].reshape(1, D), p["ln2_b"].reshape(1, D))


# ---------------------------------------------------------------------------
# forward pass (norm_first=False; dropout layers are identity in eval mode)
# ---------------------------------------------------------------------------
def encoder_layer_forward(x, params, *, nhead, max_len):
    B, S, D = x.shape
    assert D % nhead == 0
    assert S <= max_len  # TODO(synk): S > max_len edge-repeat Er path not implemented
    hd = D // nhead
    M = B * S
    x2d = x.reshape(M, D)

    # ---- fused Q|K|V projection (one GEMM, x read once) ----
    qkv = pallas_qkv_proj(x2d, params["wqkv"], params["bqkv"])        # (M, 3D) f32
    qkv3 = qkv.reshape(B, S, 3 * D)
    q3, k3, v3 = qkv3[:, :, :D], qkv3[:, :, D:2 * D], qkv3[:, :, 2 * D:]

    # ---- relative positional logits: QEr on the MXU, then the "skew" ----
    # S <= max_len path: Er_t = Er[:, max_len-S : max_len+S-1, :]    (H, 2S-1, hd)
    er_t = params["Er"][:, max_len - S:max_len + S - 1, :]
    qer = pallas_qer(q3, er_t, nhead=nhead)                            # (B, H, S, 2S-1)
    # Skew (plain-JAX data-movement glue, equivalent to torch's pad/reshape skew):
    #   Srel[b,h,i,j] = QEr[b,h,i, (S-1) + j - i]
    idx = (S - 1) + jnp.arange(S)[None, :] - jnp.arange(S)[:, None]    # (S, S)
    srel = jnp.take_along_axis(
        qer, jnp.broadcast_to(idx, (B, nhead, S, S)), axis=-1)          # (B, H, S, S)

    # ---- flash-style attention, lane-dense (B, S, D) output ----
    sa = pallas_attention(q3, k3, v3, srel, nhead=nhead)               # (B, S, D)
    # TODO(synk): attn_mask / key_padding_mask only supported as None.

    # ---- fused  add+LN1 + FFN(GELU) + add+LN2 ----
    out2d = pallas_tail(x2d, sa.reshape(M, D), params)
    return out2d.reshape(B, S, D)


# ---------------------------------------------------------------------------
# parameters (shapes follow the module's __init__); bf16 conversion for MXU
# ---------------------------------------------------------------------------
def init_params(key, d_model, nhead, dim_ff, max_len):
    hd = d_model // nhead
    ks = jax.random.split(key, 6)

    def lin(k, fan_in, fan_out):
        kw, kb = jax.random.split(k)
        bound = 1.0 / math.sqrt(fan_in)
        w = jax.random.uniform(kw, (fan_in, fan_out), jnp.float32, -bound, bound)
        b = jax.random.uniform(kb, (fan_out,), jnp.float32, -bound, bound)
        return w, b

    wq, bq = lin(ks[0], d_model, d_model)
    wk, bk = lin(ks[1], d_model, d_model)
    wv, bv = lin(ks[2], d_model, d_model)
    w1, b1 = lin(ks[3], d_model, dim_ff)
    w2, b2 = lin(ks[4], dim_ff, d_model)
    er = jax.random.normal(ks[5], (nhead, 2 * max_len - 1 + 2, hd), jnp.float32)

    return dict(
        wqkv=jnp.concatenate([wq, wk, wv], axis=1),
        bqkv=jnp.concatenate([bq, bk, bv], axis=0),
        w1=w1, b1=b1, w2=w2, b2=b2, Er=er,
        ln1_g=jnp.ones((d_model,), jnp.float32), ln1_b=jnp.zeros((d_model,), jnp.float32),
        ln2_g=jnp.ones((d_model,), jnp.float32), ln2_b=jnp.zeros((d_model,), jnp.float32),
    )


def prepare_params(p):
    # store matmul weights in bf16 (halves weight HBM traffic; f32 accumulation in-kernel)
    q = dict(p)
    for k in ("wqkv", "w1", "w2"):
        q[k] = p[k].astype(MXU_DTYPE)
    return q


# ---------------------------------------------------------------------------
# pure-JAX reference (mirrors the torch module, f32 everywhere)
# ---------------------------------------------------------------------------
def reference_forward(x, p, *, nhead, max_len):
    B, S, D = x.shape
    hd = D // nhead
    wq, wk, wv = jnp.split(p["wqkv"], 3, axis=1)
    bq, bk, bv = jnp.split(p["bqkv"], 3, axis=0)

    def ln(z, g, b):
        mu = z.mean(-1, keepdims=True)
        var = ((z - mu) ** 2).mean(-1, keepdims=True)
        return (z - mu) / jnp.sqrt(var + LN_EPS) * g + b

    q = (x @ wq + bq).reshape(B, S, nhead, hd).transpose(0, 2, 1, 3)
    k = (x @ wk + bk).reshape(B, S, nhead, hd).transpose(0, 2, 1, 3)
    v = (x @ wv + bv).reshape(B, S, nhead, hd).transpose(0, 2, 1, 3)

    er_t = p["Er"][:, max_len - S:max_len + S - 1, :]                  # (H, 2S-1, hd)
    qer = jnp.einsum("bhsd,hld->bhsl", q, er_t)
    # torch skew (pad / reshape / slice)
    L = 2 * S - 1
    sk = jnp.pad(qer, ((0, 0), (0, 0), (0, 0), (0, 1))).reshape(B, nhead, -1)
    sk = jnp.pad(sk, ((0, 0), (0, 0), (0, L - S))).reshape(B, nhead, S + 1, L)
    srel = sk[:, :, :S, L - S:]

    attn = (jnp.einsum("bhqd,bhkd->bhqk", q, k) + srel) / math.sqrt(hd)
    attn = jax.nn.softmax(attn, axis=-1)
    sa = jnp.einsum("bhqk,bhkd->bhqd", attn, v).transpose(0, 2, 1, 3).reshape(B, S, D)

    x1 = ln(x + sa, p["ln1_g"], p["ln1_b"])
    ff = jax.nn.gelu(x1 @ p["w1"] + p["b1"], approximate=False) @ p["w2"] + p["b2"]
    return ln(x1 + ff, p["ln2_g"], p["ln2_b"])


if __name__ == "__main__":
    B, S, D, H, FF, MAXLEN = 2, 16, 32, 4, 64, 64

    key = jax.random.PRNGKey(0)
    kx, kp = jax.random.split(key)
    x = jax.random.normal(kx, (B, S, D), jnp.float32)
    params = init_params(kp, D, H, FF, MAXLEN)

    fwd = jax.jit(partial(encoder_layer_forward, nhead=H, max_len=MAXLEN))
    out = jax.block_until_ready(fwd(x, prepare_params(params)))
    assert out.shape == (B, S, D) and out.dtype == jnp.float32

    # correctness check vs pure-JAX torch-equivalent reference
    # (loose tolerance: matmul operands are bf16 on the MXU, accumulation is f32)
    ref = reference_forward(x, params, nhead=H, max_len=MAXLEN)
    err = float(jnp.max(jnp.abs(out - ref)))
    assert err < 0.15, f"numerical mismatch vs reference: max|err|={err:.4f}"

    print("KERNEL_OK")
</pallas_src>

<mosaic_0001>
module attributes {stable_mosaic.version = 11 : i64} {
  func.func @qkv_proj_kernel(%arg0: i32, %arg1: memref<32x32xf32, #tpu.memory_space<vmem>>, %arg2: memref<32x96xbf16, #tpu.memory_space<vmem>>, %arg3: memref<1x96xf32, #tpu.memory_space<vmem>>, %arg4: memref<32x96xf32, #tpu.memory_space<vmem>>) attributes {dimension_semantics = [#tpu.dimension_semantics<parallel>], iteration_bounds = array<i64: 1>, scalar_prefetch = 0 : i64, scratch_operands = 0 : i64, tpu.core_type = #tpu.core_type<tc>, window_params = [{transform_indices = @transform_0, window_bounds = array<i64: 32, 32>}, {pipeline_mode = #tpu.pipeline_mode<synchronous>, transform_indices = @transform_1, window_bounds = array<i64: 32, 96>}, {pipeline_mode = #tpu.pipeline_mode<synchronous>, transform_indices = @transform_2, window_bounds = array<i64: 1, 96>}, {transform_indices = @transform_3, window_bounds = array<i64: 32, 96>}]} {
    %c0 = arith.constant 0 : index
    %c0_0 = arith.constant 0 : index
    %0 = vector.load %arg1[%c0, %c0_0] : memref<32x32xf32, #tpu.memory_space<vmem>>, vector<32x32xf32>
    %1 = arith.truncf %0 : vector<32x32xf32> to vector<32x32xbf16>
    %c0_1 = arith.constant 0 : index
    %c0_2 = arith.constant 0 : index
    %2 = vector.load %arg2[%c0_1, %c0_2] : memref<32x96xbf16, #tpu.memory_space<vmem>>, vector<32x96xbf16>
    %cst = arith.constant dense<0.000000e+00> : vector<32x96xf32>
    %3 = tpu.matmul %1, %2, %cst {dimension_numbers = #tpu.dot_dimension_numbers<[1], [0], [0], [1], [0, 0, 1, 1], [], []>} : vector<32x32xbf16>, vector<32x96xbf16>, vector<32x96xf32> -> vector<32x96xf32>
    %c0_3 = arith.constant 0 : index
    %c0_4 = arith.constant 0 : index
    %4 = vector.load %arg3[%c0_3, %c0_4] : memref<1x96xf32, #tpu.memory_space<vmem>>, vector<1x96xf32>
    %5 = vector.broadcast %4 : vector<1x96xf32> to vector<32x96xf32>
    %6 = arith.addf %3, %5 : vector<32x96xf32>
    %c0_5 = arith.constant 0 : index
    %c0_6 = arith.constant 0 : index
    %7 = vector.load %arg4[%c0_5, %c0_6] : memref<32x96xf32, #tpu.memory_space<vmem>>, vector<32x96xf32>
    tpu.vector_store %arg4[%c0_5, %c0_6], %6 {strides = array<i32>} : memref<32x96xf32, #tpu.memory_space<vmem>>, vector<32x96xf32>,
    return
  }
  func.func @transform_0(%arg0: i32) -> (i32, i32) {
    %c0_i32 = arith.constant 0 : i32
    %c0_i32_0 = arith.constant 0 : i32
    return %arg0, %c0_i32 : i32, i32
  }
  func.func @transform_1(%arg0: i32) -> (i32, i32) {
    %c0_i32 = arith.constant 0 : i32
    %c0_i32_0 = arith.constant 0 : i32
    %c0_i32_1 = arith.constant 0 : i32
    return %c0_i32, %c0_i32_0 : i32, i32
  }
  func.func @transform_2(%arg0: i32) -> (i32, i32) {
    %c0_i32 = arith.constant 0 : i32
    %c0_i32_0 = arith.constant 0 : i32
    %c0_i32_1 = arith.constant 0 : i32
    return %c0_i32, %c0_i32_0 : i32, i32
  }
  func.func @transform_3(%arg0: i32) -> (i32, i32) {
    %c0_i32 = arith.constant 0 : i32
    %c0_i32_0 = arith.constant 0 : i32
    return %arg0, %c0_i32 : i32, i32
  }
}

module attributes {stable_mosaic.version = 11 : i64} {
  func.func @qer_kernel(%arg0: i32, %arg1: memref<1x16x32xf32, #tpu.memory_space<vmem>>, %arg2: memref<4x31x8xf32, #tpu.memory_space<vmem>>, %arg3: memref<1x4x16x31xf32, #tpu.memory_space<vmem>>) attributes {dimension_semantics = [#tpu.dimension_semantics<parallel>], iteration_bounds = array<i64: 2>, scalar_prefetch = 0 : i64, scratch_operands = 0 : i64, tpu.core_type = #tpu.core_type<tc>, window_params = [{transform_indices = @transform_0, window_bounds = array<i64: 1, 16, 32>}, {pipeline_mode = #tpu.pipeline_mode<synchronous>, transform_indices = @transform_1, window_bounds = array<i64: 4, 31, 8>}, {transform_indices = @transform_2, window_bounds = array<i64: 1, 4, 16, 31>}]} {
    %c0 = arith.constant 0 : index
    %c0_0 = arith.constant 0 : index
    %c0_1 = arith.constant 0 : index
    %0 = vector.load %arg1[%c0, %c0_0, %c0_1] : memref<1x16x32xf32, #tpu.memory_space<vmem>>, vector<1x16x8xf32>
    %1 = vector.shape_cast %0 : vector<1x16x8xf32> to vector<16x8xf32>
    %2 = arith.truncf %1 : vector<16x8xf32> to vector<16x8xbf16>
    %c0_2 = arith.constant 0 : index
    %c0_3 = arith.constant 0 : index
    %c0_4 = arith.constant 0 : index
    %3 = vector.load %arg2[%c0_2, %c0_3, %c0_4] : memref<4x31x8xf32, #tpu.memory_space<vmem>>, vector<1x31x8xf32>
    %4 = vector.shape_cast %3 : vector<1x31x8xf32> to vector<31x8xf32>
    %5 = arith.truncf %4 : vector<31x8xf32> to vector<31x8xbf16>
    %cst = arith.constant dense<0.000000e+00> : vector<16x31xf32>
    %6 = tpu.matmul %2, %5, %cst {dimension_numbers = #tpu.dot_dimension_numbers<[1], [1], [0], [0], [0, 0, 1, 0], [], []>} : vector<16x8xbf16>, vector<31x8xbf16>, vector<16x31xf32> -> vector<16x31xf32>
    %c0_5 = arith.constant 0 : index
    %c0_6 = arith.constant 0 : index
    %c0_7 = arith.constant 0 : index
    %c0_8 = arith.constant 0 : index
    %7 = vector.load %arg3[%c0_5, %c0_6, %c0_7, %c0_8] : memref<1x4x16x31xf32, #tpu.memory_space<vmem>>, vector<1x1x16x31xf32>
    %8 = vector.shape_cast %7 : vector<1x1x16x31xf32> to vector<16x31xf32>
    %9 = vector.shape_cast %6 : vector<16x31xf32> to vector<1x1x16x31xf32>
    tpu.vector_store %arg3[%c0_5, %c0_6, %c0_7, %c0_8], %9 {strides = array<i32>} : memref<1x4x16x31xf32, #tpu.memory_space<vmem>>, vector<1x1x16x31xf32>,
    %c0_9 = arith.constant 0 : index
    %c0_10 = arith.constant 0 : index
    %c8 = arith.constant 8 : index
    %10 = vector.load %arg1[%c0_9, %c0_10, %c8] : memref<1x16x32xf32, #tpu.memory_space<vmem>>, vector<1x16x8xf32>
    %11 = vector.shape_cast %10 : vector<1x16x8xf32> to vector<16x8xf32>
    %12 = arith.truncf %11 : vector<16x8xf32> to vector<16x8xbf16>
    %c1 = arith.constant 1 : index
    %c0_11 = arith.constant 0 : index
    %c0_12 = arith.constant 0 : index
    %13 = vector.load %arg2[%c1, %c0_11, %c0_12] : memref<4x31x8xf32, #tpu.memory_space<vmem>>, vector<1x31x8xf32>
    %14 = vector.shape_cast %13 : vector<1x31x8xf32> to vector<31x8xf32>
    %15 = arith.truncf %14 : vector<31x8xf32> to vector<31x8xbf16>
    %cst_13 = arith.constant dense<0.000000e+00> : vector<16x31xf32>
    %16 = tpu.matmul %12, %15, %cst_13 {dimension_numbers = #tpu.dot_dimension_numbers<[1], [1], [0], [0], [0, 0, 1, 0], [], []>} : vector<16x8xbf16>, vector<31x8xbf16>, vector<16x31xf32> -> vector<16x31xf32>
    %c0_14 = arith.constant 0 : index
    %c1_15 = arith.constant 1 : index
    %c0_16 = arith.constant 0 : index
    %c0_17 = arith.constant 0 : index
    %17 = vector.load %arg3[%c0_14, %c1_15, %c0_16, %c0_17] : memref<1x4x16x31xf32, #tpu.memory_space<vmem>>, vector<1x1x16x31xf32>
    %18 = vector.shape_cast %17 : vector<1x1x16x31xf32> to vector<16x31xf32>
    %19 = vector.shape_cast %16 : vector<16x31xf32> to vector<1x1x16x31xf32>
    tpu.vector_store %arg3[%c0_14, %c1_15, %c0_16, %c0_17], %19 {strides = array<i32>} : memref<1x4x16x31xf32, #tpu.memory_space<vmem>>, vector<1x1x16x31xf32>,
    %c0_18 = arith.constant 0 : index
    %c0_19 = arith.constant 0 : index
    %c16 = arith.constant 16 : index
    %20 = vector.load %arg1[%c0_18, %c0_19, %c16] : memref<1x16x32xf32, #tpu.memory_space<vmem>>, vector<1x16x8xf32>
    %21 = vector.shape_cast %20 : vector<1x16x8xf32> to vector<16x8xf32>
    %22 = arith.truncf %21 : vector<16x8xf32> to vector<16x8xbf16>
    %c2 = arith.constant 2 : index
    %c0_20 = arith.constant 0 : index
    %c0_21 = arith.constant 0 : index
    %23 = vector.load %arg2[%c2, %c0_20, %c0_21] : memref<4x31x8xf32, #tpu.memory_space<vmem>>, vector<1x31x8xf32>
    %24 = vector.shape_cast %23 : vector<1x31x8xf32> to vector<31x8xf32>
    %25 = arith.truncf %24 : vector<31x8xf32> to vector<31x8xbf16>
    %cst_22 = arith.constant dense<0.000000e+00> : vector<16x31xf32>
    %26 = tpu.matmul %22, %25, %cst_22 {dimension_numbers = #tpu.dot_dimension_numbers<[1], [1], [0], [0], [0, 0, 1, 0], [], []>} : vector<16x8xbf16>, vector<31x8xbf16>, vector<16x31xf32> -> vector<16x31xf32>
    %c0_23 = arith.constant 0 : index
    %c2_24 = arith.constant 2 : index
    %c0_25 = arith.constant 0 : index
    %c0_26 = arith.constant 0 : index
    %27 = vector.load %arg3[%c0_23, %c2_24, %c0_25, %c0_26] : memref<1x4x16x31xf32, #tpu.memory_space<vmem>>, vector<1x1x16x31xf32>
    %28 = vector.shape_cast %27 : vector<1x1x16x31xf32> to vector<16x31xf32>
    %29 = vector.shape_cast %26 : vector<16x31xf32> to vector<1x1x16x31xf32>
    tpu.vector_store %arg3[%c0_23, %c2_24, %c0_25, %c0_26], %29 {strides = array<i32>} : memref<1x4x16x31xf32, #tpu.memory_space<vmem>>, vector<1x1x16x31xf32>,
    %c0_27 = arith.constant 0 : index
    %c0_28 = arith.constant 0 : index
    %c24 = arith.constant 24 : index
    %30 = vector.load %arg1[%c0_27, %c0_28, %c24] : memref<1x16x32xf32, #tpu.memory_space<vmem>>, vector<1x16x8xf32>
    %31 = vector.shape_cast %30 : vector<1x16x8xf32> to vector<16x8xf32>
    %32 = arith.truncf %31 : vector<16x8xf32> to vector<16x8xbf16>
    %c3 = arith.constant 3 : index
    %c0_29 = arith.constant 0 : index
    %c0_30 = arith.constant 0 : index
    %33 = vector.load %arg2[%c3, %c0_29, %c0_30] : memref<4x31x8xf32, #tpu.memory_space<vmem>>, vector<1x31x8xf32>
    %34 = vector.shape_cast %33 : vector<1x31x8xf32> to vector<31x8xf32>
    %35 = arith.truncf %34 : vector<31x8xf32> to vector<31x8xbf16>
    %cst_31 = arith.constant dense<0.000000e+00> : vector<16x31xf32>
    %36 = tpu.matmul %32, %35, %cst_31 {dimension_numbers = #tpu.dot_dimension_numbers<[1], [1], [0], [0], [0, 0, 1, 0], [], []>} : vector<16x8xbf16>, vector<31x8xbf16>, vector<16x31xf32> -> vector<16x31xf32>
    %c0_32 = arith.constant 0 : index
    %c3_33 = arith.constant 3 : index
    %c0_34 = arith.constant 0 : index
    %c0_35 = arith.constant 0 : index
    %37 = vector.load %arg3[%c0_32, %c3_33, %c0_34, %c0_35] : memref<1x4x16x31xf32, #tpu.memory_space<vmem>>, vector<1x1x16x31xf32>
    %38 = vector.shape_cast %37 : vector<1x1x16x31xf32> to vector<16x31xf32>
    %39 = vector.shape_cast %36 : vector<16x31xf32> to vector<1x1x16x31xf32>
    tpu.vector_store %arg3[%c0_32, %c3_33, %c0_34, %c0_35], %39 {strides = array<i32>} : memref<1x4x16x31xf32, #tpu.memory_space<vmem>>, vector<1x1x16x31xf32>,
    return
  }
  func.func @transform_0(%arg0: i32) -> (i32, i32, i32) {
    %c0_i32 = arith.constant 0 : i32
    %c0_i32_0 = arith.constant 0 : i32
    %c0_i32_1 = arith.constant 0 : i32
    return %arg0, %c0_i32, %c0_i32_0 : i32, i32, i32
  }
  func.func @transform_1(%arg0: i32) -> (i32, i32, i32) {
    %c0_i32 = arith.constant 0 : i32
    %c0_i32_0 = arith.constant 0 : i32
    %c0_i32_1 = arith.constant 0 : i32
    %c0_i32_2 = arith.constant 0 : i32
    return %c0_i32, %c0_i32_0, %c0_i32_1 : i32, i32, i32
  }
  func.func @transform_2(%arg0: i32) -> (i32, i32, i32, i32) {
    %c0_i32 = arith.constant 0 : i32
    %c0_i32_0 = arith.constant 0 : i32
    %c0_i32_1 = arith.constant 0 : i32
    %c0_i32_2 = arith.constant 0 : i32
    return %arg0, %c0_i32, %c0_i32_0, %c0_i32_1 : i32, i32, i32, i32
  }
}

module attributes {stable_mosaic.version = 11 : i64} {
  func.func @attention_kernel(%arg0: i32, %arg1: i32, %arg2: memref<1x16x32xf32, #tpu.memory_space<vmem>>, %arg3: memref<1x16x32xf32, #tpu.memory_space<vmem>>, %arg4: memref<1x16x32xf32, #tpu.memory_space<vmem>>, %arg5: memref<1x4x16x16xf32, #tpu.memory_space<vmem>>, %arg6: memref<1x16x32xf32, #tpu.memory_space<vmem>>, %arg7: memref<4x16x1xf32, #tpu.memory_space<vmem>>, %arg8: memref<4x16x1xf32, #tpu.memory_space<vmem>>, %arg9: memref<16x32xf32, #tpu.memory_space<vmem>>) attributes {dimension_semantics = [#tpu.dimension_semantics<parallel>, #tpu.dimension_semantics<arbitrary>], iteration_bounds = array<i64: 2, 1>, scalar_prefetch = 0 : i64, scratch_operands = 3 : i64, tpu.core_type = #tpu.core_type<tc>, window_params = [{transform_indices = @transform_0, window_bounds = array<i64: 1, 16, 32>}, {transform_indices = @transform_1, window_bounds = array<i64: 1, 16, 32>}, {transform_indices = @transform_2, window_bounds = array<i64: 1, 16, 32>}, {transform_indices = @transform_3, window_bounds = array<i64: 1, 4, 16, 16>}, {transform_indices = @transform_4, window_bounds = array<i64: 1, 16, 32>}]} {
    %c0_i32 = arith.constant 0 : i32
    %0 = arith.cmpi eq, %arg1, %c0_i32 : i32
    %1 = arith.extui %0 : i1 to i32
    %c0_i32_0 = arith.constant 0 : i32
    %2 = arith.cmpi ne, %1, %c0_i32_0 : i32
    scf.if %2 {
      %cst_131 = arith.constant 0xFF800000 : f32
      %182 = vector.broadcast %cst_131 : f32 to vector<4x16x1xf32>
      %c0_132 = arith.constant 0 : index
      %c0_133 = arith.constant 0 : index
      %c0_134 = arith.constant 0 : index
      %183 = vector.load %arg7[%c0_132, %c0_133, %c0_134] : memref<4x16x1xf32, #tpu.memory_space<vmem>>, vector<4x16x1xf32>
      tpu.vector_store %arg7[%c0_132, %c0_133, %c0_134], %182 {strides = array<i32>} : memref<4x16x1xf32, #tpu.memory_space<vmem>>, vector<4x16x1xf32>,
      %cst_135 = arith.constant 0.000000e+00 : f32
      %184 = vector.broadcast %cst_135 : f32 to vector<4x16x1xf32>
      %c0_136 = arith.constant 0 : index
      %c0_137 = arith.constant 0 : index
      %c0_138 = arith.constant 0 : index
      %185 = vector.load %arg8[%c0_136, %c0_137, %c0_138] : memref<4x16x1xf32, #tpu.memory_space<vmem>>, vector<4x16x1xf32>
      tpu.vector_store %arg8[%c0_136, %c0_137, %c0_138], %184 {strides = array<i32>} : memref<4x16x1xf32, #tpu.memory_space<vmem>>, vector<4x16x1xf32>,
      %cst_139 = arith.constant 0.000000e+00 : f32
      %186 = vector.broadcast %cst_139 : f32 to vector<16x32xf32>
      %c0_140 = arith.constant 0 : index
      %c0_141 = arith.constant 0 : index
      %187 = vector.load %arg9[%c0_140, %c0_141] : memref<16x32xf32, #tpu.memory_space<vmem>>, vector<16x32xf32>
      tpu.vector_store %arg9[%c0_140, %c0_141], %186 {strides = array<i32>} : memref<16x32xf32, #tpu.memory_space<vmem>>, vector<16x32xf32>,
    } else {
    }
    %c0 = arith.constant 0 : index
    %c0_1 = arith.constant 0 : index
    %c0_2 = arith.constant 0 : index
    %3 = vector.load %arg2[%c0, %c0_1, %c0_2] : memref<1x16x32xf32, #tpu.memory_space<vmem>>, vector<1x16x8xf32>
    %4 = vector.shape_cast %3 : vector<1x16x8xf32> to vector<16x8xf32>
    %5 = arith.truncf %4 : vector<16x8xf32> to vector<16x8xbf16>
    %c0_3 = arith.constant 0 : index
    %c0_4 = arith.constant 0 : index
    %c0_5 = arith.constant 0 : index
    %6 = vector.load %arg3[%c0_3, %c0_4, %c0_5] : memref<1x16x32xf32, #tpu.memory_space<vmem>>, vector<1x16x8xf32>
    %7 = vector.shape_cast %6 : vector<1x16x8xf32> to vector<16x8xf32>
    %8 = arith.truncf %7 : vector<16x8xf32> to vector<16x8xbf16>
    %c0_6 = arith.constant 0 : index
    %c0_7 = arith.constant 0 : index
    %c0_8 = arith.constant 0 : index
    %9 = vector.load %arg4[%c0_6, %c0_7, %c0_8] : memref<1x16x32xf32, #tpu.memory_space<vmem>>, vector<1x16x8xf32>
    %10 = vector.shape_cast %9 : vector<1x16x8xf32> to vector<16x8xf32>
    %11 = arith.truncf %10 : vector<16x8xf32> to vector<16x8xbf16>
    %cst = arith.constant dense<0.000000e+00> : vector<16x16xf32>
    %12 = tpu.matmul %5, %8, %cst {dimension_numbers = #tpu.dot_dimension_numbers<[1], [1], [0], [0], [0, 0, 1, 0], [], []>} : vector<16x8xbf16>, vector<16x8xbf16>, vector<16x16xf32> -> vector<16x16xf32>
    %c0_9 = arith.constant 0 : index
    %c0_10 = arith.constant 0 : index
    %c0_11 = arith.constant 0 : index
    %c0_12 = arith.constant 0 : index
    %13 = vector.load %arg5[%c0_9, %c0_10, %c0_11, %c0_12] : memref<1x4x16x16xf32, #tpu.memory_space<vmem>>, vector<1x1x16x16xf32>
    %14 = vector.shape_cast %13 : vector<1x1x16x16xf32> to vector<16x16xf32>
    %15 = arith.addf %12, %14 : vector<16x16xf32>
    %cst_13 = arith.constant 0.353553385 : f32
    %16 = vector.broadcast %cst_13 : f32 to vector<16x16xf32>
    %17 = arith.mulf %15, %16 : vector<16x16xf32>
    %c0_14 = arith.constant 0 : index
    %c0_15 = arith.constant 0 : index
    %c0_16 = arith.constant 0 : index
    %18 = vector.load %arg7[%c0_14, %c0_15, %c0_16] : memref<4x16x1xf32, #tpu.memory_space<vmem>>, vector<1x16x1xf32>
    %19 = vector.shape_cast %18 : vector<1x16x1xf32> to vector<16x1xf32>
    %cst_17 = arith.constant dense<0xFF800000> : vector<16xf32>
    %20 = vector.multi_reduction <maximumf>, %17, %cst_17 [1] : vector<16x16xf32> to vector<16xf32>
    %21 = vector.shape_cast %20 : vector<16xf32> to vector<16x1xf32>
    %22 = arith.maximumf %19, %21 : vector<16x1xf32>
    %23 = arith.subf %19, %22 : vector<16x1xf32>
    %24 = math.exp %23 : vector<16x1xf32>
    %25 = vector.broadcast %22 : vector<16x1xf32> to vector<16x16xf32>
    %26 = arith.subf %17, %25 : vector<16x16xf32>
    %27 = math.exp %26 : vector<16x16xf32>
    %c0_18 = arith.constant 0 : index
    %c0_19 = arith.constant 0 : index
    %c0_20 = arith.constant 0 : index
    %28 = vector.load %arg8[%c0_18, %c0_19, %c0_20] : memref<4x16x1xf32, #tpu.memory_space<vmem>>, vector<1x16x1xf32>
    %29 = vector.shape_cast %28 : vector<1x16x1xf32> to vector<16x1xf32>
    %30 = arith.mulf %24, %29 : vector<16x1xf32>
    %cst_21 = arith.constant dense<0.000000e+00> : vector<16xf32>
    %31 = vector.multi_reduction <add>, %27, %cst_21 [1] : vector<16x16xf32> to vector<16xf32>
    %32 = vector.shape_cast %31 : vector<16xf32> to vector<16x1xf32>
    %33 = arith.addf %30, %32 : vector<16x1xf32>
    %c0_22 = arith.constant 0 : index
    %c0_23 = arith.constant 0 : index
    %c0_24 = arith.constant 0 : index
    %34 = vector.load %arg8[%c0_22, %c0_23, %c0_24] : memref<4x16x1xf32, #tpu.memory_space<vmem>>, vector<1x16x1xf32>
    %35 = vector.shape_cast %34 : vector<1x16x1xf32> to vector<16x1xf32>
    %36 = vector.shape_cast %33 : vector<16x1xf32> to vector<1x16x1xf32>
    tpu.vector_store %arg8[%c0_22, %c0_23, %c0_24], %36 {strides = array<i32>} : memref<4x16x1xf32, #tpu.memory_space<vmem>>, vector<1x16x1xf32>,
    %37 = arith.truncf %27 : vector<16x16xf32> to vector<16x16xbf16>
    %cst_25 = arith.constant dense<0.000000e+00> : vector<16x8xf32>
    %38 = tpu.matmul %37, %11, %cst_25 {dimension_numbers = #tpu.dot_dimension_numbers<[1], [0], [0], [1], [0, 0, 1, 1], [], []>} : vector<16x16xbf16>, vector<16x8xbf16>, vector<16x8xf32> -> vector<16x8xf32>
    %c0_26 = arith.constant 0 : index
    %c0_27 = arith.constant 0 : index
    %39 = vector.load %arg9[%c0_26, %c0_27] : memref<16x32xf32, #tpu.memory_space<vmem>>, vector<16x8xf32>
    %40 = vector.broadcast %24 : vector<16x1xf32> to vector<16x8xf32>
    %41 = arith.mulf %40, %39 : vector<16x8xf32>
    %42 = arith.addf %41, %38 : vector<16x8xf32>
    %c0_28 = arith.constant 0 : index
    %c0_29 = arith.constant 0 : index
    %43 = vector.load %arg9[%c0_28, %c0_29] : memref<16x32xf32, #tpu.memory_space<vmem>>, vector<16x8xf32>
    tpu.vector_store %arg9[%c0_28, %c0_29], %42 {strides = array<i32>} : memref<16x32xf32, #tpu.memory_space<vmem>>, vector<16x8xf32>,
    %c0_30 = arith.constant 0 : index
    %c0_31 = arith.constant 0 : index
    %c0_32 = arith.constant 0 : index
    %44 = vector.load %arg7[%c0_30, %c0_31, %c0_32] : memref<4x16x1xf32, #tpu.memory_space<vmem>>, vector<1x16x1xf32>
    %45 = vector.shape_cast %44 : vector<1x16x1xf32> to vector<16x1xf32>
    %46 = vector.shape_cast %22 : vector<16x1xf32> to vector<1x16x1xf32>
    tpu.vector_store %arg7[%c0_30, %c0_31, %c0_32], %46 {strides = array<i32>} : memref<4x16x1xf32, #tpu.memory_space<vmem>>, vector<1x16x1xf32>,
    %c0_33 = arith.constant 0 : index
    %c0_34 = arith.constant 0 : index
    %c8 = arith.constant 8 : index
    %47 = vector.load %arg2[%c0_33, %c0_34, %c8] : memref<1x16x32xf32, #tpu.memory_space<vmem>>, vector<1x16x8xf32>
    %48 = vector.shape_cast %47 : vector<1x16x8xf32> to vector<16x8xf32>
    %49 = arith.truncf %48 : vector<16x8xf32> to vector<16x8xbf16>
    %c0_35 = arith.constant 0 : index
    %c0_36 = arith.constant 0 : index
    %c8_37 = arith.constant 8 : index
    %50 = vector.load %arg3[%c0_35, %c0_36, %c8_37] : memref<1x16x32xf32, #tpu.memory_space<vmem>>, vector<1x16x8xf32>
    %51 = vector.shape_cast %50 : vector<1x16x8xf32> to vector<16x8xf32>
    %52 = arith.truncf %51 : vector<16x8xf32> to vector<16x8xbf16>
    %c0_38 = arith.constant 0 : index
    %c0_39 = arith.constant 0 : index
    %c8_40 = arith.constant 8 : index
    %53 = vector.load %arg4[%c0_38, %c0_39, %c8_40] : memref<1x16x32xf32, #tpu.memory_space<vmem>>, vector<1x16x8xf32>
    %54 = vector.shape_cast %53 : vector<1x16x8xf32> to vector<16x8xf32>
    %55 = arith.truncf %54 : vector<16x8xf32> to vector<16x8xbf16>
    %cst_41 = arith.constant dense<0.000000e+00> : vector<16x16xf32>
    %56 = tpu.matmul %49, %52, %cst_41 {dimension_numbers = #tpu.dot_dimension_numbers<[1], [1], [0], [0], [0, 0, 1, 0], [], []>} : vector<16x8xbf16>, vector<16x8xbf16>, vector<16x16xf32> -> vector<16x16xf32>
    %c0_42 = arith.constant 0 : index
    %c1 = arith.constant 1 : index
    %c0_43 = arith.constant 0 : index
    %c0_44 = arith.constant 0 : index
    %57 = vector.load %arg5[%c0_42, %c1, %c0_43, %c0_44] : memref<1x4x16x16xf32, #tpu.memory_space<vmem>>, vector<1x1x16x16xf32>
    %58 = vector.shape_cast %57 : vector<1x1x16x16xf32> to vector<16x16xf32>
    %59 = arith.addf %56, %58 : vector<16x16xf32>
    %cst_45 = arith.constant 0.353553385 : f32
    %60 = vector.broadcast %cst_45 : f32 to vector<16x16xf32>
    %61 = arith.mulf %59, %60 : vector<16x16xf32>
    %c1_46 = arith.constant 1 : index
    %c0_47 = arith.constant 0 : index
    %c0_48 = arith.constant 0 : index
    %62 = vector.load %arg7[%c1_46, %c0_47, %c0_48] : memref<4x16x1xf32, #tpu.memory_space<vmem>>, vector<1x16x1xf32>
    %63 = vector.shape_cast %62 : vector<1x16x1xf32> to vector<16x1xf32>
    %cst_49 = arith.constant dense<0xFF800000> : vector<16xf32>
    %64 = vector.multi_reduction <maximumf>, %61, %cst_49 [1] : vector<16x16xf32> to vector<16xf32>
    %65 = vector.shape_cast %64 : vector<16xf32> to vector<16x1xf32>
    %66 = arith.maximumf %63, %65 : vector<16x1xf32>
    %67 = arith.subf %63, %66 : vector<16x1xf32>
    %68 = math.exp %67 : vector<16x1xf32>
    %69 = vector.broadcast %66 : vector<16x1xf32> to vector<16x16xf32>
    %70 = arith.subf %61, %69 : vector<16x16xf32>
    %71 = math.exp %70 : vector<16x16xf32>
    %c1_50 = arith.constant 1 : index
    %c0_51 = arith.constant 0 : index
    %c0_52 = arith.constant 0 : index
    %72 = vector.load %arg8[%c1_50, %c0_51, %c0_52] : memref<4x16x1xf32, #tpu.memory_space<vmem>>, vector<1x16x1xf32>
    %73 = vector.shape_cast %72 : vector<1x16x1xf32> to vector<16x1xf32>
    %74 = arith.mulf %68, %73 : vector<16x1xf32>
    %cst_53 = arith.constant dense<0.000000e+00> : vector<16xf32>
    %75 = vector.multi_reduction <add>, %71, %cst_53 [1] : vector<16x16xf32> to vector<16xf32>
    %76 = vector.shape_cast %75 : vector<16xf32> to vector<16x1xf32>
    %77 = arith.addf %74, %76 : vector<16x1xf32>
    %c1_54 = arith.constant 1 : index
    %c0_55 = arith.constant 0 : index
    %c0_56 = arith.constant 0 : index
    %78 = vector.load %arg8[%c1_54, %c0_55, %c0_56] : memref<4x16x1xf32, #tpu.memory_space<vmem>>, vector<1x16x1xf32>
    %79 = vector.shape_cast %78 : vector<1x16x1xf32> to vector<16x1xf32>
    %80 = vector.shape_cast %77 : vector<16x1xf32> to vector<1x16x1xf32>
    tpu.vector_store %arg8[%c1_54, %c0_55, %c0_56], %80 {strides = array<i32>} : memref<4x16x1xf32, #tpu.memory_space<vmem>>, vector<1x16x1xf32>,
    %81 = arith.truncf %71 : vector<16x16xf32> to vector<16x16xbf16>
    %cst_57 = arith.constant dense<0.000000e+00> : vector<16x8xf32>
    %82 = tpu.matmul %81, %55, %cst_57 {dimension_numbers = #tpu.dot_dimension_numbers<[1], [0], [0], [1], [0, 0, 1, 1], [], []>} : vector<16x16xbf16>, vector<16x8xbf16>, vector<16x8xf32> -> vector<16x8xf32>
    %c0_58 = arith.constant 0 : index
    %c8_59 = arith.constant 8 : index
    %83 = vector.load %arg9[%c0_58, %c8_59] : memref<16x32xf32, #tpu.memory_space<vmem>>, vector<16x8xf32>
    %84 = vector.broadcast %68 : vector<16x1xf32> to vector<16x8xf32>
    %85 = arith.mulf %84, %83 : vector<16x8xf32>
    %86 = arith.addf %85, %82 : vector<16x8xf32>
    %c0_60 = arith.constant 0 : index
    %c8_61 = arith.constant 8 : index
    %87 = vector.load %arg9[%c0_60, %c8_61] : memref<16x32xf32, #tpu.memory_space<vmem>>, vector<16x8xf32>
    tpu.vector_store %arg9[%c0_60, %c8_61], %86 {strides = array<i32>} : memref<16x32xf32, #tpu.memory_space<vmem>>, vector<16x8xf32>,
    %c1_62 = arith.constant 1 : index
    %c0_63 = arith.constant 0 : index
    %c0_64 = arith.constant 0 : index
    %88 = vector.load %arg7[%c1_62, %c0_63, %c0_64] : memref<4x16x1xf32, #tpu.memory_space<vmem>>, vector<1x16x1xf32>
    %89 = vector.shape_cast %88 : vector<1x16x1xf32> to vector<16x1xf32>
    %90 = vector.shape_cast %66 : vector<16x1xf32> to vector<1x16x1xf32>
    tpu.vector_store %arg7[%c1_62, %c0_63, %c0_64], %90 {strides = array<i32>} : memref<4x16x1xf32, #tpu.memory_space<vmem>>, vector<1x16x1xf32>,
    %c0_65 = arith.constant 0 : index
    %c0_66 = arith.constant 0 : index
    %c16 = arith.constant 16 : index
    %91 = vector.load %arg2[%c0_65, %c0_66, %c16] : memref<1x16x32xf32, #tpu.memory_space<vmem>>, vector<1x16x8xf32>
    %92 = vector.shape_cast %91 : vector<1x16x8xf32> to vector<16x8xf32>
    %93 = arith.truncf %92 : vector<16x8xf32> to vector<16x8xbf16>
    %c0_67 = arith.constant 0 : index
    %c0_68 = arith.constant 0 : index
    %c16_69 = arith.constant 16 : index
    %94 = vector.load %arg3[%c0_67, %c0_68, %c16_69] : memref<1x16x32xf32, #tpu.memory_space<vmem>>, vector<1x16x8xf32>
    %95 = vector.shape_cast %94 : vector<1x16x8xf32> to vector<16x8xf32>
    %96 = arith.truncf %95 : vector<16x8xf32> to vector<16x8xbf16>
    %c0_70 = arith.constant 0 : index
    %c0_71 = arith.constant 0 : index
    %c16_72 = arith.constant 16 : index
    %97 = vector.load %arg4[%c0_70, %c0_71, %c16_72] : memref<1x16x32xf32, #tpu.memory_space<vmem>>, vector<1x16x8xf32>
    %98 = vector.shape_cast %97 : vector<1x16x8xf32> to vector<16x8xf32>
    %99 = arith.truncf %98 : vector<16x8xf32> to vector<16x8xbf16>
    %cst_73 = arith.constant dense<0.000000e+00> : vector<16x16xf32>
    %100 = tpu.matmul %93, %96, %cst_73 {dimension_numbers = #tpu.dot_dimension_numbers<[1], [1], [0], [0], [0, 0, 1, 0], [], []>} : vector<16x8xbf16>, vector<16x8xbf16>, vector<16x16xf32> -> vector<16x16xf32>
    %c0_74 = arith.constant 0 : index
    %c2 = arith.constant 2 : index
    %c0_75 = arith.constant 0 : index
    %c0_76 = arith.constant 0 : index
    %101 = vector.load %arg5[%c0_74, %c2, %c0_75, %c0_76] : memref<1x4x16x16xf32, #tpu.memory_space<vmem>>, vector<1x1x16x16xf32>
    %102 = vector.shape_cast %101 : vector<1x1x16x16xf32> to vector<16x16xf32>
    %103 = arith.addf %100, %102 : vector<16x16xf32>
    %cst_77 = arith.constant 0.353553385 : f32
    %104 = vector.broadcast %cst_77 : f32 to vector<16x16xf32>
    %105 = arith.mulf %103, %104 : vector<16x16xf32>
    %c2_78 = arith.constant 2 : index
    %c0_79 = arith.constant 0 : index
    %c0_80 = arith.constant 0 : index
    %106 = vector.load %arg7[%c2_78, %c0_79, %c0_80] : memref<4x16x1xf32, #tpu.memory_space<vmem>>, vector<1x16x1xf32>
    %107 = vector.shape_cast %106 : vector<1x16x1xf32> to vector<16x1xf32>
    %cst_81 = arith.constant dense<0xFF800000> : vector<16xf32>
    %108 = vector.multi_reduction <maximumf>, %105, %cst_81 [1] : vector<16x16xf32> to vector<16xf32>
    %109 = vector.shape_cast %108 : vector<16xf32> to vector<16x1xf32>
    %110 = arith.maximumf %107, %109 : vector<16x1xf32>
    %111 = arith.subf %107, %110 : vector<16x1xf32>
    %112 = math.exp %111 : vector<16x1xf32>
    %113 = vector.broadcast %110 : vector<16x1xf32> to vector<16x16xf32>
    %114 = arith.subf %105, %113 : vector<16x16xf32>
    %115 = math.exp %114 : vector<16x16xf32>
    %c2_82 = arith.constant 2 : index
    %c0_83 = arith.constant 0 : index
    %c0_84 = arith.constant 0 : index
    %116 = vector.load %arg8[%c2_82, %c0_83, %c0_84] : memref<4x16x1xf32, #tpu.memory_space<vmem>>, vector<1x16x1xf32>
    %117 = vector.shape_cast %116 : vector<1x16x1xf32> to vector<16x1xf32>
    %118 = arith.mulf %112, %117 : vector<16x1xf32>
    %cst_85 = arith.constant dense<0.000000e+00> : vector<16xf32>
    %119 = vector.multi_reduction <add>, %115, %cst_85 [1] : vector<16x16xf32> to vector<16xf32>
    %120 = vector.shape_cast %119 : vector<16xf32> to vector<16x1xf32>
    %121 = arith.addf %118, %120 : vector<16x1xf32>
    %c2_86 = arith.constant 2 : index
    %c0_87 = arith.constant 0 : index
    %c0_88 = arith.constant 0 : index
    %122 = vector.load %arg8[%c2_86, %c0_87, %c0_88] : memref<4x16x1xf32, #tpu.memory_space<vmem>>, vector<1x16x1xf32>
    %123 = vector.shape_cast %122 : vector<1x16x1xf32> to vector<16x1xf32>
    %124 = vector.shape_cast %121 : vector<16x1xf32> to vector<1x16x1xf32>
    tpu.vector_store %arg8[%c2_86, %c0_87, %c0_88], %124 {strides = array<i32>} : memref<4x16x1xf32, #tpu.memory_space<vmem>>, vector<1x16x1xf32>,
    %125 = arith.truncf %115 : vector<16x16xf32> to vector<16x16xbf16>
    %cst_89 = arith.constant dense<0.000000e+00> : vector<16x8xf32>
    %126 = tpu.matmul %125, %99, %cst_89 {dimension_numbers = #tpu.dot_dimension_numbers<[1], [0], [0], [1], [0, 0, 1, 1], [], []>} : vector<16x16xbf16>, vector<16x8xbf16>, vector<16x8xf32> -> vector<16x8xf32>
    %c0_90 = arith.constant 0 : index
    %c16_91 = arith.constant 16 : index
    %127 = vector.load %arg9[%c0_90, %c16_91] : memref<16x32xf32, #tpu.memory_space<vmem>>, vector<16x8xf32>
    %128 = vector.broadcast %112 : vector<16x1xf32> to vector<16x8xf32>
    %129 = arith.mulf %128, %127 : vector<16x8xf32>
    %130 = arith.addf %129, %126 : vector<16x8xf32>
    %c0_92 = arith.constant 0 : index
    %c16_93 = arith.constant 16 : index
    %131 = vector.load %arg9[%c0_92, %c16_93] : memref<16x32xf32, #tpu.memory_space<vmem>>, vector<16x8xf32>
    tpu.vector_store %arg9[%c0_92, %c16_93], %130 {strides = array<i32>} : memref<16x32xf32, #tpu.memory_space<vmem>>, vector<16x8xf32>,
    %c2_94 = arith.constant 2 : index
    %c0_95 = arith.constant 0 : index
    %c0_96 = arith.constant 0 : index
    %132 = vector.load %arg7[%c2_94, %c0_95, %c0_96] : memref<4x16x1xf32, #tpu.memory_space<vmem>>, vector<1x16x1xf32>
    %133 = vector.shape_cast %132 : vector<1x16x1xf32> to vector<16x1xf32>
    %134 = vector.shape_cast %110 : vector<16x1xf32> to vector<1x16x1xf32>
    tpu.vector_store %arg7[%c2_94, %c0_95, %c0_96], %134 {strides = array<i32>} : memref<4x16x1xf32, #tpu.memory_space<vmem>>, vector<1x16x1xf32>,
    %c0_97 = arith.constant 0 : index
    %c0_98 = arith.constant 0 : index
    %c24 = arith.constant 24 : index
    %135 = vector.load %arg2[%c0_97, %c0_98, %c24] : memref<1x16x32xf32, #tpu.memory_space<vmem>>, vector<1x16x8xf32>
    %136 = vector.shape_cast %135 : vector<1x16x8xf32> to vector<16x8xf32>
    %137 = arith.truncf %136 : vector<16x8xf32> to vector<16x8xbf16>
    %c0_99 = arith.constant 0 : index
    %c0_100 = arith.constant 0 : index
    %c24_101 = arith.constant 24 : index
    %138 = vector.load %arg3[%c0_99, %c0_100, %c24_101] : memref<1x16x32xf32, #tpu.memory_space<vmem>>, vector<1x16x8xf32>
    %139 = vector.shape_cast %138 : vector<1x16x8xf32> to vector<16x8xf32>
    %140 = arith.truncf %139 : vector<16x8xf32> to vector<16x8xbf16>
    %c0_102 = arith.constant 0 : index
    %c0_103 = arith.constant 0 : index
    %c24_104 = arith.constant 24 : index
    %141 = vector.load %arg4[%c0_102, %c0_103, %c24_104] : memref<1x16x32xf32, #tpu.memory_space<vmem>>, vector<1x16x8xf32>
    %142 = vector.shape_cast %141 : vector<1x16x8xf32> to vector<16x8xf32>
    %143 = arith.truncf %142 : vector<16x8xf32> to vector<16x8xbf16>
    %cst_105 = arith.constant dense<0.000000e+00> : vector<16x16xf32>
    %144 = tpu.matmul %137, %140, %cst_105 {dimension_numbers = #tpu.dot_dimension_numbers<[1], [1], [0], [0], [0, 0, 1, 0], [], []>} : vector<16x8xbf16>, vector<16x8xbf16>, vector<16x16xf32> -> vector<16x16xf32>
    %c0_106 = arith.constant 0 : index
    %c3 = arith.constant 3 : index
    %c0_107 = arith.constant 0 : index
    %c0_108 = arith.constant 0 : index
    %145 = vector.load %arg5[%c0_106, %c3, %c0_107, %c0_108] : memref<1x4x16x16xf32, #tpu.memory_space<vmem>>, vector<1x1x16x16xf32>
    %146 = vector.shape_cast %145 : vector<1x1x16x16xf32> to vector<16x16xf32>
    %147 = arith.addf %144, %146 : vector<16x16xf32>
    %cst_109 = arith.constant 0.353553385 : f32
    %148 = vector.broadcast %cst_109 : f32 to vector<16x16xf32>
    %149 = arith.mulf %147, %148 : vector<16x16xf32>
    %c3_110 = arith.constant 3 : index
    %c0_111 = arith.constant 0 : index
    %c0_112 = arith.constant 0 : index
    %150 = vector.load %arg7[%c3_110, %c0_111, %c0_112] : memref<4x16x1xf32, #tpu.memory_space<vmem>>, vector<1x16x1xf32>
    %151 = vector.shape_cast %150 : vector<1x16x1xf32> to vector<16x1xf32>
    %cst_113 = arith.constant dense<0xFF800000> : vector<16xf32>
    %152 = vector.multi_reduction <maximumf>, %149, %cst_113 [1] : vector<16x16xf32> to vector<16xf32>
    %153 = vector.shape_cast %152 : vector<16xf32> to vector<16x1xf32>
    %154 = arith.maximumf %151, %153 : vector<16x1xf32>
    %155 = arith.subf %151, %154 : vector<16x1xf32>
    %156 = math.exp %155 : vector<16x1xf32>
    %157 = vector.broadcast %154 : vector<16x1xf32> to vector<16x16xf32>
    %158 = arith.subf %149, %157 : vector<16x16xf32>
    %159 = math.exp %158 : vector<16x16xf32>
    %c3_114 = arith.constant 3 : index
    %c0_115 = arith.constant 0 : index
    %c0_116 = arith.constant 0 : index
    %160 = vector.load %arg8[%c3_114, %c0_115, %c0_116] : memref<4x16x1xf32, #tpu.memory_space<vmem>>, vector<1x16x1xf32>
    %161 = vector.shape_cast %160 : vector<1x16x1xf32> to vector<16x1xf32>
    %162 = arith.mulf %156, %161 : vector<16x1xf32>
    %cst_117 = arith.constant dense<0.000000e+00> : vector<16xf32>
    %163 = vector.multi_reduction <add>, %159, %cst_117 [1] : vector<16x16xf32> to vector<16xf32>
    %164 = vector.shape_cast %163 : vector<16xf32> to vector<16x1xf32>
    %165 = arith.addf %162, %164 : vector<16x1xf32>
    %c3_118 = arith.constant 3 : index
    %c0_119 = arith.constant 0 : index
    %c0_120 = arith.constant 0 : index
    %166 = vector.load %arg8[%c3_118, %c0_119, %c0_120] : memref<4x16x1xf32, #tpu.memory_space<vmem>>, vector<1x16x1xf32>
    %167 = vector.shape_cast %166 : vector<1x16x1xf32> to vector<16x1xf32>
    %168 = vector.shape_cast %165 : vector<16x1xf32> to vector<1x16x1xf32>
    tpu.vector_store %arg8[%c3_118, %c0_119, %c0_120], %168 {strides = array<i32>} : memref<4x16x1xf32, #tpu.memory_space<vmem>>, vector<1x16x1xf32>,
    %169 = arith.truncf %159 : vector<16x16xf32> to vector<16x16xbf16>
    %cst_121 = arith.constant dense<0.000000e+00> : vector<16x8xf32>
    %170 = tpu.matmul %169, %143, %cst_121 {dimension_numbers = #tpu.dot_dimension_numbers<[1], [0], [0], [1], [0, 0, 1, 1], [], []>} : vector<16x16xbf16>, vector<16x8xbf16>, vector<16x8xf32> -> vector<16x8xf32>
    %c0_122 = arith.constant 0 : index
    %c24_123 = arith.constant 24 : index
    %171 = vector.load %arg9[%c0_122, %c24_123] : memref<16x32xf32, #tpu.memory_space<vmem>>, vector<16x8xf32>
    %172 = vector.broadcast %156 : vector<16x1xf32> to vector<16x8xf32>
    %173 = arith.mulf %172, %171 : vector<16x8xf32>
    %174 = arith.addf %173, %170 : vector<16x8xf32>
    %c0_124 = arith.constant 0 : index
    %c24_125 = arith.constant 24 : index
    %175 = vector.load %arg9[%c0_124, %c24_125] : memref<16x32xf32, #tpu.memory_space<vmem>>, vector<16x8xf32>
    tpu.vector_store %arg9[%c0_124, %c24_125], %174 {strides = array<i32>} : memref<16x32xf32, #tpu.memory_space<vmem>>, vector<16x8xf32>,
    %c3_126 = arith.constant 3 : index
    %c0_127 = arith.constant 0 : index
    %c0_128 = arith.constant 0 : index
    %176 = vector.load %arg7[%c3_126, %c0_127, %c0_128] : memref<4x16x1xf32, #tpu.memory_space<vmem>>, vector<1x16x1xf32>
    %177 = vector.shape_cast %176 : vector<1x16x1xf32> to vector<16x1xf32>
    %178 = vector.shape_cast %154 : vector<16x1xf32> to vector<1x16x1xf32>
    tpu.vector_store %arg7[%c3_126, %c0_127, %c0_128], %178 {strides = array<i32>} : memref<4x16x1xf32, #tpu.memory_space<vmem>>, vector<1x16x1xf32>,
    %c0_i32_129 = arith.constant 0 : i32
    %179 = arith.cmpi eq, %arg1, %c0_i32_129 : i32
    %180 = arith.extui %179 : i1 to i32
    %c0_i32_130 = arith.constant 0 : i32
    %181 = arith.cmpi ne, %180, %c0_i32_130 : i32
    scf.if %181 {
      %c0_131 = arith.constant 0 : index
      %c0_132 = arith.constant 0 : index
      %c0_133 = arith.constant 0 : index
      %182 = vector.load %arg8[%c0_131, %c0_132, %c0_133] : memref<4x16x1xf32, #tpu.memory_space<vmem>>, vector<1x16x1xf32>
      %183 = vector.shape_cast %182 : vector<1x16x1xf32> to vector<16x1xf32>
      %184 = tpu.reciprocal %183 {approx = true} : vector<16x1xf32> -> vector<16x1xf32>
      %c0_134 = arith.constant 0 : index
      %c0_135 = arith.constant 0 : index
      %185 = vector.load %arg9[%c0_134, %c0_135] : memref<16x32xf32, #tpu.memory_space<vmem>>, vector<16x8xf32>
      %186 = vector.broadcast %184 : vector<16x1xf32> to vector<16x8xf32>
      %187 = arith.mulf %185, %186 : vector<16x8xf32>
      %c0_136 = arith.constant 0 : index
      %c0_137 = arith.constant 0 : index
      %c0_138 = arith.constant 0 : index
      %188 = vector.load %arg6[%c0_136, %c0_137, %c0_138] : memref<1x16x32xf32, #tpu.memory_space<vmem>>, vector<1x16x8xf32>
      %189 = vector.shape_cast %188 : vector<1x16x8xf32> to vector<16x8xf32>
      %190 = vector.shape_cast %187 : vector<16x8xf32> to vector<1x16x8xf32>
      tpu.vector_store %arg6[%c0_136, %c0_137, %c0_138], %190 {strides = array<i32>} : memref<1x16x32xf32, #tpu.memory_space<vmem>>, vector<1x16x8xf32>,
      %c1_139 = arith.constant 1 : index
      %c0_140 = arith.constant 0 : index
      %c0_141 = arith.constant 0 : index
      %191 = vector.load %arg8[%c1_139, %c0_140, %c0_141] : memref<4x16x1xf32, #tpu.memory_space<vmem>>, vector<1x16x1xf32>
      %192 = vector.shape_cast %191 : vector<1x16x1xf32> to vector<16x1xf32>
      %193 = tpu.reciprocal %192 {approx = true} : vector<16x1xf32> -> vector<16x1xf32>
      %c0_142 = arith.constant 0 : index
      %c8_143 = arith.constant 8 : index
      %194 = vector.load %arg9[%c0_142, %c8_143] : memref<16x32xf32, #tpu.memory_space<vmem>>, vector<16x8xf32>
      %195 = vector.broadcast %193 : vector<16x1xf32> to vector<16x8xf32>
      %196 = arith.mulf %194, %195 : vector<16x8xf32>
      %c0_144 = arith.constant 0 : index
      %c0_145 = arith.constant 0 : index
      %c8_146 = arith.constant 8 : index
      %197 = vector.load %arg6[%c0_144, %c0_145, %c8_146] : memref<1x16x32xf32, #tpu.memory_space<vmem>>, vector<1x16x8xf32>
      %198 = vector.shape_cast %197 : vector<1x16x8xf32> to vector<16x8xf32>
      %199 = vector.shape_cast %196 : vector<16x8xf32> to vector<1x16x8xf32>
      tpu.vector_store %arg6[%c0_144, %c0_145, %c8_146], %199 {strides = array<i32>} : memref<1x16x32xf32, #tpu.memory_space<vmem>>, vector<1x16x8xf32>,
      %c2_147 = arith.constant 2 : index
      %c0_148 = arith.constant 0 : index
      %c0_149 = arith.constant 0 : index
      %200 = vector.load %arg8[%c2_147, %c0_148, %c0_149] : memref<4x16x1xf32, #tpu.memory_space<vmem>>, vector<1x16x1xf32>
      %201 = vector.shape_cast %200 : vector<1x16x1xf32> to vector<16x1xf32>
      %202 = tpu.reciprocal %201 {approx = true} : vector<16x1xf32> -> vector<16x1xf32>
      %c0_150 = arith.constant 0 : index
      %c16_151 = arith.constant 16 : index
      %203 = vector.load %arg9[%c0_150, %c16_151] : memref<16x32xf32, #tpu.memory_space<vmem>>, vector<16x8xf32>
      %204 = vector.broadcast %202 : vector<16x1xf32> to vector<16x8xf32>
      %205 = arith.mulf %203, %204 : vector<16x8xf32>
      %c0_152 = arith.constant 0 : index
      %c0_153 = arith.constant 0 : index
      %c16_154 = arith.constant 16 : index
      %206 = vector.load %arg6[%c0_152, %c0_153, %c16_154] : memref<1x16x32xf32, #tpu.memory_space<vmem>>, vector<1x16x8xf32>
      %207 = vector.shape_cast %206 : vector<1x16x8xf32> to vector<16x8xf32>
      %208 = vector.shape_cast %205 : vector<16x8xf32> to vector<1x16x8xf32>
      tpu.vector_store %arg6[%c0_152, %c0_153, %c16_154], %208 {strides = array<i32>} : memref<1x16x32xf32, #tpu.memory_space<vmem>>, vector<1x16x8xf32>,
      %c3_155 = arith.constant 3 : index
      %c0_156 = arith.constant 0 : index
      %c0_157 = arith.constant 0 : index
      %209 = vector.load %arg8[%c3_155, %c0_156, %c0_157] : memref<4x16x1xf32, #tpu.memory_space<vmem>>, vector<1x16x1xf32>
      %210 = vector.shape_cast %209 : vector<1x16x1xf32> to vector<16x1xf32>
      %211 = tpu.reciprocal %210 {approx = true} : vector<16x1xf32> -> vector<16x1xf32>
      %c0_158 = arith.constant 0 : index
      %c24_159 = arith.constant 24 : index
      %212 = vector.load %arg9[%c0_158, %c24_159] : memref<16x32xf32, #tpu.memory_space<vmem>>, vector<16x8xf32>
      %213 = vector.broadcast %211 : vector<16x1xf32> to vector<16x8xf32>
      %214 = arith.mulf %212, %213 : vector<16x8xf32>
      %c0_160 = arith.constant 0 : index
      %c0_161 = arith.constant 0 : index
      %c24_162 = arith.constant 24 : index
      %215 = vector.load %arg6[%c0_160, %c0_161, %c24_162] : memref<1x16x32xf32, #tpu.memory_space<vmem>>, vector<1x16x8xf32>
      %216 = vector.shape_cast %215 : vector<1x16x8xf32> to vector<16x8xf32>
      %217 = vector.shape_cast %214 : vector<16x8xf32> to vector<1x16x8xf32>
      tpu.vector_store %arg6[%c0_160, %c0_161, %c24_162], %217 {strides = array<i32>} : memref<1x16x32xf32, #tpu.memory_space<vmem>>, vector<1x16x8xf32>,
    } else {
    }
    return
  }
  func.func @transform_0(%arg0: i32, %arg1: i32) -> (i32, i32, i32) {
    %c0_i32 = arith.constant 0 : i32
    %c0_i32_0 = arith.constant 0 : i32
    %c0_i32_1 = arith.constant 0 : i32
    return %arg0, %c0_i32, %c0_i32_0 : i32, i32, i32
  }
  func.func @transform_1(%arg0: i32, %arg1: i32) -> (i32, i32, i32) {
    %c0_i32 = arith.constant 0 : i32
    %c0_i32_0 = arith.constant 0 : i32
    return %arg0, %arg1, %c0_i32 : i32, i32, i32
  }
  func.func @transform_2(%arg0: i32, %arg1: i32) -> (i32, i32, i32) {
    %c0_i32 = arith.constant 0 : i32
    %c0_i32_0 = arith.constant 0 : i32
    return %arg0, %arg1, %c0_i32 : i32, i32, i32
  }
  func.func @transform_3(%arg0: i32, %arg1: i32) -> (i32, i32, i32, i32) {
    %c0_i32 = arith.constant 0 : i32
    %c0_i32_0 = arith.constant 0 : i32
    %c0_i32_1 = arith.constant 0 : i32
    return %arg0, %c0_i32, %c0_i32_0, %arg1 : i32, i32, i32, i32
  }
  func.func @transform_4(%arg0: i32, %arg1: i32) -> (i32, i32, i32) {
    %c0_i32 = arith.constant 0 : i32
    %c0_i32_0 = arith.constant 0 : i32
    %c0_i32_1 = arith.constant 0 : i32
    return %arg0, %c0_i32, %c0_i32_0 : i32, i32, i32
  }
}

module attributes {stable_mosaic.version = 11 : i64} {
  func.func @tail_kernel(%arg0: i32, %arg1: memref<32x32xf32, #tpu.memory_space<vmem>>, %arg2: memref<32x32xf32, #tpu.memory_space<vmem>>, %arg3: memref<1x32xf32, #tpu.memory_space<vmem>>, %arg4: memref<1x32xf32, #tpu.memory_space<vmem>>, %arg5: memref<32x64xbf16, #tpu.memory_space<vmem>>, %arg6: memref<1x64xf32, #tpu.memory_space<vmem>>, %arg7: memref<64x32xbf16, #tpu.memory_space<vmem>>, %arg8: memref<1x32xf32, #tpu.memory_space<vmem>>, %arg9: memref<1x32xf32, #tpu.memory_space<vmem>>, %arg10: memref<1x32xf32, #tpu.memory_space<vmem>>, %arg11: memref<32x32xf32, #tpu.memory_space<vmem>>) attributes {dimension_semantics = [#tpu.dimension_semantics<parallel>], iteration_bounds = array<i64: 1>, scalar_prefetch = 0 : i64, scratch_operands = 0 : i64, tpu.core_type = #tpu.core_type<tc>, window_params = [{transform_indices = @transform_0, window_bounds = array<i64: 32, 32>}, {transform_indices = @transform_1, window_bounds = array<i64: 32, 32>}, {pipeline_mode = #tpu.pipeline_mode<synchronous>, transform_indices = @transform_2, window_bounds = array<i64: 1, 32>}, {pipeline_mode = #tpu.pipeline_mode<synchronous>, transform_indices = @transform_3, window_bounds = array<i64: 1, 32>}, {pipeline_mode = #tpu.pipeline_mode<synchronous>, transform_indices = @transform_4, window_bounds = array<i64: 32, 64>}, {pipeline_mode = #tpu.pipeline_mode<synchronous>, transform_indices = @transform_5, window_bounds = array<i64: 1, 64>}, {pipeline_mode = #tpu.pipeline_mode<synchronous>, transform_indices = @transform_6, window_bounds = array<i64: 64, 32>}, {pipeline_mode = #tpu.pipeline_mode<synchronous>, transform_indices = @transform_7, window_bounds = array<i64: 1, 32>}, {pipeline_mode = #tpu.pipeline_mode<synchronous>, transform_indices = @transform_8, window_bounds = array<i64: 1, 32>}, {pipeline_mode = #tpu.pipeline_mode<synchronous>, transform_indices = @transform_9, window_bounds = array<i64: 1, 32>}, {transform_indices = @transform_10, window_bounds = array<i64: 32, 32>}]} {
    %c0 = arith.constant 0 : index
    %c0_0 = arith.constant 0 : index
    %0 = vector.load %arg1[%c0, %c0_0] : memref<32x32xf32, #tpu.memory_space<vmem>>, vector<32x32xf32>
    %c0_1 = arith.constant 0 : index
    %c0_2 = arith.constant 0 : index
    %1 = vector.load %arg2[%c0_1, %c0_2] : memref<32x32xf32, #tpu.memory_space<vmem>>, vector<32x32xf32>
    %2 = arith.addf %0, %1 : vector<32x32xf32>
    %c0_3 = arith.constant 0 : index
    %c0_4 = arith.constant 0 : index
    %3 = vector.load %arg3[%c0_3, %c0_4] : memref<1x32xf32, #tpu.memory_space<vmem>>, vector<1x32xf32>
    %c0_5 = arith.constant 0 : index
    %c0_6 = arith.constant 0 : index
    %4 = vector.load %arg4[%c0_5, %c0_6] : memref<1x32xf32, #tpu.memory_space<vmem>>, vector<1x32xf32>
    %cst = arith.constant dense<0.000000e+00> : vector<32xf32>
    %5 = vector.multi_reduction <add>, %2, %cst [1] : vector<32x32xf32> to vector<32xf32>
    %6 = vector.shape_cast %5 : vector<32xf32> to vector<32x1xf32>
    %cst_7 = arith.constant 3.200000e+01 : f32
    %7 = vector.broadcast %cst_7 : f32 to vector<32x1xf32>
    %8 = arith.divf %6, %7 : vector<32x1xf32>
    %9 = vector.broadcast %8 : vector<32x1xf32> to vector<32x32xf32>
    %10 = arith.subf %2, %9 : vector<32x32xf32>
    %11 = arith.mulf %10, %10 : vector<32x32xf32>
    %cst_8 = arith.constant dense<0.000000e+00> : vector<32xf32>
    %12 = vector.multi_reduction <add>, %11, %cst_8 [1] : vector<32x32xf32> to vector<32xf32>
    %13 = vector.shape_cast %12 : vector<32xf32> to vector<32x1xf32>
    %cst_9 = arith.constant 3.200000e+01 : f32
    %14 = vector.broadcast %cst_9 : f32 to vector<32x1xf32>
    %15 = arith.divf %13, %14 : vector<32x1xf32>
    %cst_10 = arith.constant 9.99999974E-6 : f32
    %16 = vector.broadcast %cst_10 : f32 to vector<32x1xf32>
    %17 = arith.addf %15, %16 : vector<32x1xf32>
    %18 = math.rsqrt %17 : vector<32x1xf32>
    %19 = vector.broadcast %18 : vector<32x1xf32> to vector<32x32xf32>
    %20 = arith.mulf %10, %19 : vector<32x32xf32>
    %21 = vector.broadcast %3 : vector<1x32xf32> to vector<32x32xf32>
    %22 = arith.mulf %20, %21 : vector<32x32xf32>
    %23 = vector.broadcast %4 : vector<1x32xf32> to vector<32x32xf32>
    %24 = arith.addf %22, %23 : vector<32x32xf32>
    %25 = arith.truncf %24 : vector<32x32xf32> to vector<32x32xbf16>
    %c0_11 = arith.constant 0 : index
    %c0_12 = arith.constant 0 : index
    %26 = vector.load %arg5[%c0_11, %c0_12] : memref<32x64xbf16, #tpu.memory_space<vmem>>, vector<32x64xbf16>
    %cst_13 = arith.constant dense<0.000000e+00> : vector<32x64xf32>
    %27 = tpu.matmul %25, %26, %cst_13 {dimension_numbers = #tpu.dot_dimension_numbers<[1], [0], [0], [1], [0, 0, 1, 1], [], []>} : vector<32x32xbf16>, vector<32x64xbf16>, vector<32x64xf32> -> vector<32x64xf32>
    %c0_14 = arith.constant 0 : index
    %c0_15 = arith.constant 0 : index
    %28 = vector.load %arg6[%c0_14, %c0_15] : memref<1x64xf32, #tpu.memory_space<vmem>>, vector<1x64xf32>
    %29 = vector.broadcast %28 : vector<1x64xf32> to vector<32x64xf32>
    %30 = arith.addf %27, %29 : vector<32x64xf32>
    %cst_16 = arith.constant 5.000000e-01 : f32
    %31 = vector.broadcast %cst_16 : f32 to vector<32x64xf32>
    %32 = arith.mulf %31, %30 : vector<32x64xf32>
    %cst_17 = arith.constant 0.707106769 : f32
    %33 = vector.broadcast %cst_17 : f32 to vector<32x64xf32>
    %34 = arith.mulf %30, %33 : vector<32x64xf32>
    %35 = math.absf %34 : vector<32x64xf32>
    %cst_18 = arith.constant 0.327591091 : f32
    %36 = vector.broadcast %cst_18 : f32 to vector<32x64xf32>
    %37 = arith.mulf %36, %35 : vector<32x64xf32>
    %cst_19 = arith.constant 1.000000e+00 : f32
    %38 = vector.broadcast %cst_19 : f32 to vector<32x64xf32>
    %39 = arith.addf %38, %37 : vector<32x64xf32>
    %cst_20 = arith.constant 1.000000e+00 : f32
    %40 = vector.broadcast %cst_20 : f32 to vector<32x64xf32>
    %41 = arith.divf %40, %39 : vector<32x64xf32>
    %cst_21 = arith.constant 1.06140542 : f32
    %42 = vector.broadcast %cst_21 : f32 to vector<32x64xf32>
    %43 = arith.mulf %42, %41 : vector<32x64xf32>
    %cst_22 = arith.constant -1.45315206 : f32
    %44 = vector.broadcast %cst_22 : f32 to vector<32x64xf32>
    %45 = arith.addf %43, %44 : vector<32x64xf32>
    %46 = arith.mulf %45, %41 : vector<32x64xf32>
    %cst_23 = arith.constant 1.42141378 : f32
    %47 = vector.broadcast %cst_23 : f32 to vector<32x64xf32>
    %48 = arith.addf %46, %47 : vector<32x64xf32>
    %49 = arith.mulf %48, %41 : vector<32x64xf32>
    %cst_24 = arith.constant -0.284496725 : f32
    %50 = vector.broadcast %cst_24 : f32 to vector<32x64xf32>
    %51 = arith.addf %49, %50 : vector<32x64xf32>
    %52 = arith.mulf %51, %41 : vector<32x64xf32>
    %cst_25 = arith.constant 0.254829586 : f32
    %53 = vector.broadcast %cst_25 : f32 to vector<32x64xf32>
    %54 = arith.addf %52, %53 : vector<32x64xf32>
    %55 = arith.mulf %54, %41 : vector<32x64xf32>
    %cst_26 = arith.constant 0.000000e+00 : f32
    %56 = vector.broadcast %cst_26 : f32 to vector<32x64xf32>
    %57 = arith.subf %56, %35 : vector<32x64xf32>
    %58 = arith.mulf %57, %35 : vector<32x64xf32>
    %59 = math.exp %58 : vector<32x64xf32>
    %60 = arith.mulf %55, %59 : vector<32x64xf32>
    %cst_27 = arith.constant 1.000000e+00 : f32
    %61 = vector.broadcast %cst_27 : f32 to vector<32x64xf32>
    %62 = arith.subf %61, %60 : vector<32x64xf32>
    %cst_28 = arith.constant 0.000000e+00 : f32
    %63 = vector.broadcast %cst_28 : f32 to vector<32x64xf32>
    %64 = arith.cmpf oge, %34, %63 : vector<32x64xf32>
    %cst_29 = arith.constant 0.000000e+00 : f32
    %65 = vector.broadcast %cst_29 : f32 to vector<32x64xf32>
    %66 = arith.subf %65, %62 : vector<32x64xf32>
    %67 = arith.select %64, %62, %66 : vector<32x64xi1>, vector<32x64xf32>
    %cst_30 = arith.constant 1.000000e+00 : f32
    %68 = vector.broadcast %cst_30 : f32 to vector<32x64xf32>
    %69 = arith.addf %68, %67 : vector<32x64xf32>
    %70 = arith.mulf %32, %69 : vector<32x64xf32>
    %71 = arith.truncf %70 : vector<32x64xf32> to vector<32x64xbf16>
    %c0_31 = arith.constant 0 : index
    %c0_32 = arith.constant 0 : index
    %72 = vector.load %arg7[%c0_31, %c0_32] : memref<64x32xbf16, #tpu.memory_space<vmem>>, vector<64x32xbf16>
    %cst_33 = arith.constant dense<0.000000e+00> : vector<32x32xf32>
    %73 = tpu.matmul %71, %72, %cst_33 {dimension_numbers = #tpu.dot_dimension_numbers<[1], [0], [0], [1], [0, 0, 1, 1], [], []>} : vector<32x64xbf16>, vector<64x32xbf16>, vector<32x32xf32> -> vector<32x32xf32>
    %c0_34 = arith.constant 0 : index
    %c0_35 = arith.constant 0 : index
    %74 = vector.load %arg8[%c0_34, %c0_35] : memref<1x32xf32, #tpu.memory_space<vmem>>, vector<1x32xf32>
    %75 = vector.broadcast %74 : vector<1x32xf32> to vector<32x32xf32>
    %76 = arith.addf %73, %75 : vector<32x32xf32>
    %77 = arith.addf %24, %76 : vector<32x32xf32>
    %c0_36 = arith.constant 0 : index
    %c0_37 = arith.constant 0 : index
    %78 = vector.load %arg9[%c0_36, %c0_37] : memref<1x32xf32, #tpu.memory_space<vmem>>, vector<1x32xf32>
    %c0_38 = arith.constant 0 : index
    %c0_39 = arith.constant 0 : index
    %79 = vector.load %arg10[%c0_38, %c0_39] : memref<1x32xf32, #tpu.memory_space<vmem>>, vector<1x32xf32>
    %cst_40 = arith.constant dense<0.000000e+00> : vector<32xf32>
    %80 = vector.multi_reduction <add>, %77, %cst_40 [1] : vector<32x32xf32> to vector<32xf32>
    %81 = vector.shape_cast %80 : vector<32xf32> to vector<32x1xf32>
    %cst_41 = arith.constant 3.200000e+01 : f32
    %82 = vector.broadcast %cst_41 : f32 to vector<32x1xf32>
    %83 = arith.divf %81, %82 : vector<32x1xf32>
    %84 = vector.broadcast %83 : vector<32x1xf32> to vector<32x32xf32>
    %85 = arith.subf %77, %84 : vector<32x32xf32>
    %86 = arith.mulf %85, %85 : vector<32x32xf32>
    %cst_42 = arith.constant dense<0.000000e+00> : vector<32xf32>
    %87 = vector.multi_reduction <add>, %86, %cst_42 [1] : vector<32x32xf32> to vector<32xf32>
    %88 = vector.shape_cast %87 : vector<32xf32> to vector<32x1xf32>
    %cst_43 = arith.constant 3.200000e+01 : f32
    %89 = vector.broadcast %cst_43 : f32 to vector<32x1xf32>
    %90 = arith.divf %88, %89 : vector<32x1xf32>
    %cst_44 = arith.constant 9.99999974E-6 : f32
    %91 = vector.broadcast %cst_44 : f32 to vector<32x1xf32>
    %92 = arith.addf %90, %91 : vector<32x1xf32>
    %93 = math.rsqrt %92 : vector<32x1xf32>
    %94 = vector.broadcast %93 : vector<32x1xf32> to vector<32x32xf32>
    %95 = arith.mulf %85, %94 : vector<32x32xf32>
    %96 = vector.broadcast %78 : vector<1x32xf32> to vector<32x32xf32>
    %97 = arith.mulf %95, %96 : vector<32x32xf32>
    %98 = vector.broadcast %79 : vector<1x32xf32> to vector<32x32xf32>
    %99 = arith.addf %97, %98 : vector<32x32xf32>
    %c0_45 = arith.constant 0 : index
    %c0_46 = arith.constant 0 : index
    %100 = vector.load %arg11[%c0_45, %c0_46] : memref<32x32xf32, #tpu.memory_space<vmem>>, vector<32x32xf32>
    tpu.vector_store %arg11[%c0_45, %c0_46], %99 {strides = array<i32>} : memref<32x32xf32, #tpu.memory_space<vmem>>, vector<32x32xf32>,
    return
  }
  func.func @transform_0(%arg0: i32) -> (i32, i32) {
    %c0_i32 = arith.constant 0 : i32
    %c0_i32_0 = arith.constant 0 : i32
    return %arg0, %c0_i32 : i32, i32
  }
  func.func @transform_1(%arg0: i32) -> (i32, i32) {
    %c0_i32 = arith.constant 0 : i32
    %c0_i32_0 = arith.constant 0 : i32
    return %arg0, %c0_i32 : i32, i32
  }
  func.func @transform_2(%arg0: i32) -> (i32, i32) {
    %c0_i32 = arith.constant 0 : i32
    %c0_i32_0 = arith.constant 0 : i32
    %c0_i32_1 = arith.constant 0 : i32
    return %c0_i32, %c0_i32_0 : i32, i32
  }
  func.func @transform_3(%arg0: i32) -> (i32, i32) {
    %c0_i32 = arith.constant 0 : i32
    %c0_i32_0 = arith.constant 0 : i32
    %c0_i32_1 = arith.constant 0 : i32
    return %c0_i32, %c0_i32_0 : i32, i32
  }
  func.func @transform_4(%arg0: i32) -> (i32, i32) {
    %c0_i32 = arith.constant 0 : i32
    %c0_i32_0 = arith.constant 0 : i32
    %c0_i32_1 = arith.constant 0 : i32
    return %c0_i32, %c0_i32_0 : i32, i32
  }
  func.func @transform_5(%arg0: i32) -> (i32, i32) {
    %c0_i32 = arith.constant 0 : i32
    %c0_i32_0 = arith.constant 0 : i32
    %c0_i32_1 = arith.constant 0 : i32
    return %c0_i32, %c0_i32_0 : i32, i32
  }
  func.func @transform_6(%arg0: i32) -> (i32, i32) {
    %c0_i32 = arith.constant 0 : i32
    %c0_i32_0 = arith.constant 0 : i32
    %c0_i32_1 = arith.constant 0 : i32
    return %c0_i32, %c0_i32_0 : i32, i32
  }
  func.func @transform_7(%arg0: i32) -> (i32, i32) {
    %c0_i32 = arith.constant 0 : i32
    %c0_i32_0 = arith.constant 0 : i32
    %c0_i32_1 = arith.constant 0 : i32
    return %c0_i32, %c0_i32_0 : i32, i32
  }
  func.func @transform_8(%arg0: i32) -> (i32, i32) {
    %c0_i32 = arith.constant 0 : i32
    %c0_i32_0 = arith.constant 0 : i32
    %c0_i32_1 = arith.constant 0 : i32
    return %c0_i32, %c0_i32_0 : i32, i32
  }
  func.func @transform_9(%arg0: i32) -> (i32, i32) {
    %c0_i32 = arith.constant 0 : i32
    %c0_i32_0 = arith.constant 0 : i32
    %c0_i32_1 = arith.constant 0 : i32
    return %c0_i32, %c0_i32_0 : i32, i32
  }
  func.func @transform_10(%arg0: i32) -> (i32, i32) {
    %c0_i32 = arith.constant 0 : i32
    %c0_i32_0 = arith.constant 0 : i32
    return %arg0, %c0_i32 : i32, i32
  }
}

</mosaic_0001>

<llo_original>
// kernel: encoder_layer_forward.4
$region0: #{encoder_layer_forward.4}
  #allocation0 [shape = 'u32[]', space=smem, size = 0x4, offset = 0x4, fixed_abs, tag = 'smem constant byte address 0x4 - core index']
  #allocation1 [shape = 'u32[144,128]{1,0:T(1,128)}', space=vmem, size = 0x12000, scoped, tag = 'internal scratch']
  %s0 = inlined_call_operand.hbm [shape: f32[32,32], index: 0, kind: input, shape index: {}]
  %s1 = inlined_call_operand.vmem [shape: bf16[32,96], index: 1, kind: input, shape index: {}]
  %s2 = inlined_call_operand.vmem [shape: f32[1,96], index: 2, kind: input, shape index: {}]
  %s3 = inlined_call_operand.vmem [shape: f32[32,96], index: 3, kind: output, shape index: {}]
  %s4 = sld [smem:[#allocation0]]
  $region26: #{encoder_layer_forward.4} parent=0
    _
  %s6 = ssub.s32 1, %s4
  %s7 = scalar_select 0, %s6, %s4
  $region1: #{encoder_layer_forward.4} parent=0
    #allocation2 [shape = 'u8[16384]{0}', space=vmem, size = 0x4000, scoped, tag = 'input window, operand 0, single buffered']
    #allocation3 [shape = 's32[1]{0}', space=sflag, size = 0x4, scoped, tag = 'scoped memory for encoder_layer_forward.4']
    %8 = vsyncpa [#allocation3], 0
    // Predicated region
    $region2: #{encoder_layer_forward.4} parent=1 // pred_check
      _
    $region3: #{encoder_layer_forward.4} parent=1 // pred_check_branch
      %10 = sbr.rel (0) target = $region5
    $region4: #{encoder_layer_forward.4} parent=1 // pred_region
      %s12 = ssub.s32 512, 512
      %13 = vsyncadd [#allocation3], %s12
      %s14 = sshll.u32 [#allocation2], 4
      %s15 = int_to_ptr.vmem [resolvable:$true] %s14
      %20 = dma.hbm_to_vmem [thread:$0]  %s0, 512, %s15, [#allocation3], 128, 128, 8
    $region5: #{encoder_layer_forward.4} parent=1 // pred_fallthru
      _
    // Predicated region
    $region6: #{encoder_layer_forward.4} parent=1 // pred_check
      _
    $region7: #{encoder_layer_forward.4} parent=1 // pred_check_branch
      %22 = sbr.rel (0) target = $region9
    $region8: #{encoder_layer_forward.4} parent=1 // pred_region
      _
    $region9: #{encoder_layer_forward.4} parent=1 // pred_fallthru
      _
    // Predicated region
    $region10: #{encoder_layer_forward.4} parent=1 // pred_check
      _
    $region11: #{encoder_layer_forward.4} parent=1 // pred_check_branch
      %24 = sbr.rel (0) target = $region13
    $region12: #{encoder_layer_forward.4} parent=1 // pred_region
      _
    $region13: #{encoder_layer_forward.4} parent=1 // pred_fallthru
      _
    // Predicated region
    $region14: #{encoder_layer_forward.4} parent=1 // pred_check
      _
    $region15: #{encoder_layer_forward.4} parent=1 // pred_check_branch
      %26 = sbr.rel (0) target = $region17
    $region16: #{encoder_layer_forward.4} parent=1 // pred_region
      %27 = dma.done [#allocation3], 512
    $region17: #{encoder_layer_forward.4} parent=1 // pred_fallthru
      _
    %v29 = vld [vmem:[#allocation2] sm:$0xff]
    %v30 = vld [vmem:[#allocation2 + $0x8] sm:$0xff]
    %v31 = vld [vmem:[#allocation2 + $0x10] sm:$0xff]
    %v32 = vld [vmem:[#allocation2 + $0x18] sm:$0xff]
    %v33 = vpack.c.bf16 %v30, %v29
    %v34 = vpack.c.bf16 %v32, %v31
    %v35 = vld [vmem:[%s1] sm:$0xf]
    %v36 = vld [vmem:[%s1 + $0x4] sm:$0xf]
    %v37 = vld [vmem:[%s1 + $0x8] sm:$0xf]
    %v38 = vld [vmem:[%s1 + $0xc] sm:$0xf]
    %v39 = vld [vmem:[%s2] sm:$0x1]
    %v41 = vlaneseq
    %v42 = vshrl.u32 %v41, 7
    %v43 = vsub.s32 0, %v42
    %v44 = vrot.slane %v39, %v43
    %v50 = vunpack.c.l.b16 %v35
    %v51 = vunpack.c.l.b16 %v36
    %v52 = vunpack.c.l.b16 %v37
    %v53 = vunpack.c.l.b16 %v38
    %v54 = vpack.c.b16 %v51, %v50
    %v55 = vpack.c.b16 %v53, %v52
    %vm58 = vcmask 261120
    %v60 = vsel %vm58, %v33, 0
    %v63 = vsel %vm58, %v34, 0
    %65 = vmatprep.subr.bf16.mxu0 0
    %66 = vmatpush1.bf16.msra.mxu0 0
    %67 = vmatprep.subr.bf16.mxu0 0
    %68 = vmatpush1.bf16.msra.mxu0 0
    %69 = vmatprep.subr.bf16.mxu0 0
    %70 = vmatpush1.bf16.msra.mxu0 0
    %71 = vmatprep.subr.bf16.mxu0 0
    %72 = vmatpush1.bf16.msra.mxu0 0
    %73 = vmatprep.subr.bf16.mxu0 0
    %74 = vmatpush1.bf16.msra.mxu0 0
    %75 = vmatprep.subr.bf16.mxu0 0
    %76 = vmatpush1.bf16.msra.mxu0 0
    %77 = vmatprep.subr.bf16.mxu0 0
    %78 = vmatpush1.bf16.msra.mxu0 %v55
    %79 = vmatprep.subr.bf16.mxu0 0
    %80 = vmatpush1.bf16.msra.mxu0 %v54
    %81 = vmatprep.subr.bf16.mxu0 0
    %82 = vmatpush2.bf16.msra.mxu0 0
    %83 = vmatprep.subr.bf16.mxu0 0
    %84 = vmatpush2.bf16.msra.mxu0 0
    %85 = vmatprep.subr.bf16.mxu0 0
    %86 = vmatpush2.bf16.msra.mxu0 0
    %87 = vmatprep.subr.bf16.mxu0 0
    %88 = vmatpush2.bf16.msra.mxu0 0
    %89 = vmatprep.subr.bf16.mxu0 0
    %90 = vmatpush2.bf16.msra.mxu0 0
    %91 = vmatprep.subr.bf16.mxu0 0
    %92 = vmatpush2.bf16.msra.mxu0 0
    %93 = vmatprep.subr.bf16.mxu0 0
    %94 = vmatpush2.bf16.msra.mxu0 0
    %95 = vmatprep.subr.bf16.mxu0 0
    %96 = vmatpush2.bf16.msra.mxu0 0
    %97 = vmatprep.mubr.bf16.mxu0 0
    %98 = vmatmul.mubr.bf16.gmra.mxu0 %v60
    %v99 = vpop.f32.mrf.mxu0
    %v100 = vadd.f32 %v44, %v99
    %v101 = vpop.f32.mrf.mxu0
    %v102 = vpop.f32.mrf.mxu0
    %v103 = vadd.f32 %v44, %v102
    %v104 = vpop.f32.mrf.mxu0
    %105 = vmatprep.mubr.bf16.mxu0 0
    %106 = vmatmul.mubr.bf16.gmra.mxu0 %v63
    %v107 = vpop.f32.mrf.mxu0
    %v108 = vadd.f32 %v44, %v107
    %v109 = vpop.f32.mrf.mxu0
    %v110 = vpop.f32.mrf.mxu0
    %v111 = vadd.f32 %v44, %v110
    %v112 = vpop.f32.mrf.mxu0
    %113 = vdwg.mxu0
    %vm114 = vcmask 785408
    %115 = vst.msk [vmem:[%s3] sm:$0xff] %vm114, %v100
    %116 = vst.msk [vmem:[%s3 + $0x8] sm:$0xff] %vm114, %v103
    %117 = vst.msk [vmem:[%s3 + $0x10] sm:$0xff] %vm114, %v108
    %118 = vst.msk [vmem:[%s3 + $0x18] sm:$0xff] %vm114, %v111
    // Predicated region
    $region18: #{encoder_layer_forward.4} parent=1 // pred_check
      _
    $region19: #{encoder_layer_forward.4} parent=1 // pred_check_branch
      %120 = sbr.rel (0) target = $region21
    $region20: #{encoder_layer_forward.4} parent=1 // pred_region
      _
    $region21: #{encoder_layer_forward.4} parent=1 // pred_fallthru
      _
    // Predicated region
    $region22: #{encoder_layer_forward.4} parent=1 // pred_check
      _
    $region23: #{encoder_layer_forward.4} parent=1 // pred_check_branch
      %122 = sbr.rel (0) target = $region25
    $region24: #{encoder_layer_forward.4} parent=1 // pred_region
      _
    $region25: #{encoder_layer_forward.4} parent=1 // pred_fallthru
      _
    %123 = vsyncpa [#allocation3], 1

// kernel: encoder_layer_forward.5
$region0: #{encoder_layer_forward.5}
  #allocation0 [shape = 'u32[]', space=smem, size = 0x4, offset = 0x4, fixed_abs, tag = 'smem constant byte address 0x4 - core index']
  #allocation1 [shape = 'u32[144,128]{1,0:T(1,128)}', space=vmem, size = 0x12000, scoped, tag = 'internal scratch']
  %s0 = inlined_call_operand.vmem [shape: f32[2,16,32], index: 0, kind: input, shape index: {}]
  %s1 = inlined_call_operand.vmem [shape: f32[4,31,8], index: 1, kind: input, shape index: {}]
  %s2 = inlined_call_operand.vmem [shape: f32[2,4,16,31], index: 2, kind: output, shape index: {}]
  %s3 = sld [smem:[#allocation0]]
  $region41: #{encoder_layer_forward.5} parent=0
    _
  %s5 = ssub.s32 1, %s3
  %s6 = scalar_select 0, %s5, %s3
  loop: start=0, step=1, limit=4
  $region2: #{encoder_layer_forward.5} parent=0 // loop_pre_header
    _
  $region3: #{encoder_layer_forward.5} parent=0 // loop_header
    %s8 = sphi 0, %s12
    %p9 = scmp.ge.s32.totalorder %s8, 4
    %s18 = sphi 0, %s20
    %s21 = sphi 0, %s18
    %s22 = sphi 0, %s21
    %s38 = sphi 0, %s22
    %s42 = sphi 0, %s42
    %s44 = sphi 0, %s42
    %s45 = sphi 0, %s44
    %s59 = sphi 0, %s45
    %s65 = sphi 0, %s67
    %s68 = sphi 0, %s65
    %s69 = sphi 0, %s68
    %s85 = sphi 0, %s69
  $region4: #{encoder_layer_forward.5} parent=0 // loop_header_branch
    %11 = sbr.rel (%p9) target = $region8
  $region5: #{encoder_layer_forward.5} parent=0 // loop_body
    %s13 = ssub.s32 %s8, 1
    %s14 = ssub.s32 %s8, 2
    %s15 = sadd.s32 %s8, 1
    %s16 = ssub.s32 %s8, %s15
    %p17 = scmp.eq.s32.totalorder %s16, 0
    %s19 = sadd.s32 %s18, 1
    %s20 = scalar_select %p17, %s18, %s19
    %p23 = pneg %p17
    %p24 = scmp.eq.s32.totalorder %s8, 1
    %p25 = por %p23, %p24
    %p26 = scmp.ne.s32.totalorder %s18, %s21
    %p27 = scmp.eq.s32.totalorder %s8, 0
    %p28 = por %p26, %p27
    %p29 = scmp.ne.s32.totalorder %s18, %s21
    %p30 = scmp.eq.s32.totalorder %s13, 1
    %p31 = por %p29, %p30
    %p32 = scmp.ne.s32.totalorder %s21, %s22
    %p33 = scmp.eq.s32.totalorder %s13, 0
    %p34 = por %p32, %p33
    %p35 = scmp.ne.s32.totalorder %s21, %s22
    %p36 = scmp.eq.s32.totalorder %s14, 1
    %p37 = por %p35, %p36
    %p39 = scmp.ne.s32.totalorder %s22, %s38
    %p40 = scmp.eq.s32.totalorder %s14, 0
    %p41 = por %p39, %p40
    %s43 = sadd.s32 %s42, 1
    %p46 = scmp.eq.s32.totalorder %s8, 1
    %p47 = scmp.ne.s32.totalorder %s42, %s44
    %p48 = scmp.eq.s32.totalorder %s8, 0
    %p49 = por %p47, %p48
    %p50 = scmp.ne.s32.totalorder %s42, %s44
    %p51 = scmp.eq.s32.totalorder %s13, 1
    %p52 = por %p50, %p51
    %p53 = scmp.ne.s32.totalorder %s44, %s45
    %p54 = scmp.eq.s32.totalorder %s13, 0
    %p55 = por %p53, %p54
    %p56 = scmp.ne.s32.totalorder %s44, %s45
    %p57 = scmp.eq.s32.totalorder %s14, 1
    %p58 = por %p56, %p57
    %p60 = scmp.ne.s32.totalorder %s45, %s59
    %p61 = scmp.eq.s32.totalorder %s14, 0
    %p62 = por %p60, %p61
    %s63 = ssub.s32 %s8, %s15
    %p64 = scmp.eq.s32.totalorder %s63, 0
    %s66 = sadd.s32 %s65, 1
    %s67 = scalar_select %p64, %s65, %s66
    %p70 = pneg %p64
    %p71 = scmp.eq.s32.totalorder %s8, 1
    %p72 = por %p70, %p71
    %p73 = scmp.ne.s32.totalorder %s65, %s68
    %p74 = scmp.eq.s32.totalorder %s8, 0
    %p75 = por %p73, %p74
    %p76 = scmp.ne.s32.totalorder %s65, %s68
    %p77 = scmp.eq.s32.totalorder %s13, 1
    %p78 = por %p76, %p77
    %p79 = scmp.ne.s32.totalorder %s68, %s69
    %p80 = scmp.eq.s32.totalorder %s13, 0
    %p81 = por %p79, %p80
    %p82 = scmp.ne.s32.totalorder %s68, %s69
    %p83 = scmp.eq.s32.totalorder %s14, 1
    %p84 = por %p82, %p83
    %p86 = scmp.ne.s32.totalorder %s69, %s85
    %p87 = scmp.eq.s32.totalorder %s14, 0
    %p88 = por %p86, %p87
    %p89 = scmp.le.s32.totalorder 1, %s8
    %p90 = scmp.lt.s32.totalorder %s8, 3
    %p91 = pnand %p89, %p90
    %p92 = pneg %p91
    // Predicated region
    $region9: #{encoder_layer_forward.5} parent=5 // pred_check
      _
    $region10: #{encoder_layer_forward.5} parent=5 // pred_check_branch
      %94 = sbr.rel (%p91) target = $region12
    $region11: #{encoder_layer_forward.5} parent=5 // pred_region
      %s95 = ssub.s32 %s8, 1
      // Predicated region
      $region13: #{encoder_layer_forward.5} parent=11 // pred_check
        %p96 = pneg %p55
      $region14: #{encoder_layer_forward.5} parent=11 // pred_check_branch
        %98 = sbr.rel (%p96) target = $region16
      $region15: #{encoder_layer_forward.5} parent=11 // pred_region
        _
      $region16: #{encoder_layer_forward.5} parent=11 // pred_fallthru
        _
    $region12: #{encoder_layer_forward.5} parent=5 // pred_fallthru
      _
    %p99 = scmp.lt.s32.totalorder %s8, 2
    // Predicated region
    $region17: #{encoder_layer_forward.5} parent=5 // pred_check
      %p100 = pneg %p99
    $region18: #{encoder_layer_forward.5} parent=5 // pred_check_branch
      %102 = sbr.rel (%p100) target = $region20
    $region19: #{encoder_layer_forward.5} parent=5 // pred_region
      // Predicated region
      $region21: #{encoder_layer_forward.5} parent=19 // pred_check
        %p103 = pneg %p28
      $region22: #{encoder_layer_forward.5} parent=19 // pred_check_branch
        %105 = sbr.rel (%p103) target = $region24
      $region23: #{encoder_layer_forward.5} parent=19 // pred_region
        %p106 = scmp.lt.s32.totalorder %s8, 1
        %s107 = scalar_select %p106, %s8, 1
        %s108 = smul.addr %s107, 2
        %s109 = smul.addr %s108, 8
        %s110 = scalar_lea.vmem %s0, %s109
      $region24: #{encoder_layer_forward.5} parent=19 // pred_fallthru
        _
    $region20: #{encoder_layer_forward.5} parent=5 // pred_fallthru
      _
    %p111 = scmp.le.s32.totalorder 1, %s8
    %p112 = scmp.lt.s32.totalorder %s8, 3
    %p113 = pnand %p111, %p112
    %p114 = pneg %p113
    // Predicated region
    $region25: #{encoder_layer_forward.5} parent=5 // pred_check
      _
    $region26: #{encoder_layer_forward.5} parent=5 // pred_check_branch
      %116 = sbr.rel (%p113) target = $region28
    $region27: #{encoder_layer_forward.5} parent=5 // pred_region
      %s117 = ssub.s32 %s8, 1
      %p118 = scmp.lt.s32.totalorder %s13, 1
      %s119 = scalar_select %p118, %s13, 1
      %s120 = smul.addr %s119, 2
      %s121 = smul.addr %s120, 8
      %s122 = scalar_lea.vmem %s0, %s121
      %p123 = pneg %p34
      %p124 = pneg %p31
      %p125 = pneg %p55
      %p126 = pneg %p52
      %p127 = pneg %p81
      %p128 = pneg %p78
      %p129 = scmp.lt.s32.totalorder %s13, 1
      %s130 = scalar_select %p129, %s13, 1
      %s131 = smul.addr %s130, 8
      %s132 = smul.addr %s131, 8
      %s133 = scalar_lea.vmem %s2, %s132
      %p134 = scmp.lt.s32.totalorder %s13, 1
      %s135 = scalar_select %p134, %s13, 1
      %s136 = smul.addr %s135, 2
      %s137 = smul.addr %s136, 8
      %s138 = scalar_lea.vmem %s0, %s137
      %p139 = scmp.lt.s32.totalorder %s13, 1
      %s140 = scalar_select %p139, %s13, 1
      %s141 = smul.addr %s140, 8
      %s142 = smul.addr %s141, 8
      %s143 = scalar_lea.vmem %s2, %s142
      %v145 = vld [vmem:[%s138] sm:$0xff]
      %v146 = vld [vmem:[%s138 + $0x8] sm:$0xff]
      %v147 = vpack.c.bf16 %v146, %v145
      %v148 = vld [vmem:[%s1] sm:$0xff]
      %v149 = vld [vmem:[%s1 + $0x8] sm:$0xff]
      %v150 = vld [vmem:[%s1 + $0x10] sm:$0xff]
      %v151 = vld [vmem:[%s1 + $0x18] sm:$0x7f]
      %v152 = vpack.c.bf16 %v149, %v148
      %v153 = vpack.c.bf16 %v151, %v150
      %vm154 = vcmask 64512
      %v156 = vsel %vm154, %v147, 0
      %v159 = vsel %vm154, %v152, 0
      %v162 = vsel %vm154, %v153, 0
      %164 = vmatprep.subr.bf16.mxu0 0
      %165 = vmatpush1.bf16.xpose.msra.mxu0 0
      %166 = vmatprep.subr.bf16.mxu0 0
      %167 = vmatpush1.bf16.xpose.msra.mxu0 0
      %168 = vmatprep.subr.bf16.mxu0 0
      %169 = vmatpush1.bf16.xpose.msra.mxu0 0
      %170 = vmatprep.subr.bf16.mxu0 0
      %171 = vmatpush1.bf16.xpose.msra.mxu0 0
      %172 = vmatprep.subr.bf16.mxu0 0
      %173 = vmatpush1.bf16.xpose.msra.mxu0 0
      %174 = vmatprep.subr.bf16.mxu0 0
      %175 = vmatpush1.bf16.xpose.msra.mxu0 0
      %176 = vmatprep.subr.bf16.mxu0 0
      %177 = vmatpush1.bf16.xpose.msra.mxu0 %v162
      %178 = vmatprep.subr.bf16.mxu0 0
      %179 = vmatpush1.bf16.xpose.msra.mxu0 %v159
      %180 = vmatprep.subr.bf16.mxu0 0
      %181 = vmatpush2.bf16.xpose.msra.mxu0 0
      %182 = vmatprep.subr.bf16.mxu0 0
      %183 = vmatpush2.bf16.xpose.msra.mxu0 0
      %184 = vmatprep.subr.bf16.mxu0 0
      %185 = vmatpush2.bf16.xpose.msra.mxu0 0
      %186 = vmatprep.subr.bf16.mxu0 0
      %187 = vmatpush2.bf16.xpose.msra.mxu0 0
      %188 = vmatprep.subr.bf16.mxu0 0
      %189 = vmatpush2.bf16.xpose.msra.mxu0 0
      %190 = vmatprep.subr.bf16.mxu0 0
      %191 = vmatpush2.bf16.xpose.msra.mxu0 0
      %192 = vmatprep.subr.bf16.mxu0 0
      %193 = vmatpush2.bf16.xpose.msra.mxu0 0
      %194 = vmatprep.subr.bf16.mxu0 0
      %195 = vmatpush2.bf16.xpose.msra.mxu0 0
      %196 = vmatprep.mubr.bf16.mxu0 0
      %197 = vmatmul.mubr.bf16.gmra.mxu0 %v156
      %v198 = vpop.f32.mrf.mxu0
      %v199 = vadd.f32 0.0, %v198
      %v200 = vpop.f32.mrf.mxu0
      %v201 = vpop.f32.mrf.mxu0
      %v202 = vadd.f32 0.0, %v201
      %v203 = vpop.f32.mrf.mxu0
      %204 = vdwg.mxu0
      %vm205 = vcmask 252928
      %206 = vst.msk [vmem:[%s143] sm:$0xff] %vm205, %v199
      %207 = vst.msk [vmem:[%s143 + $0x8] sm:$0xff] %vm205, %v202
      %v208 = vld [vmem:[%s138] sm:$0xff]
      %v209 = vld [vmem:[%s138 + $0x8] sm:$0xff]
      %v210 = vpack.c.bf16 %v209, %v208
      %s211 = scalar_lea.vmem %s1, 32
      %v212 = vld [vmem:[%s211] sm:$0xff]
      %v213 = vld [vmem:[%s211 + $0x8] sm:$0xff]
      %v214 = vld [vmem:[%s211 + $0x10] sm:$0xff]
      %v215 = vld [vmem:[%s211 + $0x18] sm:$0x7f]
      %v216 = vpack.c.bf16 %v213, %v212
      %v217 = vpack.c.bf16 %v215, %v214
      %219 = vrot.lane.b32.xlu0 %v210, 120
      %v220 = vpop.permute.xlu0 %219
      %v222 = vsel %vm154, %v220, 0
      %v225 = vsel %vm154, %v216, 0
      %v228 = vsel %vm154, %v217, 0
      %230 = vmatprep.subr.bf16.mxu0 0
      %231 = vmatpush1.bf16.xpose.msra.mxu0 0
      %232 = vmatprep.subr.bf16.mxu0 0
      %233 = vmatpush1.bf16.xpose.msra.mxu0 0
      %234 = vmatprep.subr.bf16.mxu0 0
      %235 = vmatpush1.bf16.xpose.msra.mxu0 0
      %236 = vmatprep.subr.bf16.mxu0 0
      %237 = vmatpush1.bf16.xpose.msra.mxu0 0
      %238 = vmatprep.subr.bf16.mxu0 0
      %239 = vmatpush1.bf16.xpose.msra.mxu0 0
      %240 = vmatprep.subr.bf16.mxu0 0
      %241 = vmatpush1.bf16.xpose.msra.mxu0 0
      %242 = vmatprep.subr.bf16.mxu0 0
      %243 = vmatpush1.bf16.xpose.msra.mxu0 %v228
      %244 = vmatprep.subr.bf16.mxu0 0
      %245 = vmatpush1.bf16.xpose.msra.mxu0 %v225
      %246 = vmatprep.subr.bf16.mxu0 0
      %247 = vmatpush2.bf16.xpose.msra.mxu0 0
      %248 = vmatprep.subr.bf16.mxu0 0
      %249 = vmatpush2.bf16.xpose.msra.mxu0 0
      %250 = vmatprep.subr.bf16.mxu0 0
      %251 = vmatpush2.bf16.xpose.msra.mxu0 0
      %252 = vmatprep.subr.bf16.mxu0 0
      %253 = vmatpush2.bf16.xpose.msra.mxu0 0
      %254 = vmatprep.subr.bf16.mxu0 0
      %255 = vmatpush2.bf16.xpose.msra.mxu0 0
      %256 = vmatprep.subr.bf16.mxu0 0
      %257 = vmatpush2.bf16.xpose.msra.mxu0 0
      %258 = vmatprep.subr.bf16.mxu0 0
      %259 = vmatpush2.bf16.xpose.msra.mxu0 0
      %260 = vmatprep.subr.bf16.mxu0 0
      %261 = vmatpush2.bf16.xpose.msra.mxu0 0
      %262 = vmatprep.mubr.bf16.mxu0 0
      %263 = vmatmul.mubr.bf16.gmra.mxu0 %v222
      %v264 = vpop.f32.mrf.mxu0
      %v265 = vadd.f32 0.0, %v264
      %v266 = vpop.f32.mrf.mxu0
      %v267 = vpop.f32.mrf.mxu0
      %v268 = vadd.f32 0.0, %v267
      %v269 = vpop.f32.mrf.mxu0
      %270 = vdwg.mxu0
      %s271 = scalar_lea.vmem %s143, 16
      %272 = vst.msk [vmem:[%s271] sm:$0xff] %vm205, %v265
      %273 = vst.msk [vmem:[%s271 + $0x8] sm:$0xff] %vm205, %v268
      %v274 = vld [vmem:[%s138] sm:$0xff]
      %v275 = vld [vmem:[%s138 + $0x8] sm:$0xff]
      %v276 = vpack.c.bf16 %v275, %v274
      %s277 = scalar_lea.vmem %s1, 64
      %v278 = vld [vmem:[%s277] sm:$0xff]
      %v279 = vld [vmem:[%s277 + $0x8] sm:$0xff]
      %v280 = vld [vmem:[%s277 + $0x10] sm:$0xff]
      %v281 = vld [vmem:[%s277 + $0x18] sm:$0x7f]
      %v282 = vpack.c.bf16 %v279, %v278
      %v283 = vpack.c.bf16 %v281, %v280
      %285 = vrot.lane.b32.xlu0 %v276, 112
      %v286 = vpop.permute.xlu0 %285
      %v288 = vsel %vm154, %v286, 0
      %v291 = vsel %vm154, %v282, 0
      %v294 = vsel %vm154, %v283, 0
      %296 = vmatprep.subr.bf16.mxu0 0
      %297 = vmatpush1.bf16.xpose.msra.mxu0 0
      %298 = vmatprep.subr.bf16.mxu0 0
      %299 = vmatpush1.bf16.xpose.msra.mxu0 0
      %300 = vmatprep.subr.bf16.mxu0 0
      %301 = vmatpush1.bf16.xpose.msra.mxu0 0
      %302 = vmatprep.subr.bf16.mxu0 0
      %303 = vmatpush1.bf16.xpose.msra.mxu0 0
      %304 = vmatprep.subr.bf16.mxu0 0
      %305 = vmatpush1.bf16.xpose.msra.mxu0 0
      %306 = vmatprep.subr.bf16.mxu0 0
      %307 = vmatpush1.bf16.xpose.msra.mxu0 0
      %308 = vmatprep.subr.bf16.mxu0 0
      %309 = vmatpush1.bf16.xpose.msra.mxu0 %v294
      %310 = vmatprep.subr.bf16.mxu0 0
      %311 = vmatpush1.bf16.xpose.msra.mxu0 %v291
      %312 = vmatprep.subr.bf16.mxu0 0
      %313 = vmatpush2.bf16.xpose.msra.mxu0 0
      %314 = vmatprep.subr.bf16.mxu0 0
      %315 = vmatpush2.bf16.xpose.msra.mxu0 0
      %316 = vmatprep.subr.bf16.mxu0 0
      %317 = vmatpush2.bf16.xpose.msra.mxu0 0
      %318 = vmatprep.subr.bf16.mxu0 0
      %319 = vmatpush2.bf16.xpose.msra.mxu0 0
      %320 = vmatprep.subr.bf16.mxu0 0
      %321 = vmatpush2.bf16.xpose.msra.mxu0 0
      %322 = vmatprep.subr.bf16.mxu0 0
      %323 = vmatpush2.bf16.xpose.msra.mxu0 0
      %324 = vmatprep.subr.bf16.mxu0 0
      %325 = vmatpush2.bf16.xpose.msra.mxu0 0
      %326 = vmatprep.subr.bf16.mxu0 0
      %327 = vmatpush2.bf16.xpose.msra.mxu0 0
      %328 = vmatprep.mubr.bf16.mxu0 0
      %329 = vmatmul.mubr.bf16.gmra.mxu0 %v288
      %v330 = vpop.f32.mrf.mxu0
      %v331 = vadd.f32 0.0, %v330
      %v332 = vpop.f32.mrf.mxu0
      %v333 = vpop.f32.mrf.mxu0
      %v334 = vadd.f32 0.0, %v333
      %v335 = vpop.f32.mrf.mxu0
      %336 = vdwg.mxu0
      %s337 = scalar_lea.vmem %s143, 32
      %338 = vst.msk [vmem:[%s337] sm:$0xff] %vm205, %v331
      %339 = vst.msk [vmem:[%s337 + $0x8] sm:$0xff] %vm205, %v334
      %v340 = vld [vmem:[%s138] sm:$0xff]
      %v341 = vld [vmem:[%s138 + $0x8] sm:$0xff]
      %v342 = vpack.c.bf16 %v341, %v340
      %s343 = scalar_lea.vmem %s1, 96
      %v344 = vld [vmem:[%s343] sm:$0xff]
      %v345 = vld [vmem:[%s343 + $0x8] sm:$0xff]
      %v346 = vld [vmem:[%s343 + $0x10] sm:$0xff]
      %v347 = vld [vmem:[%s343 + $0x18] sm:$0x7f]
      %v348 = vpack.c.bf16 %v345, %v344
      %v349 = vpack.c.bf16 %v347, %v346
      %351 = vrot.lane.b32.xlu0 %v342, 104
      %v352 = vpop.permute.xlu0 %351
      %v354 = vsel %vm154, %v352, 0
      %v357 = vsel %vm154, %v348, 0
      %v360 = vsel %vm154, %v349, 0
      %362 = vmatprep.subr.bf16.mxu0 0
      %363 = vmatpush1.bf16.xpose.msra.mxu0 0
      %364 = vmatprep.subr.bf16.mxu0 0
      %365 = vmatpush1.bf16.xpose.msra.mxu0 0
      %366 = vmatprep.subr.bf16.mxu0 0
      %367 = vmatpush1.bf16.xpose.msra.mxu0 0
      %368 = vmatprep.subr.bf16.mxu0 0
      %369 = vmatpush1.bf16.xpose.msra.mxu0 0
      %370 = vmatprep.subr.bf16.mxu0 0
      %371 = vmatpush1.bf16.xpose.msra.mxu0 0
      %372 = vmatprep.subr.bf16.mxu0 0
      %373 = vmatpush1.bf16.xpose.msra.mxu0 0
      %374 = vmatprep.subr.bf16.mxu0 0
      %375 = vmatpush1.bf16.xpose.msra.mxu0 %v360
      %376 = vmatprep.subr.bf16.mxu0 0
      %377 = vmatpush1.bf16.xpose.msra.mxu0 %v357
      %378 = vmatprep.subr.bf16.mxu0 0
      %379 = vmatpush2.bf16.xpose.msra.mxu0 0
      %380 = vmatprep.subr.bf16.mxu0 0
      %381 = vmatpush2.bf16.xpose.msra.mxu0 0
      %382 = vmatprep.subr.bf16.mxu0 0
      %383 = vmatpush2.bf16.xpose.msra.mxu0 0
      %384 = vmatprep.subr.bf16.mxu0 0
      %385 = vmatpush2.bf16.xpose.msra.mxu0 0
      %386 = vmatprep.subr.bf16.mxu0 0
      %387 = vmatpush2.bf16.xpose.msra.mxu0 0
      %388 = vmatprep.subr.bf16.mxu0 0
      %389 = vmatpush2.bf16.xpose.msra.mxu0 0
      %390 = vmatprep.subr.bf16.mxu0 0
      %391 = vmatpush2.bf16.xpose.msra.mxu0 0
      %392 = vmatprep.subr.bf16.mxu0 0
      %393 = vmatpush2.bf16.xpose.msra.mxu0 0
      %394 = vmatprep.mubr.bf16.mxu0 0
      %395 = vmatmul.mubr.bf16.gmra.mxu0 %v354
      %v396 = vpop.f32.mrf.mxu0
      %v397 = vadd.f32 0.0, %v396
      %v398 = vpop.f32.mrf.mxu0
      %v399 = vpop.f32.mrf.mxu0
      %v400 = vadd.f32 0.0, %v399
      %v401 = vpop.f32.mrf.mxu0
      %402 = vdwg.mxu0
      %s403 = scalar_lea.vmem %s143, 48
      %404 = vst.msk [vmem:[%s403] sm:$0xff] %vm205, %v397
      %405 = vst.msk [vmem:[%s403 + $0x8] sm:$0xff] %vm205, %v400
      %p406 = scmp.lt.s32.totalorder %s13, 1
      %s407 = scalar_select %p406, %s13, 1
      %s408 = smul.addr %s407, 8
      %s409 = smul.addr %s408, 8
      %s410 = scalar_lea.vmem %s2, %s409
      // Predicated region
      $region29: #{encoder_layer_forward.5} parent=27 // pred_check
        %p411 = pneg %p78
      $region30: #{encoder_layer_forward.5} parent=27 // pred_check_branch
        %413 = sbr.rel (%p411) target = $region32
      $region31: #{encoder_layer_forward.5} parent=27 // pred_region
        _
      $region32: #{encoder_layer_forward.5} parent=27 // pred_fallthru
        _
    $region28: #{encoder_layer_forward.5} parent=5 // pred_fallthru
      _
    %p414 = scmp.le.s32.totalorder 2, %s8
    // Predicated region
    $region33: #{encoder_layer_forward.5} parent=5 // pred_check
      %p415 = pneg %p414
    $region34: #{encoder_layer_forward.5} parent=5 // pred_check_branch
      %417 = sbr.rel (%p415) target = $region36
    $region35: #{encoder_layer_forward.5} parent=5 // pred_region
      %s418 = ssub.s32 %s8, 2
      // Predicated region
      $region37: #{encoder_layer_forward.5} parent=35 // pred_check
        %p419 = pneg %p84
      $region38: #{encoder_layer_forward.5} parent=35 // pred_check_branch
        %421 = sbr.rel (%p419) target = $region40
      $region39: #{encoder_layer_forward.5} parent=35 // pred_region
        %p422 = scmp.lt.s32.totalorder %s14, 1
        %s423 = scalar_select %p422, %s14, 1
        %s424 = smul.addr %s423, 8
        %s425 = smul.addr %s424, 8
        %s426 = scalar_lea.vmem %s2, %s425
      $region40: #{encoder_layer_forward.5} parent=35 // pred_fallthru
        _
    $region36: #{encoder_layer_forward.5} parent=5 // pred_fallthru
      _
  $region6: #{encoder_layer_forward.5} parent=0 // loop_footer
    %s12 = sadd.s32 1, %s8
  $region7: #{encoder_layer_forward.5} parent=0 // loop_footer_branch
    %7 = sbr.rel target = $region3
  $region8: #{encoder_layer_forward.5} parent=0 // loop_exit
    _

// kernel: encoder_layer_forward.6
$region0: #{encoder_layer_forward.6}
  #allocation0 [shape = 'u32[]', space=smem, size = 0x4, offset = 0x4, fixed_abs, tag = 'smem constant byte address 0x4 - core index']
  #allocation1 [shape = 'u32[144,128]{1,0:T(1,128)}', space=vmem, size = 0x12000, scoped, tag = 'internal scratch']
  #allocation2 [shape = 'f32[4,16,1]{2,1,0:T(8,128)}', space=vmem, size = 0x8000, scoped, tag = 'scratch operand']
  #allocation3 [shape = 'f32[4,16,1]{2,1,0:T(8,128)}', space=vmem, size = 0x8000, scoped, tag = 'scratch operand']
  #allocation4 [shape = 'f32[16,32]{1,0:T(8,128)}', space=vmem, size = 0x2000, scoped, tag = 'scratch operand']
  %s0 = inlined_call_operand.vmem [shape: f32[2,16,32], index: 0, kind: input, shape index: {}]
  %s1 = inlined_call_operand.vmem [shape: f32[2,16,32], index: 1, kind: input, shape index: {}]
  %s2 = inlined_call_operand.vmem [shape: f32[2,16,32], index: 2, kind: input, shape index: {}]
  %s3 = inlined_call_operand.vmem [shape: f32[2,4,16,16], index: 3, kind: input, shape index: {}]
  %s4 = inlined_call_operand.vmem [shape: f32[2,16,32], index: 4, kind: output, shape index: {}]
  %s5 = sld [smem:[#allocation0]]
  $region57: #{encoder_layer_forward.6} parent=0
    _
  %s7 = ssub.s32 1, %s5
  %s8 = scalar_select 0, %s7, %s5
  loop: start=0, step=1, limit=4
  $region2: #{encoder_layer_forward.6} parent=0 // loop_pre_header
    _
  $region3: #{encoder_layer_forward.6} parent=0 // loop_header
    %s10 = sphi 0, %s14
    %p11 = scmp.ge.s32.totalorder %s10, 4
    %s17 = sphi 0, %s29
    %s18 = sphi 0, %s25
    %s19 = sphi 0, %s17
    %s20 = sphi 0, %s18
    %s21 = sphi 0, %s19
    %s22 = sphi 0, %s20
    %s32 = sphi 0, %s34
    %s35 = sphi 0, %s32
    %s36 = sphi 0, %s35
    %s52 = sphi 0, %s36
    %s60 = sphi 0, %s62
    %s63 = sphi 0, %s60
    %s64 = sphi 0, %s63
    %s80 = sphi 0, %s64
    %s88 = sphi 0, %s90
    %s91 = sphi 0, %s88
    %s92 = sphi 0, %s91
    %s108 = sphi 0, %s92
    %s116 = sphi 0, %s118
    %s119 = sphi 0, %s116
    %s120 = sphi 0, %s119
    %s136 = sphi 0, %s120
    %s142 = sphi 0, %s144
    %s145 = sphi 0, %s142
    %s146 = sphi 0, %s145
    %s162 = sphi 0, %s146
  $region4: #{encoder_layer_forward.6} parent=0 // loop_header_branch
    %13 = sbr.rel (%p11) target = $region8
  $region5: #{encoder_layer_forward.6} parent=0 // loop_body
    %s15 = ssub.s32 %s10, 1
    %s16 = ssub.s32 %s10, 2
    %s23 = sadd.s32 1, %s18
    %p24 = scmp.ge.s32.totalorder %s23, 1
    %s25 = scalar_select %p24, 0, %s23
    %s26 = sadd.s32 1, %s17
    %s27 = scalar_select %p24, %s26, %s17
    %p28 = scmp.ge.s32.totalorder %s27, 2
    %s29 = scalar_select %p28, 0, %s27
    %s30 = ssub.s32 %s17, %s29
    %p31 = scmp.eq.s32.totalorder %s30, 0
    %s33 = sadd.s32 %s32, 1
    %s34 = scalar_select %p31, %s32, %s33
    %p37 = pneg %p31
    %p38 = scmp.eq.s32.totalorder %s10, 1
    %p39 = por %p37, %p38
    %p40 = scmp.ne.s32.totalorder %s32, %s35
    %p41 = scmp.eq.s32.totalorder %s10, 0
    %p42 = por %p40, %p41
    %p43 = scmp.ne.s32.totalorder %s32, %s35
    %p44 = scmp.eq.s32.totalorder %s15, 1
    %p45 = por %p43, %p44
    %p46 = scmp.ne.s32.totalorder %s35, %s36
    %p47 = scmp.eq.s32.totalorder %s15, 0
    %p48 = por %p46, %p47
    %p49 = scmp.ne.s32.totalorder %s35, %s36
    %p50 = scmp.eq.s32.totalorder %s16, 1
    %p51 = por %p49, %p50
    %p53 = scmp.ne.s32.totalorder %s36, %s52
    %p54 = scmp.eq.s32.totalorder %s16, 0
    %p55 = por %p53, %p54
    %s56 = ssub.s32 %s17, %s29
    %s57 = ssub.s32 %s18, %s25
    %s58 = sor.u32 %s56, %s57
    %p59 = scmp.eq.s32.totalorder %s58, 0
    %s61 = sadd.s32 %s60, 1
    %s62 = scalar_select %p59, %s60, %s61
    %p65 = pneg %p59
    %p66 = scmp.eq.s32.totalorder %s10, 1
    %p67 = por %p65, %p66
    %p68 = scmp.ne.s32.totalorder %s60, %s63
    %p69 = scmp.eq.s32.totalorder %s10, 0
    %p70 = por %p68, %p69
    %p71 = scmp.ne.s32.totalorder %s60, %s63
    %p72 = scmp.eq.s32.totalorder %s15, 1
    %p73 = por %p71, %p72
    %p74 = scmp.ne.s32.totalorder %s63, %s64
    %p75 = scmp.eq.s32.totalorder %s15, 0
    %p76 = por %p74, %p75
    %p77 = scmp.ne.s32.totalorder %s63, %s64
    %p78 = scmp.eq.s32.totalorder %s16, 1
    %p79 = por %p77, %p78
    %p81 = scmp.ne.s32.totalorder %s64, %s80
    %p82 = scmp.eq.s32.totalorder %s16, 0
    %p83 = por %p81, %p82
    %s84 = ssub.s32 %s17, %s29
    %s85 = ssub.s32 %s18, %s25
    %s86 = sor.u32 %s84, %s85
    %p87 = scmp.eq.s32.totalorder %s86, 0
    %s89 = sadd.s32 %s88, 1
    %s90 = scalar_select %p87, %s88, %s89
    %p93 = pneg %p87
    %p94 = scmp.eq.s32.totalorder %s10, 1
    %p95 = por %p93, %p94
    %p96 = scmp.ne.s32.totalorder %s88, %s91
    %p97 = scmp.eq.s32.totalorder %s10, 0
    %p98 = por %p96, %p97
    %p99 = scmp.ne.s32.totalorder %s88, %s91
    %p100 = scmp.eq.s32.totalorder %s15, 1
    %p101 = por %p99, %p100
    %p102 = scmp.ne.s32.totalorder %s91, %s92
    %p103 = scmp.eq.s32.totalorder %s15, 0
    %p104 = por %p102, %p103
    %p105 = scmp.ne.s32.totalorder %s91, %s92
    %p106 = scmp.eq.s32.totalorder %s16, 1
    %p107 = por %p105, %p106
    %p109 = scmp.ne.s32.totalorder %s92, %s108
    %p110 = scmp.eq.s32.totalorder %s16, 0
    %p111 = por %p109, %p110
    %s112 = ssub.s32 %s17, %s29
    %s113 = ssub.s32 %s18, %s25
    %s114 = sor.u32 %s112, %s113
    %p115 = scmp.eq.s32.totalorder %s114, 0
    %s117 = sadd.s32 %s116, 1
    %s118 = scalar_select %p115, %s116, %s117
    %p121 = pneg %p115
    %p122 = scmp.eq.s32.totalorder %s10, 1
    %p123 = por %p121, %p122
    %p124 = scmp.ne.s32.totalorder %s116, %s119
    %p125 = scmp.eq.s32.totalorder %s10, 0
    %p126 = por %p124, %p125
    %p127 = scmp.ne.s32.totalorder %s116, %s119
    %p128 = scmp.eq.s32.totalorder %s15, 1
    %p129 = por %p127, %p128
    %p130 = scmp.ne.s32.totalorder %s119, %s120
    %p131 = scmp.eq.s32.totalorder %s15, 0
    %p132 = por %p130, %p131
    %p133 = scmp.ne.s32.totalorder %s119, %s120
    %p134 = scmp.eq.s32.totalorder %s16, 1
    %p135 = por %p133, %p134
    %p137 = scmp.ne.s32.totalorder %s120, %s136
    %p138 = scmp.eq.s32.totalorder %s16, 0
    %p139 = por %p137, %p138
    %s140 = ssub.s32 %s17, %s29
    %p141 = scmp.eq.s32.totalorder %s140, 0
    %s143 = sadd.s32 %s142, 1
    %s144 = scalar_select %p141, %s142, %s143
    %p147 = pneg %p141
    %p148 = scmp.eq.s32.totalorder %s10, 1
    %p149 = por %p147, %p148
    %p150 = scmp.ne.s32.totalorder %s142, %s145
    %p151 = scmp.eq.s32.totalorder %s10, 0
    %p152 = por %p150, %p151
    %p153 = scmp.ne.s32.totalorder %s142, %s145
    %p154 = scmp.eq.s32.totalorder %s15, 1
    %p155 = por %p153, %p154
    %p156 = scmp.ne.s32.totalorder %s145, %s146
    %p157 = scmp.eq.s32.totalorder %s15, 0
    %p158 = por %p156, %p157
    %p159 = scmp.ne.s32.totalorder %s145, %s146
    %p160 = scmp.eq.s32.totalorder %s16, 1
    %p161 = por %p159, %p160
    %p163 = scmp.ne.s32.totalorder %s146, %s162
    %p164 = scmp.eq.s32.totalorder %s16, 0
    %p165 = por %p163, %p164
    %p166 = scmp.le.s32.totalorder 1, %s10
    %p167 = scmp.lt.s32.totalorder %s10, 3
    %p168 = pnand %p166, %p167
    %p169 = pneg %p168
    // Predicated region
    $region9: #{encoder_layer_forward.6} parent=5 // pred_check
      _
    $region10: #{encoder_layer_forward.6} parent=5 // pred_check_branch
      %171 = sbr.rel (%p168) target = $region12
    $region11: #{encoder_layer_forward.6} parent=5 // pred_region
      %s172 = ssub.s32 %s10, 1
    $region12: #{encoder_layer_forward.6} parent=5 // pred_fallthru
      _
    %p173 = scmp.lt.s32.totalorder %s10, 2
    // Predicated region
    $region13: #{encoder_layer_forward.6} parent=5 // pred_check
      %p174 = pneg %p173
    $region14: #{encoder_layer_forward.6} parent=5 // pred_check_branch
      %176 = sbr.rel (%p174) target = $region16
    $region15: #{encoder_layer_forward.6} parent=5 // pred_region
      // Predicated region
      $region17: #{encoder_layer_forward.6} parent=15 // pred_check
        %p177 = pneg %p42
      $region18: #{encoder_layer_forward.6} parent=15 // pred_check_branch
        %179 = sbr.rel (%p177) target = $region20
      $region19: #{encoder_layer_forward.6} parent=15 // pred_region
        %p180 = scmp.lt.s32.totalorder %s17, 1
        %s181 = scalar_select %p180, %s17, 1
        %s182 = smul.addr %s181, 2
        %s183 = smul.addr %s182, 8
        %s184 = scalar_lea.vmem %s0, %s183
      $region20: #{encoder_layer_forward.6} parent=15 // pred_fallthru
        _
      // Predicated region
      $region21: #{encoder_layer_forward.6} parent=15 // pred_check
        %p185 = pneg %p70
      $region22: #{encoder_layer_forward.6} parent=15 // pred_check_branch
        %187 = sbr.rel (%p185) target = $region24
      $region23: #{encoder_layer_forward.6} parent=15 // pred_region
        %s188 = smul.u32 2, %s18
        %p189 = scmp.lt.s32.totalorder %s17, 1
        %s190 = scalar_select %p189, %s17, 1
        %p191 = scmp.lt.s32.totalorder %s188, 1
        %s192 = scalar_select %p191, %s188, 1
        %s193 = smul.addr %s190, 2
        %s194 = sadd.s32 %s192, %s193
        %s195 = smul.addr %s194, 8
        %s196 = scalar_lea.vmem %s1, %s195
        %s197 = smul.u32 2, %s18
      $region24: #{encoder_layer_forward.6} parent=15 // pred_fallthru
        _
      // Predicated region
      $region25: #{encoder_layer_forward.6} parent=15 // pred_check
        %p198 = pneg %p98
      $region26: #{encoder_layer_forward.6} parent=15 // pred_check_branch
        %200 = sbr.rel (%p198) target = $region28
      $region27: #{encoder_layer_forward.6} parent=15 // pred_region
        %s201 = smul.u32 2, %s18
        %p202 = scmp.lt.s32.totalorder %s17, 1
        %s203 = scalar_select %p202, %s17, 1
        %p204 = scmp.lt.s32.totalorder %s201, 1
        %s205 = scalar_select %p204, %s201, 1
        %s206 = smul.addr %s203, 2
        %s207 = sadd.s32 %s205, %s206
        %s208 = smul.addr %s207, 8
        %s209 = scalar_lea.vmem %s2, %s208
        %s210 = smul.u32 2, %s18
      $region28: #{encoder_layer_forward.6} parent=15 // pred_fallthru
        _
      // Predicated region
      $region29: #{encoder_layer_forward.6} parent=15 // pred_check
        %p211 = pneg %p126
      $region30: #{encoder_layer_forward.6} parent=15 // pred_check_branch
        %213 = sbr.rel (%p211) target = $region32
      $region31: #{encoder_layer_forward.6} parent=15 // pred_region
        %p214 = scmp.lt.s32.totalorder %s17, 1
        %s215 = scalar_select %p214, %s17, 1
        %p216 = scmp.lt.s32.totalorder %s18, 0
        %s217 = scalar_select %p216, %s18, 0
        %s218 = smul.addr %s215, 8
        %s219 = sadd.s32 %s217, %s218
        %s220 = smul.addr %s219, 8
        %s221 = scalar_lea.vmem %s3, %s220
      $region32: #{encoder_layer_forward.6} parent=15 // pred_fallthru
        _
    $region16: #{encoder_layer_forward.6} parent=5 // pred_fallthru
      _
    %p222 = scmp.le.s32.totalorder 1, %s10
    %p223 = scmp.lt.s32.totalorder %s10, 3
    %p224 = pnand %p222, %p223
    %p225 = pneg %p224
    // Predicated region
    $region33: #{encoder_layer_forward.6} parent=5 // pred_check
      _
    $region34: #{encoder_layer_forward.6} parent=5 // pred_check_branch
      %227 = sbr.rel (%p224) target = $region36
    $region35: #{encoder_layer_forward.6} parent=5 // pred_region
      %s228 = ssub.s32 %s10, 1
      %p229 = scmp.lt.s32.totalorder %s19, 1
      %s230 = scalar_select %p229, %s19, 1
      %s231 = smul.addr %s230, 2
      %s232 = smul.addr %s231, 8
      %s233 = scalar_lea.vmem %s0, %s232
      %p234 = pneg %p48
      %p235 = pneg %p45
      %s236 = smul.u32 2, %s20
      %p237 = scmp.lt.s32.totalorder %s19, 1
      %s238 = scalar_select %p237, %s19, 1
      %p239 = scmp.lt.s32.totalorder %s236, 1
      %s240 = scalar_select %p239, %s236, 1
      %s241 = smul.addr %s238, 2
      %s242 = sadd.s32 %s240, %s241
      %s243 = smul.addr %s242, 8
      %s244 = scalar_lea.vmem %s1, %s243
      %p245 = pneg %p76
      %p246 = pneg %p73
      %s247 = smul.u32 2, %s20
      %p248 = scmp.lt.s32.totalorder %s19, 1
      %s249 = scalar_select %p248, %s19, 1
      %p250 = scmp.lt.s32.totalorder %s247, 1
      %s251 = scalar_select %p250, %s247, 1
      %s252 = smul.addr %s249, 2
      %s253 = sadd.s32 %s251, %s252
      %s254 = smul.addr %s253, 8
      %s255 = scalar_lea.vmem %s2, %s254
      %p256 = pneg %p104
      %p257 = pneg %p101
      %p258 = scmp.lt.s32.totalorder %s19, 1
      %s259 = scalar_select %p258, %s19, 1
      %p260 = scmp.lt.s32.totalorder %s20, 0
      %s261 = scalar_select %p260, %s20, 0
      %s262 = smul.addr %s259, 8
      %s263 = sadd.s32 %s261, %s262
      %s264 = smul.addr %s263, 8
      %s265 = scalar_lea.vmem %s3, %s264
      %p266 = pneg %p132
      %p267 = pneg %p129
      %p268 = pneg %p158
      %p269 = pneg %p155
      %p270 = scmp.lt.s32.totalorder %s19, 1
      %s271 = scalar_select %p270, %s19, 1
      %s272 = smul.addr %s271, 2
      %s273 = smul.addr %s272, 8
      %s274 = scalar_lea.vmem %s4, %s273
      %p275 = scmp.lt.s32.totalorder %s19, 1
      %s276 = scalar_select %p275, %s19, 1
      %s277 = smul.addr %s276, 2
      %s278 = smul.addr %s277, 8
      %s279 = scalar_lea.vmem %s0, %s278
      %s280 = smul.u32 2, %s20
      %p281 = scmp.lt.s32.totalorder %s19, 1
      %s282 = scalar_select %p281, %s19, 1
      %p283 = scmp.lt.s32.totalorder %s280, 1
      %s284 = scalar_select %p283, %s280, 1
      %s285 = smul.addr %s282, 2
      %s286 = sadd.s32 %s284, %s285
      %s287 = smul.addr %s286, 8
      %s288 = scalar_lea.vmem %s1, %s287
      %s289 = smul.u32 2, %s20
      %s290 = smul.u32 2, %s20
      %p291 = scmp.lt.s32.totalorder %s19, 1
      %s292 = scalar_select %p291, %s19, 1
      %p293 = scmp.lt.s32.totalorder %s290, 1
      %s294 = scalar_select %p293, %s290, 1
      %s295 = smul.addr %s292, 2
      %s296 = sadd.s32 %s294, %s295
      %s297 = smul.addr %s296, 8
      %s298 = scalar_lea.vmem %s2, %s297
      %s299 = smul.u32 2, %s20
      %p300 = scmp.lt.s32.totalorder %s19, 1
      %s301 = scalar_select %p300, %s19, 1
      %p302 = scmp.lt.s32.totalorder %s20, 0
      %s303 = scalar_select %p302, %s20, 0
      %s304 = smul.addr %s301, 8
      %s305 = sadd.s32 %s303, %s304
      %s306 = smul.addr %s305, 8
      %s307 = scalar_lea.vmem %s3, %s306
      %p308 = scmp.lt.s32.totalorder %s19, 1
      %s309 = scalar_select %p308, %s19, 1
      %s310 = smul.addr %s309, 2
      %s311 = smul.addr %s310, 8
      %s312 = scalar_lea.vmem %s4, %s311
      %p314 = scmp.eq.s32.totalorder %s20, 0
      // Predicated region
      $region37: #{encoder_layer_forward.6} parent=35 // pred_check
        %p315 = pneg %p314
      $region38: #{encoder_layer_forward.6} parent=35 // pred_check_branch
        %317 = sbr.rel (%p315) target = $region40
      $region39: #{encoder_layer_forward.6} parent=35 // pred_region
        %vm318 = vcmask 7168
        %319 = vst.msk [vmem:[#allocation2] sm:$0xff] %vm318, -inf
        %320 = vst.msk [vmem:[#allocation2 + $0x8] sm:$0xff] %vm318, -inf
        %321 = vst.msk [vmem:[#allocation2 + $0x10] sm:$0xff] %vm318, -inf
        %322 = vst.msk [vmem:[#allocation2 + $0x18] sm:$0xff] %vm318, -inf
        %323 = vst.msk [vmem:[#allocation2 + $0x20] sm:$0xff] %vm318, -inf
        %324 = vst.msk [vmem:[#allocation2 + $0x28] sm:$0xff] %vm318, -inf
        %325 = vst.msk [vmem:[#allocation2 + $0x30] sm:$0xff] %vm318, -inf
        %326 = vst.msk [vmem:[#allocation2 + $0x38] sm:$0xff] %vm318, -inf
        %327 = vst.msk [vmem:[#allocation3] sm:$0xff] %vm318, 0.0
        %328 = vst.msk [vmem:[#allocation3 + $0x8] sm:$0xff] %vm318, 0.0
        %329 = vst.msk [vmem:[#allocation3 + $0x10] sm:$0xff] %vm318, 0.0
        %330 = vst.msk [vmem:[#allocation3 + $0x18] sm:$0xff] %vm318, 0.0
        %331 = vst.msk [vmem:[#allocation3 + $0x20] sm:$0xff] %vm318, 0.0
        %332 = vst.msk [vmem:[#allocation3 + $0x28] sm:$0xff] %vm318, 0.0
        %333 = vst.msk [vmem:[#allocation3 + $0x30] sm:$0xff] %vm318, 0.0
        %334 = vst.msk [vmem:[#allocation3 + $0x38] sm:$0xff] %vm318, 0.0
        %vm335 = vcmask 261120
        %336 = vst.msk [vmem:[#allocation4] sm:$0xff] %vm335, 0.0
        %337 = vst.msk [vmem:[#allocation4 + $0x8] sm:$0xff] %vm335, 0.0
      $region40: #{encoder_layer_forward.6} parent=35 // pred_fallthru
        _
      %v338 = vld [vmem:[%s279] sm:$0xff]
      %v339 = vld [vmem:[%s279 + $0x8] sm:$0xff]
      %v340 = vpack.c.bf16 %v339, %v338
      %v341 = vld [vmem:[%s288] sm:$0xff]
      %v342 = vld [vmem:[%s288 + $0x8] sm:$0xff]
      %v343 = vpack.c.bf16 %v342, %v341
      %v344 = vld [vmem:[%s298] sm:$0xff]
      %v345 = vld [vmem:[%s298 + $0x8] sm:$0xff]
      %v346 = vpack.c.bf16 %v345, %v344
      %v347 = vld [vmem:[%s307] sm:$0xff]
      %v348 = vld [vmem:[%s307 + $0x8] sm:$0xff]
      %vm349 = vcmask 64512
      %v351 = vsel %vm349, %v340, 0
      %v354 = vsel %vm349, %v343, 0
      %356 = vmatprep.subr.bf16.mxu0 0
      %357 = vmatpush1.bf16.xpose.msra.mxu0 0
      %358 = vmatprep.subr.bf16.mxu0 0
      %359 = vmatpush1.bf16.xpose.msra.mxu0 0
      %360 = vmatprep.subr.bf16.mxu0 0
      %361 = vmatpush1.bf16.xpose.msra.mxu0 0
      %362 = vmatprep.subr.bf16.mxu0 0
      %363 = vmatpush1.bf16.xpose.msra.mxu0 0
      %364 = vmatprep.subr.bf16.mxu0 0
      %365 = vmatpush1.bf16.xpose.msra.mxu0 0
      %366 = vmatprep.subr.bf16.mxu0 0
      %367 = vmatpush1.bf16.xpose.msra.mxu0 0
      %368 = vmatprep.subr.bf16.mxu0 0
      %369 = vmatpush1.bf16.xpose.msra.mxu0 0
      %370 = vmatprep.subr.bf16.mxu0 0
      %371 = vmatpush1.bf16.xpose.msra.mxu0 %v354
      %372 = vmatprep.subr.bf16.mxu0 0
      %373 = vmatpush2.bf16.xpose.msra.mxu0 0
      %374 = vmatprep.subr.bf16.mxu0 0
      %375 = vmatpush2.bf16.xpose.msra.mxu0 0
      %376 = vmatprep.subr.bf16.mxu0 0
      %377 = vmatpush2.bf16.xpose.msra.mxu0 0
      %378 = vmatprep.subr.bf16.mxu0 0
      %379 = vmatpush2.bf16.xpose.msra.mxu0 0
      %380 = vmatprep.subr.bf16.mxu0 0
      %381 = vmatpush2.bf16.xpose.msra.mxu0 0
      %382 = vmatprep.subr.bf16.mxu0 0
      %383 = vmatpush2.bf16.xpose.msra.mxu0 0
      %384 = vmatprep.subr.bf16.mxu0 0
      %385 = vmatpush2.bf16.xpose.msra.mxu0 0
      %386 = vmatprep.subr.bf16.mxu0 0
      %387 = vmatpush2.bf16.xpose.msra.mxu0 0
      %388 = vmatprep.mubr.bf16.mxu0 0
      %389 = vmatmul.mubr.bf16.gmra.mxu0 %v351
      %v390 = vpop.f32.mrf.mxu0
      %v391 = vadd.f32 %v347, %v390
      %v392 = vpop.f32.mrf.mxu0
      %v393 = vpop.f32.mrf.mxu0
      %v394 = vadd.f32 %v348, %v393
      %v395 = vpop.f32.mrf.mxu0
      %396 = vdwg.mxu0
      %v397 = vmul.f32 %v391, 0.35355338
      %v398 = vmul.f32 %v394, 0.35355338
      %v399 = vld [vmem:[#allocation2] sm:$0xff]
      %v400 = vld [vmem:[#allocation2 + $0x8] sm:$0xff]
      %vm401 = vcmask 130048
      %v402 = vsel %vm401, %v397, -inf
      %403 = vmax.xlane.f32.xlu0 %v402
      %v404 = vpop.xlane.xlu0 %403
      %v405 = vsel %vm401, %v398, -inf
      %406 = vmax.xlane.f32.xlu0 %v405
      %v407 = vpop.xlane.xlu0 %406
      %v408 = vmax.f32 %v399, %v404
      %v409 = vmax.f32 %v400, %v407
      %v410 = vsub.f32 %v399, %v408
      %v411 = vsub.f32 %v400, %v409
      %v412 = vmul.f32 %v410, 1.442695
      %v413 = vpow.pop %v412
      %v414 = vmul.f32 %v411, 1.442695
      %v415 = vpow.pop %v414
      %417 = vset.pattern.permute.xlu0 0
      %418 = vperm.xlu0 %417, %v408
      %v419 = vpop.permute.xlu0 %418
      %422 = vset.pattern.permute.xlu0 0
      %423 = vperm.xlu0 %422, %v409
      %v424 = vpop.permute.xlu0 %423
      %v426 = vsub.f32 %v397, %v419
      %v427 = vsub.f32 %v398, %v424
      %v428 = vmul.f32 %v426, 1.442695
      %v429 = vpow.pop %v428
      %v430 = vmul.f32 %v427, 1.442695
      %v431 = vpow.pop %v430
      %v432 = vld [vmem:[#allocation3] sm:$0xff]
      %v433 = vld [vmem:[#allocation3 + $0x8] sm:$0xff]
      %v434 = vmul.f32 %v413, %v432
      %v435 = vmul.f32 %v415, %v433
      %v436 = vsel %vm401, %v429, 0.0
      %437 = vadd.xlane.f32.xlu0 %v436
      %v438 = vpop.xlane.xlu0 %437
      %v439 = vsel %vm401, %v431, 0.0
      %440 = vadd.xlane.f32.xlu0 %v439
      %v441 = vpop.xlane.xlu0 %440
      %v442 = vadd.f32 %v434, %v438
      %v443 = vadd.f32 %v435, %v441
      %vm444 = vcmask 7168
      %445 = vst.msk [vmem:[#allocation3] sm:$0xff] %vm444, %v442
      %446 = vst.msk [vmem:[#allocation3 + $0x8] sm:$0xff] %vm444, %v443
      %v447 = vpack.c.bf16 %v431, %v429
      %v449 = vsel %vm401, %v447, 0
      %451 = vmatprep.subr.bf16.mxu0 0
      %452 = vmatpush1.bf16.msra.mxu0 0
      %453 = vmatprep.subr.bf16.mxu0 0
      %454 = vmatpush1.bf16.msra.mxu0 0
      %455 = vmatprep.subr.bf16.mxu0 0
      %456 = vmatpush1.bf16.msra.mxu0 0
      %457 = vmatprep.subr.bf16.mxu0 0
      %458 = vmatpush1.bf16.msra.mxu0 0
      %459 = vmatprep.subr.bf16.mxu0 0
      %460 = vmatpush1.bf16.msra.mxu0 0
      %461 = vmatprep.subr.bf16.mxu0 0
      %462 = vmatpush1.bf16.msra.mxu0 0
      %463 = vmatprep.subr.bf16.mxu0 0
      %464 = vmatpush1.bf16.msra.mxu0 0
      %465 = vmatprep.subr.bf16.mxu0 0
      %466 = vmatpush1.bf16.msra.mxu0 %v346
      %467 = vmatprep.subr.bf16.mxu0 0
      %468 = vmatpush2.bf16.msra.mxu0 0
      %469 = vmatprep.subr.bf16.mxu0 0
      %470 = vmatpush2.bf16.msra.mxu0 0
      %471 = vmatprep.subr.bf16.mxu0 0
      %472 = vmatpush2.bf16.msra.mxu0 0
      %473 = vmatprep.subr.bf16.mxu0 0
      %474 = vmatpush2.bf16.msra.mxu0 0
      %475 = vmatprep.subr.bf16.mxu0 0
      %476 = vmatpush2.bf16.msra.mxu0 0
      %477 = vmatprep.subr.bf16.mxu0 0
      %478 = vmatpush2.bf16.msra.mxu0 0
      %479 = vmatprep.subr.bf16.mxu0 0
      %480 = vmatpush2.bf16.msra.mxu0 0
      %481 = vmatprep.subr.bf16.mxu0 0
      %482 = vmatpush2.bf16.msra.mxu0 0
      %483 = vmatprep.mubr.bf16.mxu0 0
      %484 = vmatmul.mubr.bf16.gmra.mxu0 %v449
      %v485 = vpop.f32.mrf.mxu0
      %v486 = vadd.f32 0.0, %v485
      %v487 = vpop.f32.mrf.mxu0
      %v488 = vpop.f32.mrf.mxu0
      %v489 = vadd.f32 0.0, %v488
      %v490 = vpop.f32.mrf.mxu0
      %491 = vdwg.mxu0
      %v492 = vld [vmem:[#allocation4] sm:$0xff]
      %v493 = vld [vmem:[#allocation4 + $0x8] sm:$0xff]
      %495 = vset.pattern.permute.xlu0 0
      %496 = vperm.xlu0 %495, %v413
      %v497 = vpop.permute.xlu0 %496
      %500 = vset.pattern.permute.xlu0 0
      %501 = vperm.xlu0 %500, %v415
      %v502 = vpop.permute.xlu0 %501
      %v504 = vmul.f32 %v497, %v492
      %v505 = vmul.f32 %v502, %v493
      %v506 = vadd.f32 %v504, %v486
      %v507 = vadd.f32 %v505, %v489
      %508 = vst.msk [vmem:[#allocation4] sm:$0xff] %vm349, %v506
      %509 = vst.msk [vmem:[#allocation4 + $0x8] sm:$0xff] %vm349, %v507
      %510 = vst.msk [vmem:[#allocation2] sm:$0xff] %vm444, %v408
      %511 = vst.msk [vmem:[#allocation2 + $0x8] sm:$0xff] %vm444, %v409
      %v512 = vld [vmem:[%s279] sm:$0xff]
      %v513 = vld [vmem:[%s279 + $0x8] sm:$0xff]
      %v514 = vpack.c.bf16 %v513, %v512
      %v515 = vld [vmem:[%s288] sm:$0xff]
      %v516 = vld [vmem:[%s288 + $0x8] sm:$0xff]
      %v517 = vpack.c.bf16 %v516, %v515
      %v518 = vld [vmem:[%s298] sm:$0xff]
      %v519 = vld [vmem:[%s298 + $0x8] sm:$0xff]
      %v520 = vpack.c.bf16 %v519, %v518
      %s521 = scalar_lea.vmem %s307, 16
      %v522 = vld [vmem:[%s521] sm:$0xff]
      %v523 = vld [vmem:[%s521 + $0x8] sm:$0xff]
      %525 = vrot.lane.b32.xlu0 %v514, 120
      %v526 = vpop.permute.xlu0 %525
      %528 = vrot.lane.b32.xlu0 %v517, 120
      %v529 = vpop.permute.xlu0 %528
      %v531 = vsel %vm349, %v526, 0
      %v534 = vsel %vm349, %v529, 0
      %536 = vmatprep.subr.bf16.mxu0 0
      %537 = vmatpush1.bf16.xpose.msra.mxu0 0
      %538 = vmatprep.subr.bf16.mxu0 0
      %539 = vmatpush1.bf16.xpose.msra.mxu0 0
      %540 = vmatprep.subr.bf16.mxu0 0
      %541 = vmatpush1.bf16.xpose.msra.mxu0 0
      %542 = vmatprep.subr.bf16.mxu0 0
      %543 = vmatpush1.bf16.xpose.msra.mxu0 0
      %544 = vmatprep.subr.bf16.mxu0 0
      %545 = vmatpush1.bf16.xpose.msra.mxu0 0
      %546 = vmatprep.subr.bf16.mxu0 0
      %547 = vmatpush1.bf16.xpose.msra.mxu0 0
      %548 = vmatprep.subr.bf16.mxu0 0
      %549 = vmatpush1.bf16.xpose.msra.mxu0 0
      %550 = vmatprep.subr.bf16.mxu0 0
      %551 = vmatpush1.bf16.xpose.msra.mxu0 %v534
      %552 = vmatprep.subr.bf16.mxu0 0
      %553 = vmatpush2.bf16.xpose.msra.mxu0 0
      %554 = vmatprep.subr.bf16.mxu0 0
      %555 = vmatpush2.bf16.xpose.msra.mxu0 0
      %556 = vmatprep.subr.bf16.mxu0 0
      %557 = vmatpush2.bf16.xpose.msra.mxu0 0
      %558 = vmatprep.subr.bf16.mxu0 0
      %559 = vmatpush2.bf16.xpose.msra.mxu0 0
      %560 = vmatprep.subr.bf16.mxu0 0
      %561 = vmatpush2.bf16.xpose.msra.mxu0 0
      %562 = vmatprep.subr.bf16.mxu0 0
      %563 = vmatpush2.bf16.xpose.msra.mxu0 0
      %564 = vmatprep.subr.bf16.mxu0 0
      %565 = vmatpush2.bf16.xpose.msra.mxu0 0
      %566 = vmatprep.subr.bf16.mxu0 0
      %567 = vmatpush2.bf16.xpose.msra.mxu0 0
      %568 = vmatprep.mubr.bf16.mxu0 0
      %569 = vmatmul.mubr.bf16.gmra.mxu0 %v531
      %v570 = vpop.f32.mrf.mxu0
      %v571 = vadd.f32 %v522, %v570
      %v572 = vpop.f32.mrf.mxu0
      %v573 = vpop.f32.mrf.mxu0
      %v574 = vadd.f32 %v523, %v573
      %v575 = vpop.f32.mrf.mxu0
      %576 = vdwg.mxu0
      %v577 = vmul.f32 %v571, 0.35355338
      %v578 = vmul.f32 %v574, 0.35355338
      %s579 = scalar_lea.vmem [#allocation2], 16
      %v580 = vld [vmem:[%s579] sm:$0xff]
      %v581 = vld [vmem:[%s579 + $0x8] sm:$0xff]
      %v582 = vsel %vm401, %v577, -inf
      %583 = vmax.xlane.f32.xlu0 %v582
      %v584 = vpop.xlane.xlu0 %583
      %v585 = vsel %vm401, %v578, -inf
      %586 = vmax.xlane.f32.xlu0 %v585
      %v587 = vpop.xlane.xlu0 %586
      %v588 = vmax.f32 %v580, %v584
      %v589 = vmax.f32 %v581, %v587
      %v590 = vsub.f32 %v580, %v588
      %v591 = vsub.f32 %v581, %v589
      %v592 = vmul.f32 %v590, 1.442695
      %v593 = vpow.pop %v592
      %v594 = vmul.f32 %v591, 1.442695
      %v595 = vpow.pop %v594
      %597 = vset.pattern.permute.xlu0 0
      %598 = vperm.xlu0 %597, %v588
      %v599 = vpop.permute.xlu0 %598
      %602 = vset.pattern.permute.xlu0 0
      %603 = vperm.xlu0 %602, %v589
      %v604 = vpop.permute.xlu0 %603
      %v606 = vsub.f32 %v577, %v599
      %v607 = vsub.f32 %v578, %v604
      %v608 = vmul.f32 %v606, 1.442695
      %v609 = vpow.pop %v608
      %v610 = vmul.f32 %v607, 1.442695
      %v611 = vpow.pop %v610
      %s612 = scalar_lea.vmem [#allocation3], 16
      %v613 = vld [vmem:[%s612] sm:$0xff]
      %v614 = vld [vmem:[%s612 + $0x8] sm:$0xff]
      %v615 = vmul.f32 %v593, %v613
      %v616 = vmul.f32 %v595, %v614
      %v617 = vsel %vm401, %v609, 0.0
      %618 = vadd.xlane.f32.xlu0 %v617
      %v619 = vpop.xlane.xlu0 %618
      %v620 = vsel %vm401, %v611, 0.0
      %621 = vadd.xlane.f32.xlu0 %v620
      %v622 = vpop.xlane.xlu0 %621
      %v623 = vadd.f32 %v615, %v619
      %v624 = vadd.f32 %v616, %v622
      %625 = vst.msk [vmem:[%s612] sm:$0xff] %vm444, %v623
      %626 = vst.msk [vmem:[%s612 + $0x8] sm:$0xff] %vm444, %v624
      %v627 = vpack.c.bf16 %v611, %v609
      %629 = vrot.lane.b32.xlu0 %v520, 120
      %v630 = vpop.permute.xlu0 %629
      %v633 = vsel %vm401, %v627, 0
      %635 = vmatprep.subr.bf16.mxu0 0
      %636 = vmatpush1.bf16.msra.mxu0 0
      %637 = vmatprep.subr.bf16.mxu0 0
      %638 = vmatpush1.bf16.msra.mxu0 0
      %639 = vmatprep.subr.bf16.mxu0 0
      %640 = vmatpush1.bf16.msra.mxu0 0
      %641 = vmatprep.subr.bf16.mxu0 0
      %642 = vmatpush1.bf16.msra.mxu0 0
      %643 = vmatprep.subr.bf16.mxu0 0
      %644 = vmatpush1.bf16.msra.mxu0 0
      %645 = vmatprep.subr.bf16.mxu0 0
      %646 = vmatpush1.bf16.msra.mxu0 0
      %647 = vmatprep.subr.bf16.mxu0 0
      %648 = vmatpush1.bf16.msra.mxu0 0
      %649 = vmatprep.subr.bf16.mxu0 0
      %650 = vmatpush1.bf16.msra.mxu0 %v630
      %651 = vmatprep.subr.bf16.mxu0 0
      %652 = vmatpush2.bf16.msra.mxu0 0
      %653 = vmatprep.subr.bf16.mxu0 0
      %654 = vmatpush2.bf16.msra.mxu0 0
      %655 = vmatprep.subr.bf16.mxu0 0
      %656 = vmatpush2.bf16.msra.mxu0 0
      %657 = vmatprep.subr.bf16.mxu0 0
      %658 = vmatpush2.bf16.msra.mxu0 0
      %659 = vmatprep.subr.bf16.mxu0 0
      %660 = vmatpush2.bf16.msra.mxu0 0
      %661 = vmatprep.subr.bf16.mxu0 0
      %662 = vmatpush2.bf16.msra.mxu0 0
      %663 = vmatprep.subr.bf16.mxu0 0
      %664 = vmatpush2.bf16.msra.mxu0 0
      %665 = vmatprep.subr.bf16.mxu0 0
      %666 = vmatpush2.bf16.msra.mxu0 0
      %667 = vmatprep.mubr.bf16.mxu0 0
      %668 = vmatmul.mubr.bf16.gmra.mxu0 %v633
      %v669 = vpop.f32.mrf.mxu0
      %v670 = vadd.f32 0.0, %v669
      %v671 = vpop.f32.mrf.mxu0
      %v672 = vpop.f32.mrf.mxu0
      %v673 = vadd.f32 0.0, %v672
      %v674 = vpop.f32.mrf.mxu0
      %675 = vdwg.mxu0
      %v676 = vld [vmem:[#allocation4] sm:$0xff]
      %v677 = vld [vmem:[#allocation4 + $0x8] sm:$0xff]
      %679 = vset.pattern.permute.xlu0 0
      %680 = vperm.xlu0 %679, %v593
      %v681 = vpop.permute.xlu0 %680
      %684 = vset.pattern.permute.xlu0 0
      %685 = vperm.xlu0 %684, %v595
      %v686 = vpop.permute.xlu0 %685
      %v688 = vmul.f32 %v681, %v676
      %v689 = vmul.f32 %v686, %v677
      %692 = vrot.lane.b32.xlu0 %v670, 8
      %v693 = vpop.permute.xlu0 %692
      %694 = vrot.lane.b32.xlu0 %v673, 8
      %v695 = vpop.permute.xlu0 %694
      %v698 = vadd.f32 %v688, %v693
      %v699 = vadd.f32 %v689, %v695
      %vm700 = vcmask 130112
      %701 = vst.msk [vmem:[#allocation4] sm:$0xff] %vm700, %v698
      %702 = vst.msk [vmem:[#allocation4 + $0x8] sm:$0xff] %vm700, %v699
      %703 = vst.msk [vmem:[%s579] sm:$0xff] %vm444, %v588
      %704 = vst.msk [vmem:[%s579 + $0x8] sm:$0xff] %vm444, %v589
      %v705 = vld [vmem:[%s279] sm:$0xff]
      %v706 = vld [vmem:[%s279 + $0x8] sm:$0xff]
      %v707 = vpack.c.bf16 %v706, %v705
      %v708 = vld [vmem:[%s288] sm:$0xff]
      %v709 = vld [vmem:[%s288 + $0x8] sm:$0xff]
      %v710 = vpack.c.bf16 %v709, %v708
      %v711 = vld [vmem:[%s298] sm:$0xff]
      %v712 = vld [vmem:[%s298 + $0x8] sm:$0xff]
      %v713 = vpack.c.bf16 %v712, %v711
      %s714 = scalar_lea.vmem %s307, 32
      %v715 = vld [vmem:[%s714] sm:$0xff]
      %v716 = vld [vmem:[%s714 + $0x8] sm:$0xff]
      %718 = vrot.lane.b32.xlu0 %v707, 112
      %v719 = vpop.permute.xlu0 %718
      %721 = vrot.lane.b32.xlu0 %v710, 112
      %v722 = vpop.permute.xlu0 %721
      %v724 = vsel %vm349, %v719, 0
      %v727 = vsel %vm349, %v722, 0
      %729 = vmatprep.subr.bf16.mxu0 0
      %730 = vmatpush1.bf16.xpose.msra.mxu0 0
      %731 = vmatprep.subr.bf16.mxu0 0
      %732 = vmatpush1.bf16.xpose.msra.mxu0 0
      %733 = vmatprep.subr.bf16.mxu0 0
      %734 = vmatpush1.bf16.xpose.msra.mxu0 0
      %735 = vmatprep.subr.bf16.mxu0 0
      %736 = vmatpush1.bf16.xpose.msra.mxu0 0
      %737 = vmatprep.subr.bf16.mxu0 0
      %738 = vmatpush1.bf16.xpose.msra.mxu0 0
      %739 = vmatprep.subr.bf16.mxu0 0
      %740 = vmatpush1.bf16.xpose.msra.mxu0 0
      %741 = vmatprep.subr.bf16.mxu0 0
      %742 = vmatpush1.bf16.xpose.msra.mxu0 0
      %743 = vmatprep.subr.bf16.mxu0 0
      %744 = vmatpush1.bf16.xpose.msra.mxu0 %v727
      %745 = vmatprep.subr.bf16.mxu0 0
      %746 = vmatpush2.bf16.xpose.msra.mxu0 0
      %747 = vmatprep.subr.bf16.mxu0 0
      %748 = vmatpush2.bf16.xpose.msra.mxu0 0
      %749 = vmatprep.subr.bf16.mxu0 0
      %750 = vmatpush2.bf16.xpose.msra.mxu0 0
      %751 = vmatprep.subr.bf16.mxu0 0
      %752 = vmatpush2.bf16.xpose.msra.mxu0 0
      %753 = vmatprep.subr.bf16.mxu0 0
      %754 = vmatpush2.bf16.xpose.msra.mxu0 0
      %755 = vmatprep.subr.bf16.mxu0 0
      %756 = vmatpush2.bf16.xpose.msra.mxu0 0
      %757 = vmatprep.subr.bf16.mxu0 0
      %758 = vmatpush2.bf16.xpose.msra.mxu0 0
      %759 = vmatprep.subr.bf16.mxu0 0
      %760 = vmatpush2.bf16.xpose.msra.mxu0 0
      %761 = vmatprep.mubr.bf16.mxu0 0
      %762 = vmatmul.mubr.bf16.gmra.mxu0 %v724
      %v763 = vpop.f32.mrf.mxu0
      %v764 = vadd.f32 %v715, %v763
      %v765 = vpop.f32.mrf.mxu0
      %v766 = vpop.f32.mrf.mxu0
      %v767 = vadd.f32 %v716, %v766
      %v768 = vpop.f32.mrf.mxu0
      %769 = vdwg.mxu0
      %v770 = vmul.f32 %v764, 0.35355338
      %v771 = vmul.f32 %v767, 0.35355338
      %s772 = scalar_lea.vmem [#allocation2], 32
      %v773 = vld [vmem:[%s772] sm:$0xff]
      %v774 = vld [vmem:[%s772 + $0x8] sm:$0xff]
      %v775 = vsel %vm401, %v770, -inf
      %776 = vmax.xlane.f32.xlu0 %v775
      %v777 = vpop.xlane.xlu0 %776
      %v778 = vsel %vm401, %v771, -inf
      %779 = vmax.xlane.f32.xlu0 %v778
      %v780 = vpop.xlane.xlu0 %779
      %v781 = vmax.f32 %v773, %v777
      %v782 = vmax.f32 %v774, %v780
      %v783 = vsub.f32 %v773, %v781
      %v784 = vsub.f32 %v774, %v782
      %v785 = vmul.f32 %v783, 1.442695
      %v786 = vpow.pop %v785
      %v787 = vmul.f32 %v784, 1.442695
      %v788 = vpow.pop %v787
      %790 = vset.pattern.permute.xlu0 0
      %791 = vperm.xlu0 %790, %v781
      %v792 = vpop.permute.xlu0 %791
      %795 = vset.pattern.permute.xlu0 0
      %796 = vperm.xlu0 %795, %v782
      %v797 = vpop.permute.xlu0 %796
      %v799 = vsub.f32 %v770, %v792
      %v800 = vsub.f32 %v771, %v797
      %v801 = vmul.f32 %v799, 1.442695
      %v802 = vpow.pop %v801
      %v803 = vmul.f32 %v800, 1.442695
      %v804 = vpow.pop %v803
      %s805 = scalar_lea.vmem [#allocation3], 32
      %v806 = vld [vmem:[%s805] sm:$0xff]
      %v807 = vld [vmem:[%s805 + $0x8] sm:$0xff]
      %v808 = vmul.f32 %v786, %v806
      %v809 = vmul.f32 %v788, %v807
      %v810 = vsel %vm401, %v802, 0.0
      %811 = vadd.xlane.f32.xlu0 %v810
      %v812 = vpop.xlane.xlu0 %811
      %v813 = vsel %vm401, %v804, 0.0
      %814 = vadd.xlane.f32.xlu0 %v813
      %v815 = vpop.xlane.xlu0 %814
      %v816 = vadd.f32 %v808, %v812
      %v817 = vadd.f32 %v809, %v815
      %818 = vst.msk [vmem:[%s805] sm:$0xff] %vm444, %v816
      %819 = vst.msk [vmem:[%s805 + $0x8] sm:$0xff] %vm444, %v817
      %v820 = vpack.c.bf16 %v804, %v802
      %822 = vrot.lane.b32.xlu0 %v713, 112
      %v823 = vpop.permute.xlu0 %822
      %v826 = vsel %vm401, %v820, 0
      %828 = vmatprep.subr.bf16.mxu0 0
      %829 = vmatpush1.bf16.msra.mxu0 0
      %830 = vmatprep.subr.bf16.mxu0 0
      %831 = vmatpush1.bf16.msra.mxu0 0
      %832 = vmatprep.subr.bf16.mxu0 0
      %833 = vmatpush1.bf16.msra.mxu0 0
      %834 = vmatprep.subr.bf16.mxu0 0
      %835 = vmatpush1.bf16.msra.mxu0 0
      %836 = vmatprep.subr.bf16.mxu0 0
      %837 = vmatpush1.bf16.msra.mxu0 0
      %838 = vmatprep.subr.bf16.mxu0 0
      %839 = vmatpush1.bf16.msra.mxu0 0
      %840 = vmatprep.subr.bf16.mxu0 0
      %841 = vmatpush1.bf16.msra.mxu0 0
      %842 = vmatprep.subr.bf16.mxu0 0
      %843 = vmatpush1.bf16.msra.mxu0 %v823
      %844 = vmatprep.subr.bf16.mxu0 0
      %845 = vmatpush2.bf16.msra.mxu0 0
      %846 = vmatprep.subr.bf16.mxu0 0
      %847 = vmatpush2.bf16.msra.mxu0 0
      %848 = vmatprep.subr.bf16.mxu0 0
      %849 = vmatpush2.bf16.msra.mxu0 0
      %850 = vmatprep.subr.bf16.mxu0 0
      %851 = vmatpush2.bf16.msra.mxu0 0
      %852 = vmatprep.subr.bf16.mxu0 0
      %853 = vmatpush2.bf16.msra.mxu0 0
      %854 = vmatprep.subr.bf16.mxu0 0
      %855 = vmatpush2.bf16.msra.mxu0 0
      %856 = vmatprep.subr.bf16.mxu0 0
      %857 = vmatpush2.bf16.msra.mxu0 0
      %858 = vmatprep.subr.bf16.mxu0 0
      %859 = vmatpush2.bf16.msra.mxu0 0
      %860 = vmatprep.mubr.bf16.mxu0 0
      %861 = vmatmul.mubr.bf16.gmra.mxu0 %v826
      %v862 = vpop.f32.mrf.mxu0
      %v863 = vadd.f32 0.0, %v862
      %v864 = vpop.f32.mrf.mxu0
      %v865 = vpop.f32.mrf.mxu0
      %v866 = vadd.f32 0.0, %v865
      %v867 = vpop.f32.mrf.mxu0
      %868 = vdwg.mxu0
      %v869 = vld [vmem:[#allocation4] sm:$0xff]
      %v870 = vld [vmem:[#allocation4 + $0x8] sm:$0xff]
      %872 = vset.pattern.permute.xlu0 0
      %873 = vperm.xlu0 %872, %v786
      %v874 = vpop.permute.xlu0 %873
      %877 = vset.pattern.permute.xlu0 0
      %878 = vperm.xlu0 %877, %v788
      %v879 = vpop.permute.xlu0 %878
      %v881 = vmul.f32 %v874, %v869
      %v882 = vmul.f32 %v879, %v870
      %885 = vrot.lane.b32.xlu0 %v863, 16
      %v886 = vpop.permute.xlu0 %885
      %887 = vrot.lane.b32.xlu0 %v866, 16
      %v888 = vpop.permute.xlu0 %887
      %v891 = vadd.f32 %v881, %v886
      %v892 = vadd.f32 %v882, %v888
      %vm893 = vcmask 195712
      %894 = vst.msk [vmem:[#allocation4] sm:$0xff] %vm893, %v891
      %895 = vst.msk [vmem:[#allocation4 + $0x8] sm:$0xff] %vm893, %v892
      %896 = vst.msk [vmem:[%s772] sm:$0xff] %vm444, %v781
      %897 = vst.msk [vmem:[%s772 + $0x8] sm:$0xff] %vm444, %v782
      %v898 = vld [vmem:[%s279] sm:$0xff]
      %v899 = vld [vmem:[%s279 + $0x8] sm:$0xff]
      %v900 = vpack.c.bf16 %v899, %v898
      %v901 = vld [vmem:[%s288] sm:$0xff]
      %v902 = vld [vmem:[%s288 + $0x8] sm:$0xff]
      %v903 = vpack.c.bf16 %v902, %v901
      %v904 = vld [vmem:[%s298] sm:$0xff]
      %v905 = vld [vmem:[%s298 + $0x8] sm:$0xff]
      %v906 = vpack.c.bf16 %v905, %v904
      %s907 = scalar_lea.vmem %s307, 48
      %v908 = vld [vmem:[%s907] sm:$0xff]
      %v909 = vld [vmem:[%s907 + $0x8] sm:$0xff]
      %911 = vrot.lane.b32.xlu0 %v900, 104
      %v912 = vpop.permute.xlu0 %911
      %914 = vrot.lane.b32.xlu0 %v903, 104
      %v915 = vpop.permute.xlu0 %914
      %v917 = vsel %vm349, %v912, 0
      %v920 = vsel %vm349, %v915, 0
      %922 = vmatprep.subr.bf16.mxu0 0
      %923 = vmatpush1.bf16.xpose.msra.mxu0 0
      %924 = vmatprep.subr.bf16.mxu0 0
      %925 = vmatpush1.bf16.xpose.msra.mxu0 0
      %926 = vmatprep.subr.bf16.mxu0 0
      %927 = vmatpush1.bf16.xpose.msra.mxu0 0
      %928 = vmatprep.subr.bf16.mxu0 0
      %929 = vmatpush1.bf16.xpose.msra.mxu0 0
      %930 = vmatprep.subr.bf16.mxu0 0
      %931 = vmatpush1.bf16.xpose.msra.mxu0 0
      %932 = vmatprep.subr.bf16.mxu0 0
      %933 = vmatpush1.bf16.xpose.msra.mxu0 0
      %934 = vmatprep.subr.bf16.mxu0 0
      %935 = vmatpush1.bf16.xpose.msra.mxu0 0
      %936 = vmatprep.subr.bf16.mxu0 0
      %937 = vmatpush1.bf16.xpose.msra.mxu0 %v920
      %938 = vmatprep.subr.bf16.mxu0 0
      %939 = vmatpush2.bf16.xpose.msra.mxu0 0
      %940 = vmatprep.subr.bf16.mxu0 0
      %941 = vmatpush2.bf16.xpose.msra.mxu0 0
      %942 = vmatprep.subr.bf16.mxu0 0
      %943 = vmatpush2.bf16.xpose.msra.mxu0 0
      %944 = vmatprep.subr.bf16.mxu0 0
      %945 = vmatpush2.bf16.xpose.msra.mxu0 0
      %946 = vmatprep.subr.bf16.mxu0 0
      %947 = vmatpush2.bf16.xpose.msra.mxu0 0
      %948 = vmatprep.subr.bf16.mxu0 0
      %949 = vmatpush2.bf16.xpose.msra.mxu0 0
      %950 = vmatprep.subr.bf16.mxu0 0
      %951 = vmatpush2.bf16.xpose.msra.mxu0 0
      %952 = vmatprep.subr.bf16.mxu0 0
      %953 = vmatpush2.bf16.xpose.msra.mxu0 0
      %954 = vmatprep.mubr.bf16.mxu0 0
      %955 = vmatmul.mubr.bf16.gmra.mxu0 %v917
      %v956 = vpop.f32.mrf.mxu0
      %v957 = vadd.f32 %v908, %v956
      %v958 = vpop.f32.mrf.mxu0
      %v959 = vpop.f32.mrf.mxu0
      %v960 = vadd.f32 %v909, %v959
      %v961 = vpop.f32.mrf.mxu0
      %962 = vdwg.mxu0
      %v963 = vmul.f32 %v957, 0.35355338
      %v964 = vmul.f32 %v960, 0.35355338
      %s965 = scalar_lea.vmem [#allocation2], 48
      %v966 = vld [vmem:[%s965] sm:$0xff]
      %v967 = vld [vmem:[%s965 + $0x8] sm:$0xff]
      %v968 = vsel %vm401, %v963, -inf
      %969 = vmax.xlane.f32.xlu0 %v968
      %v970 = vpop.xlane.xlu0 %969
      %v971 = vsel %vm401, %v964, -inf
      %972 = vmax.xlane.f32.xlu0 %v971
      %v973 = vpop.xlane.xlu0 %972
      %v974 = vmax.f32 %v966, %v970
      %v975 = vmax.f32 %v967, %v973
      %v976 = vsub.f32 %v966, %v974
      %v977 = vsub.f32 %v967, %v975
      %v978 = vmul.f32 %v976, 1.442695
      %v979 = vpow.pop %v978
      %v980 = vmul.f32 %v977, 1.442695
      %v981 = vpow.pop %v980
      %983 = vset.pattern.permute.xlu0 0
      %984 = vperm.xlu0 %983, %v974
      %v985 = vpop.permute.xlu0 %984
      %988 = vset.pattern.permute.xlu0 0
      %989 = vperm.xlu0 %988, %v975
      %v990 = vpop.permute.xlu0 %989
      %v992 = vsub.f32 %v963, %v985
      %v993 = vsub.f32 %v964, %v990
      %v994 = vmul.f32 %v992, 1.442695
      %v995 = vpow.pop %v994
      %v996 = vmul.f32 %v993, 1.442695
      %v997 = vpow.pop %v996
      %s998 = scalar_lea.vmem [#allocation3], 48
      %v999 = vld [vmem:[%s998] sm:$0xff]
      %v1000 = vld [vmem:[%s998 + $0x8] sm:$0xff]
      %v1001 = vmul.f32 %v979, %v999
      %v1002 = vmul.f32 %v981, %v1000
      %v1003 = vsel %vm401, %v995, 0.0
      %1004 = vadd.xlane.f32.xlu0 %v1003
      %v1005 = vpop.xlane.xlu0 %1004
      %v1006 = vsel %vm401, %v997, 0.0
      %1007 = vadd.xlane.f32.xlu0 %v1006
      %v1008 = vpop.xlane.xlu0 %1007
      %v1009 = vadd.f32 %v1001, %v1005
      %v1010 = vadd.f32 %v1002, %v1008
      %1011 = vst.msk [vmem:[%s998] sm:$0xff] %vm444, %v1009
      %1012 = vst.msk [vmem:[%s998 + $0x8] sm:$0xff] %vm444, %v1010
      %v1013 = vpack.c.bf16 %v997, %v995
      %1015 = vrot.lane.b32.xlu0 %v906, 104
      %v1016 = vpop.permute.xlu0 %1015
      %v1019 = vsel %vm401, %v1013, 0
      %1021 = vmatprep.subr.bf16.mxu0 0
      %1022 = vmatpush1.bf16.msra.mxu0 0
      %1023 = vmatprep.subr.bf16.mxu0 0
      %1024 = vmatpush1.bf16.msra.mxu0 0
      %1025 = vmatprep.subr.bf16.mxu0 0
      %1026 = vmatpush1.bf16.msra.mxu0 0
      %1027 = vmatprep.subr.bf16.mxu0 0
      %1028 = vmatpush1.bf16.msra.mxu0 0
      %1029 = vmatprep.subr.bf16.mxu0 0
      %1030 = vmatpush1.bf16.msra.mxu0 0
      %1031 = vmatprep.subr.bf16.mxu0 0
      %1032 = vmatpush1.bf16.msra.mxu0 0
      %1033 = vmatprep.subr.bf16.mxu0 0
      %1034 = vmatpush1.bf16.msra.mxu0 0
      %1035 = vmatprep.subr.bf16.mxu0 0
      %1036 = vmatpush1.bf16.msra.mxu0 %v1016
      %1037 = vmatprep.subr.bf16.mxu0 0
      %1038 = vmatpush2.bf16.msra.mxu0 0
      %1039 = vmatprep.subr.bf16.mxu0 0
      %1040 = vmatpush2.bf16.msra.mxu0 0
      %1041 = vmatprep.subr.bf16.mxu0 0
      %1042 = vmatpush2.bf16.msra.mxu0 0
      %1043 = vmatprep.subr.bf16.mxu0 0
      %1044 = vmatpush2.bf16.msra.mxu0 0
      %1045 = vmatprep.subr.bf16.mxu0 0
      %1046 = vmatpush2.bf16.msra.mxu0 0
      %1047 = vmatprep.subr.bf16.mxu0 0
      %1048 = vmatpush2.bf16.msra.mxu0 0
      %1049 = vmatprep.subr.bf16.mxu0 0
      %1050 = vmatpush2.bf16.msra.mxu0 0
      %1051 = vmatprep.subr.bf16.mxu0 0
      %1052 = vmatpush2.bf16.msra.mxu0 0
      %1053 = vmatprep.mubr.bf16.mxu0 0
      %1054 = vmatmul.mubr.bf16.gmra.mxu0 %v1019
      %v1055 = vpop.f32.mrf.mxu0
      %v1056 = vadd.f32 0.0, %v1055
      %v1057 = vpop.f32.mrf.mxu0
      %v1058 = vpop.f32.mrf.mxu0
      %v1059 = vadd.f32 0.0, %v1058
      %v1060 = vpop.f32.mrf.mxu0
      %1061 = vdwg.mxu0
      %v1062 = vld [vmem:[#allocation4] sm:$0xff]
      %v1063 = vld [vmem:[#allocation4 + $0x8] sm:$0xff]
      %1065 = vset.pattern.permute.xlu0 0
      %1066 = vperm.xlu0 %1065, %v979
      %v1067 = vpop.permute.xlu0 %1066
      %1070 = vset.pattern.permute.xlu0 0
      %1071 = vperm.xlu0 %1070, %v981
      %v1072 = vpop.permute.xlu0 %1071
      %v1074 = vmul.f32 %v1067, %v1062
      %v1075 = vmul.f32 %v1072, %v1063
      %1078 = vrot.lane.b32.xlu0 %v1056, 24
      %v1079 = vpop.permute.xlu0 %1078
      %1080 = vrot.lane.b32.xlu0 %v1059, 24
      %v1081 = vpop.permute.xlu0 %1080
      %v1084 = vadd.f32 %v1074, %v1079
      %v1085 = vadd.f32 %v1075, %v1081
      %vm1086 = vcmask 261312
      %1087 = vst.msk [vmem:[#allocation4] sm:$0xff] %vm1086, %v1084
      %1088 = vst.msk [vmem:[#allocation4 + $0x8] sm:$0xff] %vm1086, %v1085
      %1089 = vst.msk [vmem:[%s965] sm:$0xff] %vm444, %v974
      %1090 = vst.msk [vmem:[%s965 + $0x8] sm:$0xff] %vm444, %v975
      // Predicated region
      $region41: #{encoder_layer_forward.6} parent=35 // pred_check
        %p1091 = pneg %p314
      $region42: #{encoder_layer_forward.6} parent=35 // pred_check_branch
        %1093 = sbr.rel (%p1091) target = $region44
      $region43: #{encoder_layer_forward.6} parent=35 // pred_region
        %v1094 = vld [vmem:[#allocation3] sm:$0xff]
        %v1095 = vld [vmem:[#allocation3 + $0x8] sm:$0xff]
        %v1096 = vrcp.pop %v1094
        %v1097 = vrcp.pop %v1095
        %v1098 = vld [vmem:[#allocation4] sm:$0xff]
        %v1099 = vld [vmem:[#allocation4 + $0x8] sm:$0xff]
        %1101 = vset.pattern.permute.xlu0 0
        %1102 = vperm.xlu0 %1101, %v1096
        %v1103 = vpop.permute.xlu0 %1102
        %1106 = vset.pattern.permute.xlu0 0
        %1107 = vperm.xlu0 %1106, %v1097
        %v1108 = vpop.permute.xlu0 %1107
        %v1110 = vmul.f32 %v1098, %v1103
        %v1111 = vmul.f32 %v1099, %v1108
        %1112 = vst.msk [vmem:[%s312] sm:$0xff] %vm349, %v1110
        %1113 = vst.msk [vmem:[%s312 + $0x8] sm:$0xff] %vm349, %v1111
        %v1114 = vld [vmem:[%s612] sm:$0xff]
        %v1115 = vld [vmem:[%s612 + $0x8] sm:$0xff]
        %v1116 = vrcp.pop %v1114
        %v1117 = vrcp.pop %v1115
        %v1118 = vld [vmem:[#allocation4] sm:$0xff]
        %v1119 = vld [vmem:[#allocation4 + $0x8] sm:$0xff]
        %1121 = vset.pattern.permute.xlu0 0
        %1122 = vperm.xlu0 %1121, %v1116
        %v1123 = vpop.permute.xlu0 %1122
        %1126 = vset.pattern.permute.xlu0 0
        %1127 = vperm.xlu0 %1126, %v1117
        %v1128 = vpop.permute.xlu0 %1127
        %v1130 = vmul.f32 %v1118, %v1123
        %v1131 = vmul.f32 %v1119, %v1128
        %1132 = vst.msk [vmem:[%s312] sm:$0xff] %vm700, %v1130
        %1133 = vst.msk [vmem:[%s312 + $0x8] sm:$0xff] %vm700, %v1131
        %v1134 = vld [vmem:[%s805] sm:$0xff]
        %v1135 = vld [vmem:[%s805 + $0x8] sm:$0xff]
        %v1136 = vrcp.pop %v1134
        %v1137 = vrcp.pop %v1135
        %v1138 = vld [vmem:[#allocation4] sm:$0xff]
        %v1139 = vld [vmem:[#allocation4 + $0x8] sm:$0xff]
        %1141 = vset.pattern.permute.xlu0 0
        %1142 = vperm.xlu0 %1141, %v1136
        %v1143 = vpop.permute.xlu0 %1142
        %1146 = vset.pattern.permute.xlu0 0
        %1147 = vperm.xlu0 %1146, %v1137
        %v1148 = vpop.permute.xlu0 %1147
        %v1150 = vmul.f32 %v1138, %v1143
        %v1151 = vmul.f32 %v1139, %v1148
        %1152 = vst.msk [vmem:[%s312] sm:$0xff] %vm893, %v1150
        %1153 = vst.msk [vmem:[%s312 + $0x8] sm:$0xff] %vm893, %v1151
        %v1154 = vld [vmem:[%s998] sm:$0xff]
        %v1155 = vld [vmem:[%s998 + $0x8] sm:$0xff]
        %v1156 = vrcp.pop %v1154
        %v1157 = vrcp.pop %v1155
        %v1158 = vld [vmem:[#allocation4] sm:$0xff]
        %v1159 = vld [vmem:[#allocation4 + $0x8] sm:$0xff]
        %1161 = vset.pattern.permute.xlu0 0
        %1162 = vperm.xlu0 %1161, %v1156
        %v1163 = vpop.permute.xlu0 %1162
        %1166 = vset.pattern.permute.xlu0 0
        %1167 = vperm.xlu0 %1166, %v1157
        %v1168 = vpop.permute.xlu0 %1167
        %v1170 = vmul.f32 %v1158, %v1163
        %v1171 = vmul.f32 %v1159, %v1168
        %1172 = vst.msk [vmem:[%s312] sm:$0xff] %vm1086, %v1170
        %1173 = vst.msk [vmem:[%s312 + $0x8] sm:$0xff] %vm1086, %v1171
      $region44: #{encoder_layer_forward.6} parent=35 // pred_fallthru
        _
      %p1174 = scmp.lt.s32.totalorder %s19, 1
      %s1175 = scalar_select %p1174, %s19, 1
      %s1176 = smul.addr %s1175, 2
      %s1177 = smul.addr %s1176, 8
      %s1178 = scalar_lea.vmem %s4, %s1177
      // Predicated region
      $region45: #{encoder_layer_forward.6} parent=35 // pred_check
        %p1179 = pneg %p155
      $region46: #{encoder_layer_forward.6} parent=35 // pred_check_branch
        %1181 = sbr.rel (%p1179) target = $region48
      $region47: #{encoder_layer_forward.6} parent=35 // pred_region
        _
      $region48: #{encoder_layer_forward.6} parent=35 // pred_fallthru
        _
    $region36: #{encoder_layer_forward.6} parent=5 // pred_fallthru
      _
    %p1182 = scmp.le.s32.totalorder 2, %s10
    // Predicated region
    $region49: #{encoder_layer_forward.6} parent=5 // pred_check
      %p1183 = pneg %p1182
    $region50: #{encoder_layer_forward.6} parent=5 // pred_check_branch
      %1185 = sbr.rel (%p1183) target = $region52
    $region51: #{encoder_layer_forward.6} parent=5 // pred_region
      %s1186 = ssub.s32 %s10, 2
      // Predicated region
      $region53: #{encoder_layer_forward.6} parent=51 // pred_check
        %p1187 = pneg %p161
      $region54: #{encoder_layer_forward.6} parent=51 // pred_check_branch
        %1189 = sbr.rel (%p1187) target = $region56
      $region55: #{encoder_layer_forward.6} parent=51 // pred_region
        %p1190 = scmp.lt.s32.totalorder %s21, 1
        %s1191 = scalar_select %p1190, %s21, 1
        %s1192 = smul.addr %s1191, 2
        %s1193 = smul.addr %s1192, 8
        %s1194 = scalar_lea.vmem %s4, %s1193
      $region56: #{encoder_layer_forward.6} parent=51 // pred_fallthru
        _
    $region52: #{encoder_layer_forward.6} parent=5 // pred_fallthru
      _
  $region6: #{encoder_layer_forward.6} parent=0 // loop_footer
    %s14 = sadd.s32 1, %s10
  $region7: #{encoder_layer_forward.6} parent=0 // loop_footer_branch
    %9 = sbr.rel target = $region3
  $region8: #{encoder_layer_forward.6} parent=0 // loop_exit
    _

// kernel: encoder_layer_forward.7
$region0: #{encoder_layer_forward.7}
  #allocation0 [shape = 'u32[]', space=smem, size = 0x4, offset = 0x4, fixed_abs, tag = 'smem constant byte address 0x4 - core index']
  #allocation1 [shape = 'u32[144,128]{1,0:T(1,128)}', space=vmem, size = 0x12000, scoped, tag = 'internal scratch']
  %s0 = inlined_call_operand.vmem [shape: f32[32,32], index: 0, kind: input, shape index: {}]
  %s1 = inlined_call_operand.vmem [shape: f32[32,32], index: 1, kind: input, shape index: {}]
  %s2 = inlined_call_operand.vmem [shape: f32[1,32], index: 2, kind: input, shape index: {}]
  %s3 = inlined_call_operand.vmem [shape: f32[1,32], index: 3, kind: input, shape index: {}]
  %s4 = inlined_call_operand.vmem [shape: bf16[32,64], index: 4, kind: input, shape index: {}]
  %s5 = inlined_call_operand.vmem [shape: f32[1,64], index: 5, kind: input, shape index: {}]
  %s6 = inlined_call_operand.vmem [shape: bf16[64,32], index: 6, kind: input, shape index: {}]
  %s7 = inlined_call_operand.vmem [shape: f32[1,32], index: 7, kind: input, shape index: {}]
  %s8 = inlined_call_operand.vmem [shape: f32[1,32], index: 8, kind: input, shape index: {}]
  %s9 = inlined_call_operand.vmem [shape: f32[1,32], index: 9, kind: input, shape index: {}]
  %s10 = inlined_call_operand.hbm [shape: f32[32,32], index: 10, kind: output, shape index: {}]
  %s11 = sld [smem:[#allocation0]]
  $region50: #{encoder_layer_forward.7} parent=0
    _
  %s13 = ssub.s32 1, %s11
  %s14 = scalar_select 0, %s13, %s11
  $region1: #{encoder_layer_forward.7} parent=0
    #allocation2 [shape = 'u8[16384]{0}', space=vmem, size = 0x4000, scoped, tag = 'output window, operand 0, single buffered']
    #allocation3 [shape = 's32[1]{0}', space=sflag, size = 0x4, scoped, tag = 'scoped memory for encoder_layer_forward.7']
    %15 = vsyncpa [#allocation3], 0
    // Predicated region
    $region2: #{encoder_layer_forward.7} parent=1 // pred_check
      _
    $region3: #{encoder_layer_forward.7} parent=1 // pred_check_branch
      %17 = sbr.rel (0) target = $region5
    $region4: #{encoder_layer_forward.7} parent=1 // pred_region
      _
    $region5: #{encoder_layer_forward.7} parent=1 // pred_fallthru
      _
    // Predicated region
    $region6: #{encoder_layer_forward.7} parent=1 // pred_check
      _
    $region7: #{encoder_layer_forward.7} parent=1 // pred_check_branch
      %19 = sbr.rel (0) target = $region9
    $region8: #{encoder_layer_forward.7} parent=1 // pred_region
      _
    $region9: #{encoder_layer_forward.7} parent=1 // pred_fallthru
      _
    // Predicated region
    $region10: #{encoder_layer_forward.7} parent=1 // pred_check
      _
    $region11: #{encoder_layer_forward.7} parent=1 // pred_check_branch
      %21 = sbr.rel (0) target = $region13
    $region12: #{encoder_layer_forward.7} parent=1 // pred_region
      _
    $region13: #{encoder_layer_forward.7} parent=1 // pred_fallthru
      _
    // Predicated region
    $region14: #{encoder_layer_forward.7} parent=1 // pred_check
      _
    $region15: #{encoder_layer_forward.7} parent=1 // pred_check_branch
      %23 = sbr.rel (0) target = $region17
    $region16: #{encoder_layer_forward.7} parent=1 // pred_region
      _
    $region17: #{encoder_layer_forward.7} parent=1 // pred_fallthru
      _
    // Predicated region
    $region18: #{encoder_layer_forward.7} parent=1 // pred_check
      _
    $region19: #{encoder_layer_forward.7} parent=1 // pred_check_branch
      %25 = sbr.rel (0) target = $region21
    $region20: #{encoder_layer_forward.7} parent=1 // pred_region
      _
    $region21: #{encoder_layer_forward.7} parent=1 // pred_fallthru
      _
    // Predicated region
    $region22: #{encoder_layer_forward.7} parent=1 // pred_check
      _
    $region23: #{encoder_layer_forward.7} parent=1 // pred_check_branch
      %27 = sbr.rel (0) target = $region25
    $region24: #{encoder_layer_forward.7} parent=1 // pred_region
      _
    $region25: #{encoder_layer_forward.7} parent=1 // pred_fallthru
      _
    // Predicated region
    $region26: #{encoder_layer_forward.7} parent=1 // pred_check
      _
    $region27: #{encoder_layer_forward.7} parent=1 // pred_check_branch
      %29 = sbr.rel (0) target = $region29
    $region28: #{encoder_layer_forward.7} parent=1 // pred_region
      _
    $region29: #{encoder_layer_forward.7} parent=1 // pred_fallthru
      _
    // Predicated region
    $region30: #{encoder_layer_forward.7} parent=1 // pred_check
      _
    $region31: #{encoder_layer_forward.7} parent=1 // pred_check_branch
      %31 = sbr.rel (0) target = $region33
    $region32: #{encoder_layer_forward.7} parent=1 // pred_region
      _
    $region33: #{encoder_layer_forward.7} parent=1 // pred_fallthru
      _
    // Predicated region
    $region34: #{encoder_layer_forward.7} parent=1 // pred_check
      _
    $region35: #{encoder_layer_forward.7} parent=1 // pred_check_branch
      %33 = sbr.rel (0) target = $region37
    $region36: #{encoder_layer_forward.7} parent=1 // pred_region
      _
    $region37: #{encoder_layer_forward.7} parent=1 // pred_fallthru
      _
    // Predicated region
    $region38: #{encoder_layer_forward.7} parent=1 // pred_check
      _
    $region39: #{encoder_layer_forward.7} parent=1 // pred_check_branch
      %35 = sbr.rel (0) target = $region41
    $region40: #{encoder_layer_forward.7} parent=1 // pred_region
      _
    $region41: #{encoder_layer_forward.7} parent=1 // pred_fallthru
      _
    %v37 = vld [vmem:[%s0] sm:$0xff]
    %v38 = vld [vmem:[%s0 + $0x8] sm:$0xff]
    %v39 = vld [vmem:[%s0 + $0x10] sm:$0xff]
    %v40 = vld [vmem:[%s0 + $0x18] sm:$0xff]
    %v41 = vld [vmem:[%s1] sm:$0xff]
    %v42 = vld [vmem:[%s1 + $0x8] sm:$0xff]
    %v43 = vld [vmem:[%s1 + $0x10] sm:$0xff]
    %v44 = vld [vmem:[%s1 + $0x18] sm:$0xff]
    %v45 = vadd.f32 %v37, %v41
    %v46 = vadd.f32 %v38, %v42
    %v47 = vadd.f32 %v39, %v43
    %v48 = vadd.f32 %v40, %v44
    %v49 = vld [vmem:[%s2] sm:$0x1]
    %v50 = vld [vmem:[%s3] sm:$0x1]
    %vm51 = vcmask 261120
    %v52 = vsel %vm51, %v45, 0.0
    %53 = vadd.xlane.f32.xlu0 %v52
    %v54 = vpop.xlane.xlu0 %53
    %v55 = vsel %vm51, %v46, 0.0
    %56 = vadd.xlane.f32.xlu0 %v55
    %v57 = vpop.xlane.xlu0 %56
    %v58 = vsel %vm51, %v47, 0.0
    %59 = vadd.xlane.f32.xlu0 %v58
    %v60 = vpop.xlane.xlu0 %59
    %v61 = vsel %vm51, %v48, 0.0
    %62 = vadd.xlane.f32.xlu0 %v61
    %v63 = vpop.xlane.xlu0 %62
    %v64 = vrcp.pop 32.0
    %v65 = vmul.f32 %v54, %v64
    %v66 = vmul.f32 %v57, %v64
    %v67 = vmul.f32 %v60, %v64
    %v68 = vmul.f32 %v63, %v64
    %v69 = vsub.f32 %v45, %v65
    %v70 = vsub.f32 %v46, %v66
    %v71 = vsub.f32 %v47, %v67
    %v72 = vsub.f32 %v48, %v68
    %v73 = vmul.f32 %v69, %v69
    %v74 = vmul.f32 %v70, %v70
    %v75 = vmul.f32 %v71, %v71
    %v76 = vmul.f32 %v72, %v72
    %v77 = vsel %vm51, %v73, 0.0
    %78 = vadd.xlane.f32.xlu0 %v77
    %v79 = vpop.xlane.xlu0 %78
    %v80 = vsel %vm51, %v74, 0.0
    %81 = vadd.xlane.f32.xlu0 %v80
    %v82 = vpop.xlane.xlu0 %81
    %v83 = vsel %vm51, %v75, 0.0
    %84 = vadd.xlane.f32.xlu0 %v83
    %v85 = vpop.xlane.xlu0 %84
    %v86 = vsel %vm51, %v76, 0.0
    %87 = vadd.xlane.f32.xlu0 %v86
    %v88 = vpop.xlane.xlu0 %87
    %v89 = vmul.f32 %v79, %v64
    %v90 = vmul.f32 %v82, %v64
    %v91 = vmul.f32 %v85, %v64
    %v92 = vmul.f32 %v88, %v64
    %v93 = vadd.f32 %v89, 1e-05
    %v94 = vadd.f32 %v90, 1e-05
    %v95 = vadd.f32 %v91, 1e-05
    %v96 = vadd.f32 %v92, 1e-05
    %v97 = vrsqrt.pop %v93
    %v98 = vrsqrt.pop %v94
    %v99 = vrsqrt.pop %v95
    %v100 = vrsqrt.pop %v96
    %v101 = vmul.f32 %v69, %v97
    %v102 = vmul.f32 %v70, %v98
    %v103 = vmul.f32 %v71, %v99
    %v104 = vmul.f32 %v72, %v100
    %v106 = vlaneseq
    %v107 = vshrl.u32 %v106, 7
    %v108 = vsub.s32 0, %v107
    %v109 = vrot.slane %v49, %v108
    %v111 = vmul.f32 %v101, %v109
    %v112 = vmul.f32 %v102, %v109
    %v113 = vmul.f32 %v103, %v109
    %v114 = vmul.f32 %v104, %v109
    %v116 = vlaneseq
    %v117 = vshrl.u32 %v116, 7
    %v118 = vsub.s32 0, %v117
    %v119 = vrot.slane %v50, %v118
    %v121 = vadd.f32 %v111, %v119
    %v122 = vadd.f32 %v112, %v119
    %v123 = vadd.f32 %v113, %v119
    %v124 = vadd.f32 %v114, %v119
    %v125 = vpack.c.bf16 %v122, %v121
    %v126 = vpack.c.bf16 %v124, %v123
    %v127 = vld [vmem:[%s4] sm:$0xf]
    %v128 = vld [vmem:[%s4 + $0x4] sm:$0xf]
    %v129 = vld [vmem:[%s4 + $0x8] sm:$0xf]
    %v130 = vld [vmem:[%s4 + $0xc] sm:$0xf]
    %v131 = vld [vmem:[%s5] sm:$0x1]
    %v133 = vlaneseq
    %v134 = vshrl.u32 %v133, 7
    %v135 = vsub.s32 0, %v134
    %v136 = vrot.slane %v131, %v135
    %v142 = vunpack.c.l.b16 %v127
    %v143 = vunpack.c.l.b16 %v128
    %v144 = vunpack.c.l.b16 %v129
    %v145 = vunpack.c.l.b16 %v130
    %v146 = vpack.c.b16 %v143, %v142
    %v147 = vpack.c.b16 %v145, %v144
    %v151 = vsel %vm51, %v125, 0
    %v154 = vsel %vm51, %v126, 0
    %156 = vmatprep.subr.bf16.mxu0 0
    %157 = vmatpush1.bf16.msra.mxu0 0
    %158 = vmatprep.subr.bf16.mxu0 0
    %159 = vmatpush1.bf16.msra.mxu0 0
    %160 = vmatprep.subr.bf16.mxu0 0
    %161 = vmatpush1.bf16.msra.mxu0 0
    %162 = vmatprep.subr.bf16.mxu0 0
    %163 = vmatpush1.bf16.msra.mxu0 0
    %164 = vmatprep.subr.bf16.mxu0 0
    %165 = vmatpush1.bf16.msra.mxu0 0
    %166 = vmatprep.subr.bf16.mxu0 0
    %167 = vmatpush1.bf16.msra.mxu0 0
    %168 = vmatprep.subr.bf16.mxu0 0
    %169 = vmatpush1.bf16.msra.mxu0 %v147
    %170 = vmatprep.subr.bf16.mxu0 0
    %171 = vmatpush1.bf16.msra.mxu0 %v146
    %172 = vmatprep.subr.bf16.mxu0 0
    %173 = vmatpush2.bf16.msra.mxu0 0
    %174 = vmatprep.subr.bf16.mxu0 0
    %175 = vmatpush2.bf16.msra.mxu0 0
    %176 = vmatprep.subr.bf16.mxu0 0
    %177 = vmatpush2.bf16.msra.mxu0 0
    %178 = vmatprep.subr.bf16.mxu0 0
    %179 = vmatpush2.bf16.msra.mxu0 0
    %180 = vmatprep.subr.bf16.mxu0 0
    %181 = vmatpush2.bf16.msra.mxu0 0
    %182 = vmatprep.subr.bf16.mxu0 0
    %183 = vmatpush2.bf16.msra.mxu0 0
    %184 = vmatprep.subr.bf16.mxu0 0
    %185 = vmatpush2.bf16.msra.mxu0 0
    %186 = vmatprep.subr.bf16.mxu0 0
    %187 = vmatpush2.bf16.msra.mxu0 0
    %188 = vmatprep.mubr.bf16.mxu0 0
    %189 = vmatmul.mubr.bf16.gmra.mxu0 %v151
    %v190 = vpop.f32.mrf.mxu0
    %v191 = vadd.f32 %v136, %v190
    %v192 = vpop.f32.mrf.mxu0
    %v193 = vpop.f32.mrf.mxu0
    %v194 = vadd.f32 %v136, %v193
    %v195 = vpop.f32.mrf.mxu0
    %196 = vmatprep.mubr.bf16.mxu0 0
    %197 = vmatmul.mubr.bf16.gmra.mxu0 %v154
    %v198 = vpop.f32.mrf.mxu0
    %v199 = vadd.f32 %v136, %v198
    %v200 = vpop.f32.mrf.mxu0
    %v201 = vpop.f32.mrf.mxu0
    %v202 = vadd.f32 %v136, %v201
    %v203 = vpop.f32.mrf.mxu0
    %204 = vdwg.mxu0
    %v205 = vmul.f32 %v191, 0.5
    %v206 = vmul.f32 %v194, 0.5
    %v207 = vmul.f32 %v199, 0.5
    %v208 = vmul.f32 %v202, 0.5
    %v209 = vmul.f32 %v191, 0.70710677
    %v210 = vmul.f32 %v194, 0.70710677
    %v211 = vmul.f32 %v199, 0.70710677
    %v212 = vmul.f32 %v202, 0.70710677
    %v213 = vand.u32 2147483647, %v209
    %v214 = vand.u32 2147483647, %v210
    %v215 = vand.u32 2147483647, %v211
    %v216 = vand.u32 2147483647, %v212
    %v217 = vmul.f32 %v213, 0.3275911
    %v218 = vmul.f32 %v214, 0.3275911
    %v219 = vmul.f32 %v215, 0.3275911
    %v220 = vmul.f32 %v216, 0.3275911
    %v221 = vadd.f32 %v217, 1.0
    %v222 = vadd.f32 %v218, 1.0
    %v223 = vadd.f32 %v219, 1.0
    %v224 = vadd.f32 %v220, 1.0
    %v225 = vrcp.pop %v221
    %v226 = vmul.f32 1.0, %v225
    %v227 = vrcp.pop %v222
    %v228 = vmul.f32 1.0, %v227
    %v229 = vrcp.pop %v223
    %v230 = vmul.f32 1.0, %v229
    %v231 = vrcp.pop %v224
    %v232 = vmul.f32 1.0, %v231
    %v233 = vmul.f32 %v226, 1.0614054
    %v234 = vmul.f32 %v228, 1.0614054
    %v235 = vmul.f32 %v230, 1.0614054
    %v236 = vmul.f32 %v232, 1.0614054
    %v237 = vadd.f32 %v233, -1.4531521
    %v238 = vadd.f32 %v234, -1.4531521
    %v239 = vadd.f32 %v235, -1.4531521
    %v240 = vadd.f32 %v236, -1.4531521
    %v241 = vmul.f32 %v237, %v226
    %v242 = vmul.f32 %v238, %v228
    %v243 = vmul.f32 %v239, %v230
    %v244 = vmul.f32 %v240, %v232
    %v245 = vadd.f32 %v241, 1.4214138
    %v246 = vadd.f32 %v242, 1.4214138
    %v247 = vadd.f32 %v243, 1.4214138
    %v248 = vadd.f32 %v244, 1.4214138
    %v249 = vmul.f32 %v245, %v226
    %v250 = vmul.f32 %v246, %v228
    %v251 = vmul.f32 %v247, %v230
    %v252 = vmul.f32 %v248, %v232
    %v253 = vadd.f32 %v249, -0.28449672
    %v254 = vadd.f32 %v250, -0.28449672
    %v255 = vadd.f32 %v251, -0.28449672
    %v256 = vadd.f32 %v252, -0.28449672
    %v257 = vmul.f32 %v253, %v226
    %v258 = vmul.f32 %v254, %v228
    %v259 = vmul.f32 %v255, %v230
    %v260 = vmul.f32 %v256, %v232
    %v261 = vadd.f32 %v257, 0.2548296
    %v262 = vadd.f32 %v258, 0.2548296
    %v263 = vadd.f32 %v259, 0.2548296
    %v264 = vadd.f32 %v260, 0.2548296
    %v265 = vmul.f32 %v261, %v226
    %v266 = vmul.f32 %v262, %v228
    %v267 = vmul.f32 %v263, %v230
    %v268 = vmul.f32 %v264, %v232
    %v269 = vsub.f32 0.0, %v213
    %v270 = vsub.f32 0.0, %v214
    %v271 = vsub.f32 0.0, %v215
    %v272 = vsub.f32 0.0, %v216
    %v273 = vmul.f32 %v269, %v213
    %v274 = vmul.f32 %v270, %v214
    %v275 = vmul.f32 %v271, %v215
    %v276 = vmul.f32 %v272, %v216
    %v277 = vmul.f32 %v273, 1.442695
    %v278 = vpow.pop %v277
    %v279 = vmul.f32 %v274, 1.442695
    %v280 = vpow.pop %v279
    %v281 = vmul.f32 %v275, 1.442695
    %v282 = vpow.pop %v281
    %v283 = vmul.f32 %v276, 1.442695
    %v284 = vpow.pop %v283
    %v285 = vmul.f32 %v265, %v278
    %v286 = vmul.f32 %v266, %v280
    %v287 = vmul.f32 %v267, %v282
    %v288 = vmul.f32 %v268, %v284
    %v289 = vsub.f32 1.0, %v285
    %v290 = vsub.f32 1.0, %v286
    %v291 = vsub.f32 1.0, %v287
    %v292 = vsub.f32 1.0, %v288
    %vm293 = vcmp.ge.f32.partialorder %v209, 0.0
    %vm294 = vcmp.ge.f32.partialorder %v210, 0.0
    %vm295 = vcmp.ge.f32.partialorder %v211, 0.0
    %vm296 = vcmp.ge.f32.partialorder %v212, 0.0
    %v297 = vsub.f32 0.0, %v289
    %v298 = vsub.f32 0.0, %v290
    %v299 = vsub.f32 0.0, %v291
    %v300 = vsub.f32 0.0, %v292
    %v301 = vsel %vm293, %v289, %v297
    %v302 = vsel %vm294, %v290, %v298
    %v303 = vsel %vm295, %v291, %v299
    %v304 = vsel %vm296, %v292, %v300
    %v305 = vadd.f32 %v301, 1.0
    %v306 = vadd.f32 %v302, 1.0
    %v307 = vadd.f32 %v303, 1.0
    %v308 = vadd.f32 %v304, 1.0
    %v309 = vmul.f32 %v205, %v305
    %v310 = vmul.f32 %v206, %v306
    %v311 = vmul.f32 %v207, %v307
    %v312 = vmul.f32 %v208, %v308
    %v313 = vpack.c.bf16 %v310, %v309
    %v314 = vpack.c.bf16 %v312, %v311
    %v315 = vld [vmem:[%s6] sm:$0xf]
    %v316 = vld [vmem:[%s6 + $0x4] sm:$0xf]
    %v317 = vld [vmem:[%s6 + $0x8] sm:$0xf]
    %v318 = vld [vmem:[%s6 + $0xc] sm:$0xf]
    %v319 = vld [vmem:[%s6 + $0x10] sm:$0xf]
    %v320 = vld [vmem:[%s6 + $0x14] sm:$0xf]
    %v321 = vld [vmem:[%s6 + $0x18] sm:$0xf]
    %v322 = vld [vmem:[%s6 + $0x1c] sm:$0xf]
    %v323 = vld [vmem:[%s7] sm:$0x1]
    %v325 = vlaneseq
    %v326 = vshrl.u32 %v325, 7
    %v327 = vsub.s32 0, %v326
    %v328 = vrot.slane %v323, %v327
    %v338 = vunpack.c.l.b16 %v315
    %v339 = vunpack.c.l.b16 %v316
    %v340 = vunpack.c.l.b16 %v317
    %v341 = vunpack.c.l.b16 %v318
    %v342 = vunpack.c.l.b16 %v319
    %v343 = vunpack.c.l.b16 %v320
    %v344 = vunpack.c.l.b16 %v321
    %v345 = vunpack.c.l.b16 %v322
    %v346 = vpack.c.b16 %v339, %v338
    %v347 = vpack.c.b16 %v341, %v340
    %v348 = vpack.c.b16 %v343, %v342
    %v349 = vpack.c.b16 %v345, %v344
    %vm354 = vcmask 523264
    %v356 = vsel %vm354, %v313, 0
    %v359 = vsel %vm354, %v314, 0
    %361 = vmatprep.subr.bf16.mxu0 0
    %362 = vmatpush1.bf16.msra.mxu0 0
    %363 = vmatprep.subr.bf16.mxu0 0
    %364 = vmatpush1.bf16.msra.mxu0 0
    %365 = vmatprep.subr.bf16.mxu0 0
    %366 = vmatpush1.bf16.msra.mxu0 0
    %367 = vmatprep.subr.bf16.mxu0 0
    %368 = vmatpush1.bf16.msra.mxu0 0
    %369 = vmatprep.subr.bf16.mxu0 0
    %370 = vmatpush1.bf16.msra.mxu0 %v349
    %371 = vmatprep.subr.bf16.mxu0 0
    %372 = vmatpush1.bf16.msra.mxu0 %v348
    %373 = vmatprep.subr.bf16.mxu0 0
    %374 = vmatpush1.bf16.msra.mxu0 %v347
    %375 = vmatprep.subr.bf16.mxu0 0
    %376 = vmatpush1.bf16.msra.mxu0 %v346
    %377 = vmatprep.subr.bf16.mxu0 0
    %378 = vmatpush2.bf16.msra.mxu0 0
    %379 = vmatprep.subr.bf16.mxu0 0
    %380 = vmatpush2.bf16.msra.mxu0 0
    %381 = vmatprep.subr.bf16.mxu0 0
    %382 = vmatpush2.bf16.msra.mxu0 0
    %383 = vmatprep.subr.bf16.mxu0 0
    %384 = vmatpush2.bf16.msra.mxu0 0
    %385 = vmatprep.subr.bf16.mxu0 0
    %386 = vmatpush2.bf16.msra.mxu0 0
    %387 = vmatprep.subr.bf16.mxu0 0
    %388 = vmatpush2.bf16.msra.mxu0 0
    %389 = vmatprep.subr.bf16.mxu0 0
    %390 = vmatpush2.bf16.msra.mxu0 0
    %391 = vmatprep.subr.bf16.mxu0 0
    %392 = vmatpush2.bf16.msra.mxu0 0
    %393 = vmatprep.mubr.bf16.mxu0 0
    %394 = vmatmul.mubr.bf16.gmra.mxu0 %v356
    %v395 = vpop.f32.mrf.mxu0
    %v396 = vadd.f32 %v328, %v395
    %v397 = vpop.f32.mrf.mxu0
    %v398 = vpop.f32.mrf.mxu0
    %v399 = vadd.f32 %v328, %v398
    %v400 = vpop.f32.mrf.mxu0
    %401 = vmatprep.mubr.bf16.mxu0 0
    %402 = vmatmul.mubr.bf16.gmra.mxu0 %v359
    %v403 = vpop.f32.mrf.mxu0
    %v404 = vadd.f32 %v328, %v403
    %v405 = vpop.f32.mrf.mxu0
    %v406 = vpop.f32.mrf.mxu0
    %v407 = vadd.f32 %v328, %v406
    %v408 = vpop.f32.mrf.mxu0
    %409 = vdwg.mxu0
    %v410 = vadd.f32 %v121, %v396
    %v411 = vadd.f32 %v122, %v399
    %v412 = vadd.f32 %v123, %v404
    %v413 = vadd.f32 %v124, %v407
    %v414 = vld [vmem:[%s8] sm:$0x1]
    %v415 = vld [vmem:[%s9] sm:$0x1]
    %v416 = vsel %vm51, %v410, 0.0
    %417 = vadd.xlane.f32.xlu0 %v416
    %v418 = vpop.xlane.xlu0 %417
    %v419 = vsel %vm51, %v411, 0.0
    %420 = vadd.xlane.f32.xlu0 %v419
    %v421 = vpop.xlane.xlu0 %420
    %v422 = vsel %vm51, %v412, 0.0
    %423 = vadd.xlane.f32.xlu0 %v422
    %v424 = vpop.xlane.xlu0 %423
    %v425 = vsel %vm51, %v413, 0.0
    %426 = vadd.xlane.f32.xlu0 %v425
    %v427 = vpop.xlane.xlu0 %426
    %v428 = vmul.f32 %v418, %v64
    %v429 = vmul.f32 %v421, %v64
    %v430 = vmul.f32 %v424, %v64
    %v431 = vmul.f32 %v427, %v64
    %v432 = vsub.f32 %v410, %v428
    %v433 = vsub.f32 %v411, %v429
    %v434 = vsub.f32 %v412, %v430
    %v435 = vsub.f32 %v413, %v431
    %v436 = vmul.f32 %v432, %v432
    %v437 = vmul.f32 %v433, %v433
    %v438 = vmul.f32 %v434, %v434
    %v439 = vmul.f32 %v435, %v435
    %v440 = vsel %vm51, %v436, 0.0
    %441 = vadd.xlane.f32.xlu0 %v440
    %v442 = vpop.xlane.xlu0 %441
    %v443 = vsel %vm51, %v437, 0.0
    %444 = vadd.xlane.f32.xlu0 %v443
    %v445 = vpop.xlane.xlu0 %444
    %v446 = vsel %vm51, %v438, 0.0
    %447 = vadd.xlane.f32.xlu0 %v446
    %v448 = vpop.xlane.xlu0 %447
    %v449 = vsel %vm51, %v439, 0.0
    %450 = vadd.xlane.f32.xlu0 %v449
    %v451 = vpop.xlane.xlu0 %450
    %v452 = vmul.f32 %v442, %v64
    %v453 = vmul.f32 %v445, %v64
    %v454 = vmul.f32 %v448, %v64
    %v455 = vmul.f32 %v451, %v64
    %v456 = vadd.f32 %v452, 1e-05
    %v457 = vadd.f32 %v453, 1e-05
    %v458 = vadd.f32 %v454, 1e-05
    %v459 = vadd.f32 %v455, 1e-05
    %v460 = vrsqrt.pop %v456
    %v461 = vrsqrt.pop %v457
    %v462 = vrsqrt.pop %v458
    %v463 = vrsqrt.pop %v459
    %v464 = vmul.f32 %v432, %v460
    %v465 = vmul.f32 %v433, %v461
    %v466 = vmul.f32 %v434, %v462
    %v467 = vmul.f32 %v435, %v463
    %v469 = vlaneseq
    %v470 = vshrl.u32 %v469, 7
    %v471 = vsub.s32 0, %v470
    %v472 = vrot.slane %v414, %v471
    %v474 = vmul.f32 %v464, %v472
    %v475 = vmul.f32 %v465, %v472
    %v476 = vmul.f32 %v466, %v472
    %v477 = vmul.f32 %v467, %v472
    %v479 = vlaneseq
    %v480 = vshrl.u32 %v479, 7
    %v481 = vsub.s32 0, %v480
    %v482 = vrot.slane %v415, %v481
    %v484 = vadd.f32 %v474, %v482
    %v485 = vadd.f32 %v475, %v482
    %v486 = vadd.f32 %v476, %v482
    %v487 = vadd.f32 %v477, %v482
    %488 = vst.msk [vmem:[#allocation2] sm:$0xff] %vm51, %v484
    %489 = vst.msk [vmem:[#allocation2 + $0x8] sm:$0xff] %vm51, %v485
    %490 = vst.msk [vmem:[#allocation2 + $0x10] sm:$0xff] %vm51, %v486
    %491 = vst.msk [vmem:[#allocation2 + $0x18] sm:$0xff] %vm51, %v487
    // Predicated region
    $region42: #{encoder_layer_forward.7} parent=1 // pred_check
      _
    $region43: #{encoder_layer_forward.7} parent=1 // pred_check_branch
      %493 = sbr.rel (0) target = $region45
    $region44: #{encoder_layer_forward.7} parent=1 // pred_region
      %s495 = ssub.s32 512, 512
      %496 = vsyncadd [#allocation3], %s495
      %s497 = sshll.u32 [#allocation2], 4
      %s498 = int_to_ptr.vmem [resolvable:$true] %s497
      %503 = dma.vmem_to_hbm [thread:$0]  %s498, 512, %s10, [#allocation3], 128, 128, 8
    $region45: #{encoder_layer_forward.7} parent=1 // pred_fallthru
      _
    // Predicated region
    $region46: #{encoder_layer_forward.7} parent=1 // pred_check
      _
    $region47: #{encoder_layer_forward.7} parent=1 // pred_check_branch
      %505 = sbr.rel (0) target = $region49
    $region48: #{encoder_layer_forward.7} parent=1 // pred_region
      %506 = dma.done [#allocation3], 512
    $region49: #{encoder_layer_forward.7} parent=1 // pred_fallthru
      _
    %507 = vsyncpa [#allocation3], 1

</llo_original>
